<compile_context>
chip_gen: v5e
topology: v5e:2x2
jax: 0.10.0
libtpu: 0.0.40
codegen_flags: <defaults>
</compile_context>

<pallas_src>
import functools
import math

import jax
import jax.numpy as jnp
from jax.experimental import pallas as pl
from jax.experimental.pallas import tpu as pltpu

MASK_VALUE = -0.7 * float(jnp.finfo(jnp.float32).max)  # finite, avoids -inf NaNs
LN_EPS = 1e-5                                          # PyTorch nn.LayerNorm default
_SCORE_BUDGET_BYTES = 16 * 1024 * 1024                 # max live f32 score bytes

PARAM_ORDER = [
    "wqkv", "bqkv", "wo", "bo", "ln1",
    "wcq", "bcq", "wckv", "bckv", "wco", "bco", "ln2",
    "w1", "b1", "w2", "b2", "ln3",
]


# ----------------------------- kernel helpers -----------------------------

def _layer_norm(x, ln):
    """x: (rows, H) f32, ln: (2, H) f32 with ln[0]=gamma, ln[1]=beta."""
    gamma = ln[0:1, :]
    beta = ln[1:2, :]
    mean = jnp.mean(x, axis=-1, keepdims=True)
    var = jnp.mean(jnp.square(x - mean), axis=-1, keepdims=True)
    return (x - mean) * jax.lax.rsqrt(var + LN_EPS) * gamma + beta


def _to_heads(t, bt, seq, n_heads, head_dim):
    """(bt*seq, H) -> (bt*n_heads, seq, head_dim) with one reshape+transpose."""
    t4 = t.reshape(bt, seq, n_heads, head_dim)
    t4 = jnp.transpose(t4, (0, 2, 1, 3))
    return t4.reshape(bt * n_heads, seq, head_dim)


def _mha(q_bf, k_bf, v_bf, mask_b, bt, n_heads, head_dim):
    """Batched multi-head attention for all (batch, head) pairs at once.

    q_bf: (bt*Sq, H) bf16 (already scaled by 1/sqrt(head_dim))
    k_bf, v_bf: (bt*Sk, H) bf16
    mask_b: (bt, Sq, Sk) or (bt, 1, Sk) bool
    returns: (bt*Sq, H) f32 context
    """
    H = q_bf.shape[1]
    Sq = q_bf.shape[0] // bt
    Sk = k_bf.shape[0] // bt
    BH = bt * n_heads

    q3 = _to_heads(q_bf, bt, Sq, n_heads, head_dim)     # (BH, Sq, hd)
    k3 = _to_heads(k_bf, bt, Sk, n_heads, head_dim)     # (BH, Sk, hd)
    v3 = _to_heads(v_bf, bt, Sk, n_heads, head_dim)     # (BH, Sk, hd)

    # Bound the live (chunk, Sq, Sk) f32 score tensor; at small/typical shapes
    # this is a single fused einsum over every (batch, head) pair.
    # TODO(synk): flash-style KV blocking for very long sequences.
    per_bh = Sq * Sk * 4
    chunk = max(1, min(BH, _SCORE_BUDGET_BYTES // max(per_bh, 1)))
    if chunk >= n_heads:
        chunk = (chunk // n_heads) * n_heads            # whole batch items
    else:
        while n_heads % chunk:                          # divisor of n_heads
            chunk -= 1

    outs = []
    for c0 in range(0, BH, chunk):
        c1 = min(BH, c0 + chunk)
        s = jnp.einsum("bqd,bkd->bqk", q3[c0:c1], k3[c0:c1],
                       preferred_element_type=jnp.float32)          # (C, Sq, Sk)
        if chunk >= n_heads:                            # spans whole batch items
            nb = (c1 - c0) // n_heads
            b0 = c0 // n_heads
            s4 = s.reshape(nb, n_heads, Sq, Sk)
            s4 = jnp.where(mask_b[b0:b0 + nb][:, None], s4, MASK_VALUE)
            s = s4.reshape(c1 - c0, Sq, Sk)
        else:                                           # within one batch item
            b_idx = c0 // n_heads
            s = jnp.where(mask_b[b_idx][None], s, MASK_VALUE)
        s = s - jnp.max(s, axis=-1, keepdims=True)
        p = jnp.exp(s)
        p = p / jnp.sum(p, axis=-1, keepdims=True)      # exact divide
        outs.append(jnp.einsum("bqk,bkd->bqd", p.astype(jnp.bfloat16), v3[c0:c1],
                               preferred_element_type=jnp.float32))
    o3 = outs[0] if len(outs) == 1 else jnp.concatenate(outs, axis=0)

    o4 = o3.reshape(bt, n_heads, Sq, head_dim)
    o4 = jnp.transpose(o4, (0, 2, 1, 3))
    return o4.reshape(bt * Sq, H)                       # (bt*Sq, H) f32


# ----------------------------- Pallas kernel ------------------------------

def _decoder_layer_kernel(x_ref, enc_ref, dpad_ref, epad_ref,
                          wqkv_ref, bqkv_ref, wo_ref, bo_ref, ln1_ref,
                          wcq_ref, bcq_ref, wckv_ref, bckv_ref,
                          wco_ref, bco_ref, ln2_ref,
                          w1_ref, b1_ref, w2_ref, b2_ref, ln3_ref,
                          out_ref, x2_scr, acc_scr, *, n_heads):
    bt, S, H = x_ref.shape
    Se = enc_ref.shape[1]
    head_dim = H // n_heads
    j = pl.program_id(1)                                # FFN block index

    # ---- attention phase: runs once per batch block (j == 0) ----
    @pl.when(j == 0)
    def _attention_and_init():
        x_bf = x_ref[...].reshape(bt * S, H)            # bf16 rows for matmuls
        x_f32 = x_bf.astype(jnp.float32)                # residual (layer input)
        enc_bf = enc_ref[...].reshape(bt * Se, H)

        # Causal structure built in-kernel (no O(B*S^2) mask DMA from HBM).
        row = jax.lax.broadcasted_iota(jnp.int32, (S, S), 0)
        col = jax.lax.broadcasted_iota(jnp.int32, (S, S), 1)
        causal = col <= row                                              # (S, S)
        dmask = causal[None, :, :] & (dpad_ref[...] > 0.5)               # (bt,S,S)
        emask = epad_ref[...] > 0.5                                      # (bt,1,Se)

        scale = 1.0 / math.sqrt(head_dim)

        # causal self-attention (post-LN, residual = layer input)
        qkv = jnp.dot(x_bf, wqkv_ref[...],
                      preferred_element_type=jnp.float32) + bqkv_ref[...]
        q = (qkv[:, :H] * scale).astype(jnp.bfloat16)
        k = qkv[:, H:2 * H].astype(jnp.bfloat16)
        v = qkv[:, 2 * H:].astype(jnp.bfloat16)
        ctx = _mha(q, k, v, dmask, bt, n_heads, head_dim)

        attn = jnp.dot(ctx.astype(jnp.bfloat16), wo_ref[...],
                       preferred_element_type=jnp.float32) + bo_ref[...]
        x1 = _layer_norm(attn + x_f32, ln1_ref[...])
        x1_bf = x1.astype(jnp.bfloat16)

        # cross attention over encoder hidden states
        q2 = ((jnp.dot(x1_bf, wcq_ref[...], preferred_element_type=jnp.float32)
               + bcq_ref[...]) * scale).astype(jnp.bfloat16)
        kv = jnp.dot(enc_bf, wckv_ref[...],
                     preferred_element_type=jnp.float32) + bckv_ref[...]
        k2 = kv[:, :H].astype(jnp.bfloat16)
        v2 = kv[:, H:].astype(jnp.bfloat16)
        ctx2 = _mha(q2, k2, v2, emask, bt, n_heads, head_dim)

        cross = jnp.dot(ctx2.astype(jnp.bfloat16), wco_ref[...],
                        preferred_element_type=jnp.float32) + bco_ref[...]
        x2 = _layer_norm(cross + x1, ln2_ref[...])

        x2_scr[...] = x2.astype(jnp.bfloat16)           # FFN input
        acc_scr[...] = jnp.zeros_like(acc_scr)          # FFN accumulator

    # ---- feed forward, streamed over intermediate-dim blocks (every j) ----
    # TODO(synk): PyTorch nn.GELU default is exact erf GELU; tanh approximation
    # is used here for guaranteed Mosaic lowering.
    h1 = jax.nn.gelu(
        jnp.dot(x2_scr[...], w1_ref[...], preferred_element_type=jnp.float32)
        + b1_ref[...], approximate=True).astype(jnp.bfloat16)
    acc_scr[...] += jnp.dot(h1, w2_ref[...], preferred_element_type=jnp.float32)

    # ---- finalize: residual is the ORIGINAL layer input, matching
    #      Seq2SeqDecoderLayer.forward: self.feed_forward(out, hidden_state) ----
    @pl.when(j == pl.num_programs(1) - 1)
    def _finalize():
        x_f32 = x_ref[...].reshape(bt * S, H).astype(jnp.float32)
        h2 = acc_scr[...] + b2_ref[...]
        out = _layer_norm(h2 + x_f32, ln3_ref[...])
        out_ref[...] = out.reshape(bt, S, H).astype(out_ref.dtype)


def _vmem_limit_bytes():
    """Generation-aware VMEM limit: ~100 MiB on v5e/v6e, ~56 MiB on v7x."""
    try:
        cap = int(pltpu.get_tpu_info().vmem_capacity_bytes)
    except Exception:
        cap = 128 * 1024 * 1024
    return max(32 * 1024 * 1024, min(cap - 8 * 1024 * 1024, 100 * 1024 * 1024))


def decoder_layer(x, enc, dpad, epad, params, n_heads,
                  batch_block=None, ffn_block=None):
    """One Seq2SeqDecoderLayer as a single pallas_call.

    grid = (batch_blocks [parallel], ffn_blocks [arbitrary]); attention runs on
    the first FFN step, the FFN streams w1/w2 in intermediate-dim tiles.
    """
    B, S, H = x.shape
    Se = enc.shape[1]
    inter = params["w1"].shape[1]

    # Pack multiple batch items per grid step so the flattened projections see
    # ~256 rows (full 256-wide MXU on v6e/v7x) when S is small.
    if batch_block is None:
        batch_block = max(1, min(B, 256 // max(S, 1)))
    batch_block = min(batch_block, B)
    while B % batch_block:
        batch_block -= 1
    bt = batch_block

    # FFN intermediate-dim tile (streams w1/w2; bounds per-step VMEM).
    if ffn_block is None:
        ffn_block = min(inter, 512)
    ffn_block = min(ffn_block, inter)
    while inter % ffn_block:
        ffn_block -= 1
    if ffn_block != inter and ffn_block % 128 != 0:
        ffn_block = inter                      # fall back to a single FFN block
    fb = ffn_block
    n_fb = inter // fb

    single = pl.Buffered(1)    # grid-invariant weights: no double-buffering

    def act_map(b, j):  return (b, 0, 0)
    def const2(b, j):   return (0, 0)
    def ffn_n_map(b, j):  return (0, j)        # w1 / b1: tile the N (out) dim
    def ffn_k_map(b, j):  return (j, 0)        # w2: tile the K (in) dim

    def wspec(name):
        if name == "w1":
            return pl.BlockSpec((H, fb), ffn_n_map)
        if name == "b1":
            return pl.BlockSpec((1, fb), ffn_n_map)
        if name == "w2":
            return pl.BlockSpec((fb, H), ffn_k_map)
        return pl.BlockSpec(params[name].shape, const2, pipeline_mode=single)

    in_specs = [
        pl.BlockSpec((bt, S, H), act_map),      # x
        pl.BlockSpec((bt, Se, H), act_map),     # encoder hidden state
        pl.BlockSpec((bt, 1, S), act_map),      # decoder padding mask row
        pl.BlockSpec((bt, 1, Se), act_map),     # encoder padding mask row
    ] + [wspec(name) for name in PARAM_ORDER]

    out_specs = pl.BlockSpec((bt, S, H), act_map)

    kernel = functools.partial(_decoder_layer_kernel, n_heads=n_heads)
    return pl.pallas_call(
        kernel,
        out_shape=jax.ShapeDtypeStruct((B, S, H), jnp.bfloat16),
        grid=(B // bt, n_fb),
        in_specs=in_specs,
        out_specs=out_specs,
        scratch_shapes=[
            pltpu.VMEM((bt * S, H), jnp.bfloat16),   # x2 (post cross-attn LN)
            pltpu.VMEM((bt * S, H), jnp.float32),    # FFN output accumulator
        ],
        compiler_params=pltpu.CompilerParams(
            dimension_semantics=("parallel", "arbitrary"),
            vmem_limit_bytes=_vmem_limit_bytes()),
    )(x, enc, dpad, epad, *[params[n] for n in PARAM_ORDER])


# ------------------------------ JAX glue -----------------------------------

def seq2seq_decoder_forward(input_ids, attention_mask, encoder_hidden_state,
                            encoder_attention_mask, word_emb, pos_emb,
                            layer_params, n_heads, start_pos=0):
    """Mirror of Seq2SeqDecoderModel.forward (absolute position embeddings)."""
    # TODO(synk): incremental decoding (use_cache / start_pos > 0) needs a KV
    # cache and is not implemented; this covers the full-sequence forward.
    B, S = input_ids.shape
    Se = encoder_hidden_state.shape[1]

    # word + absolute position embeddings (glue: gather + broadcast add)
    hidden = jnp.take(word_emb, input_ids, axis=0)                  # (B, S, H) f32
    hidden = hidden + pos_emb[start_pos:start_pos + S][None, :, :]
    hidden = hidden.astype(jnp.bfloat16)

    # Only the tiny padding rows are shipped to the kernel; the causal mask and
    # the additive form are reconstructed in-kernel (same semantics as
    # create_mask_for_decoder followed by (1 - mask) * finfo.min).
    if attention_mask is None:
        attention_mask = jnp.ones((B, S), jnp.float32)
    dpad = attention_mask.astype(jnp.float32).reshape(B, 1, S)

    if encoder_attention_mask is None:
        encoder_attention_mask = jnp.ones((B, Se), jnp.float32)
    epad = encoder_attention_mask.astype(jnp.float32).reshape(B, 1, Se)

    enc = encoder_hidden_state.astype(jnp.bfloat16)
    for params in layer_params:
        hidden = decoder_layer(hidden, enc, dpad, epad, params, n_heads)
    return hidden


def init_params(key, num_layers, vocab, hidden, intermediate, max_pos, pad_token_id):
    std = 0.02 / math.sqrt(2 * num_layers)
    keys = jax.random.split(key, 2 + num_layers)

    word_emb = jax.random.normal(keys[0], (vocab, hidden), jnp.float32) * std
    word_emb = word_emb.at[pad_token_id].set(0.0)   # padding_idx behaviour
    pos_emb = jax.random.normal(keys[1], (max_pos, hidden), jnp.float32) * std

    def lin(k, shape):  # bf16 weights, f32 accumulation in-kernel
        return (jax.random.normal(k, shape, jnp.float32) * std).astype(jnp.bfloat16)

    ln_init = jnp.concatenate([jnp.ones((1, hidden), jnp.float32),
                               jnp.zeros((1, hidden), jnp.float32)], axis=0)

    layers = []
    for li in range(num_layers):
        lk = jax.random.split(keys[2 + li], 7)
        layers.append({
            "wqkv": lin(lk[0], (hidden, 3 * hidden)),
            "bqkv": jnp.zeros((1, 3 * hidden), jnp.float32),
            "wo": lin(lk[1], (hidden, hidden)),
            "bo": jnp.zeros((1, hidden), jnp.float32),
            "ln1": ln_init,
            "wcq": lin(lk[2], (hidden, hidden)),
            "bcq": jnp.zeros((1, hidden), jnp.float32),
            "wckv": lin(lk[3], (hidden, 2 * hidden)),
            "bckv": jnp.zeros((1, 2 * hidden), jnp.float32),
            "wco": lin(lk[4], (hidden, hidden)),
            "bco": jnp.zeros((1, hidden), jnp.float32),
            "ln2": ln_init,
            "w1": lin(lk[5], (hidden, intermediate)),
            "b1": jnp.zeros((1, intermediate), jnp.float32),
            "w2": lin(lk[6], (intermediate, hidden)),
            "b2": jnp.zeros((1, hidden), jnp.float32),
            "ln3": ln_init,
        })
    return word_emb, pos_emb, layers


if __name__ == "__main__":
    # small config consistent with the module's forward
    B, S, Se = 2, 8, 8
    vocab, hidden, n_heads, intermediate = 100, 32, 4, 64
    num_layers, max_pos, pad_token_id = 2, 32, 0

    key = jax.random.PRNGKey(0)
    k_ids, k_enc, k_par = jax.random.split(key, 3)

    input_ids = jax.random.randint(k_ids, (B, S), 1, vocab, dtype=jnp.int32)
    attention_mask = jnp.ones((B, S), jnp.float32)                   # (batch, seqlen)
    encoder_hidden_state = jax.random.normal(k_enc, (B, Se, hidden), jnp.float32)
    encoder_attention_mask = jnp.ones((B, Se), jnp.float32)

    word_emb, pos_emb, layer_params = init_params(
        k_par, num_layers, vocab, hidden, intermediate, max_pos, pad_token_id)

    out = seq2seq_decoder_forward(
        input_ids, attention_mask, encoder_hidden_state, encoder_attention_mask,
        word_emb, pos_emb, layer_params, n_heads, start_pos=0)
    jax.block_until_ready(out)

    assert out.shape == (B, S, hidden), out.shape
    assert bool(jnp.all(jnp.isfinite(out.astype(jnp.float32))))
    print("KERNEL_OK")
</pallas_src>

<mosaic_0001>
module attributes {stable_mosaic.version = 11 : i64} {
  func.func @_decoder_layer_kernel(%arg0: i32, %arg1: i32, %arg2: memref<2x8x32xbf16, #tpu.memory_space<vmem>>, %arg3: memref<2x8x32xbf16, #tpu.memory_space<vmem>>, %arg4: memref<2x1x8xf32, #tpu.memory_space<vmem>>, %arg5: memref<2x1x8xf32, #tpu.memory_space<vmem>>, %arg6: memref<32x96xbf16, #tpu.memory_space<vmem>>, %arg7: memref<1x96xf32, #tpu.memory_space<vmem>>, %arg8: memref<32x32xbf16, #tpu.memory_space<vmem>>, %arg9: memref<1x32xf32, #tpu.memory_space<vmem>>, %arg10: memref<2x32xf32, #tpu.memory_space<vmem>>, %arg11: memref<32x32xbf16, #tpu.memory_space<vmem>>, %arg12: memref<1x32xf32, #tpu.memory_space<vmem>>, %arg13: memref<32x64xbf16, #tpu.memory_space<vmem>>, %arg14: memref<1x64xf32, #tpu.memory_space<vmem>>, %arg15: memref<32x32xbf16, #tpu.memory_space<vmem>>, %arg16: memref<1x32xf32, #tpu.memory_space<vmem>>, %arg17: memref<2x32xf32, #tpu.memory_space<vmem>>, %arg18: memref<32x64xbf16, #tpu.memory_space<vmem>>, %arg19: memref<1x64xf32, #tpu.memory_space<vmem>>, %arg20: memref<64x32xbf16, #tpu.memory_space<vmem>>, %arg21: memref<1x32xf32, #tpu.memory_space<vmem>>, %arg22: memref<2x32xf32, #tpu.memory_space<vmem>>, %arg23: memref<2x8x32xbf16, #tpu.memory_space<vmem>>, %arg24: memref<16x32xbf16, #tpu.memory_space<vmem>>, %arg25: memref<16x32xf32, #tpu.memory_space<vmem>>) attributes {dimension_semantics = [#tpu.dimension_semantics<parallel>, #tpu.dimension_semantics<arbitrary>], iteration_bounds = array<i64: 1, 1>, scalar_prefetch = 0 : i64, scratch_operands = 2 : i64, tpu.core_type = #tpu.core_type<tc>, window_params = [{transform_indices = @transform_0, window_bounds = array<i64: 2, 8, 32>}, {transform_indices = @transform_1, window_bounds = array<i64: 2, 8, 32>}, {transform_indices = @transform_2, window_bounds = array<i64: 2, 1, 8>}, {transform_indices = @transform_3, window_bounds = array<i64: 2, 1, 8>}, {pipeline_mode = #tpu.pipeline_mode<synchronous>, transform_indices = @transform_4, window_bounds = array<i64: 32, 96>}, {pipeline_mode = #tpu.pipeline_mode<synchronous>, transform_indices = @transform_5, window_bounds = array<i64: 1, 96>}, {pipeline_mode = #tpu.pipeline_mode<synchronous>, transform_indices = @transform_6, window_bounds = array<i64: 32, 32>}, {pipeline_mode = #tpu.pipeline_mode<synchronous>, transform_indices = @transform_7, window_bounds = array<i64: 1, 32>}, {pipeline_mode = #tpu.pipeline_mode<synchronous>, transform_indices = @transform_8, window_bounds = array<i64: 2, 32>}, {pipeline_mode = #tpu.pipeline_mode<synchronous>, transform_indices = @transform_9, window_bounds = array<i64: 32, 32>}, {pipeline_mode = #tpu.pipeline_mode<synchronous>, transform_indices = @transform_10, window_bounds = array<i64: 1, 32>}, {pipeline_mode = #tpu.pipeline_mode<synchronous>, transform_indices = @transform_11, window_bounds = array<i64: 32, 64>}, {pipeline_mode = #tpu.pipeline_mode<synchronous>, transform_indices = @transform_12, window_bounds = array<i64: 1, 64>}, {pipeline_mode = #tpu.pipeline_mode<synchronous>, transform_indices = @transform_13, window_bounds = array<i64: 32, 32>}, {pipeline_mode = #tpu.pipeline_mode<synchronous>, transform_indices = @transform_14, window_bounds = array<i64: 1, 32>}, {pipeline_mode = #tpu.pipeline_mode<synchronous>, transform_indices = @transform_15, window_bounds = array<i64: 2, 32>}, {transform_indices = @transform_16, window_bounds = array<i64: 32, 64>}, {transform_indices = @transform_17, window_bounds = array<i64: 1, 64>}, {transform_indices = @transform_18, window_bounds = array<i64: 64, 32>}, {pipeline_mode = #tpu.pipeline_mode<synchronous>, transform_indices = @transform_19, window_bounds = array<i64: 1, 32>}, {pipeline_mode = #tpu.pipeline_mode<synchronous>, transform_indices = @transform_20, window_bounds = array<i64: 2, 32>}, {transform_indices = @transform_21, window_bounds = array<i64: 2, 8, 32>}]} {
    %c0_i32 = arith.constant 0 : i32
    %0 = arith.cmpi eq, %arg1, %c0_i32 : i32
    %1 = arith.extui %0 : i1 to i32
    %c0_i32_0 = arith.constant 0 : i32
    %2 = arith.cmpi ne, %1, %c0_i32_0 : i32
    scf.if %2 {
      %c0_19 = arith.constant 0 : index
      %c0_20 = arith.constant 0 : index
      %c0_21 = arith.constant 0 : index
      %31 = vector.load %arg2[%c0_19, %c0_20, %c0_21] : memref<2x8x32xbf16, #tpu.memory_space<vmem>>, vector<2x8x32xbf16>
      %32 = vector.shape_cast %31 : vector<2x8x32xbf16> to vector<16x32xbf16>
      %33 = arith.extf %32 : vector<16x32xbf16> to vector<16x32xf32>
      %c0_22 = arith.constant 0 : index
      %c0_23 = arith.constant 0 : index
      %c0_24 = arith.constant 0 : index
      %34 = vector.load %arg3[%c0_22, %c0_23, %c0_24] : memref<2x8x32xbf16, #tpu.memory_space<vmem>>, vector<2x8x32xbf16>
      %35 = vector.shape_cast %34 : vector<2x8x32xbf16> to vector<16x32xbf16>
      %36 = tpu.iota {dimensions = array<i32: 0>} : vector<8x8xi32>
      %37 = tpu.iota {dimensions = array<i32: 1>} : vector<8x8xi32>
      %38 = arith.cmpi sle, %37, %36 : vector<8x8xi32>
      %39 = vector.shape_cast %38 : vector<8x8xi1> to vector<1x8x8xi1>
      %c0_25 = arith.constant 0 : index
      %c0_26 = arith.constant 0 : index
      %c0_27 = arith.constant 0 : index
      %40 = vector.load %arg4[%c0_25, %c0_26, %c0_27] : memref<2x1x8xf32, #tpu.memory_space<vmem>>, vector<2x1x8xf32>
      %cst_28 = arith.constant 5.000000e-01 : f32
      %41 = vector.broadcast %cst_28 : f32 to vector<2x1x8xf32>
      %42 = arith.cmpf ogt, %40, %41 : vector<2x1x8xf32>
      %43 = vector.broadcast %39 : vector<1x8x8xi1> to vector<2x8x8xi1>
      %44 = vector.broadcast %42 : vector<2x1x8xi1> to vector<2x8x8xi1>
      %45 = arith.andi %43, %44 : vector<2x8x8xi1>
      %c0_29 = arith.constant 0 : index
      %c0_30 = arith.constant 0 : index
      %c0_31 = arith.constant 0 : index
      %46 = vector.load %arg5[%c0_29, %c0_30, %c0_31] : memref<2x1x8xf32, #tpu.memory_space<vmem>>, vector<2x1x8xf32>
      %cst_32 = arith.constant 5.000000e-01 : f32
      %47 = vector.broadcast %cst_32 : f32 to vector<2x1x8xf32>
      %48 = arith.cmpf ogt, %46, %47 : vector<2x1x8xf32>
      %c0_33 = arith.constant 0 : index
      %c0_34 = arith.constant 0 : index
      %49 = vector.load %arg6[%c0_33, %c0_34] : memref<32x96xbf16, #tpu.memory_space<vmem>>, vector<32x96xbf16>
      %cst_35 = arith.constant dense<0.000000e+00> : vector<16x96xf32>
      %50 = tpu.matmul %32, %49, %cst_35 {dimension_numbers = #tpu.dot_dimension_numbers<[1], [0], [0], [1], [0, 0, 1, 1], [], []>} : vector<16x32xbf16>, vector<32x96xbf16>, vector<16x96xf32> -> vector<16x96xf32>
      %c0_36 = arith.constant 0 : index
      %c0_37 = arith.constant 0 : index
      %51 = vector.load %arg7[%c0_36, %c0_37] : memref<1x96xf32, #tpu.memory_space<vmem>>, vector<1x96xf32>
      %52 = vector.broadcast %51 : vector<1x96xf32> to vector<16x96xf32>
      %53 = arith.addf %50, %52 : vector<16x96xf32>
      %54 = vector.extract_strided_slice %53 {offsets = [0, 0], sizes = [16, 32], strides = [1, 1]} : vector<16x96xf32> to vector<16x32xf32>
      %cst_38 = arith.constant 0.353553385 : f32
      %55 = vector.broadcast %cst_38 : f32 to vector<16x32xf32>
      %56 = arith.mulf %54, %55 : vector<16x32xf32>
      %57 = arith.truncf %56 : vector<16x32xf32> to vector<16x32xbf16>
      %58 = vector.extract_strided_slice %53 {offsets = [0, 32], sizes = [16, 32], strides = [1, 1]} : vector<16x96xf32> to vector<16x32xf32>
      %59 = arith.truncf %58 : vector<16x32xf32> to vector<16x32xbf16>
      %60 = vector.extract_strided_slice %53 {offsets = [0, 64], sizes = [16, 32], strides = [1, 1]} : vector<16x96xf32> to vector<16x32xf32>
      %61 = arith.truncf %60 : vector<16x32xf32> to vector<16x32xbf16>
      %62 = vector.shape_cast %57 : vector<16x32xbf16> to vector<2x8x4x8xbf16>
      %63 = tpu.transpose %62, [0, 2, 1, 3] : vector<2x8x4x8xbf16> -> vector<2x4x8x8xbf16>
      %64 = vector.shape_cast %63 : vector<2x4x8x8xbf16> to vector<8x8x8xbf16>
      %65 = vector.shape_cast %59 : vector<16x32xbf16> to vector<2x8x4x8xbf16>
      %66 = tpu.transpose %65, [0, 2, 1, 3] : vector<2x8x4x8xbf16> -> vector<2x4x8x8xbf16>
      %67 = vector.shape_cast %66 : vector<2x4x8x8xbf16> to vector<8x8x8xbf16>
      %68 = vector.shape_cast %61 : vector<16x32xbf16> to vector<2x8x4x8xbf16>
      %69 = tpu.transpose %68, [0, 2, 1, 3] : vector<2x8x4x8xbf16> -> vector<2x4x8x8xbf16>
      %70 = vector.shape_cast %69 : vector<2x4x8x8xbf16> to vector<8x8x8xbf16>
      "tpu.trace_start"() <{level = 10 : i32, message = "bqd,bkd->bqk"}> : () -> ()
      %cst_39 = arith.constant dense<0.000000e+00> : vector<8x8x8xf32>
      %71 = tpu.matmul %64, %67, %cst_39 {dimension_numbers = #tpu.dot_dimension_numbers<[2], [2], [1], [1], [0, 0, 0, 1, 1, 1], [0], [0]>} : vector<8x8x8xbf16>, vector<8x8x8xbf16>, vector<8x8x8xf32> -> vector<8x8x8xf32>
      "tpu.trace_stop"() : () -> ()
      %72 = vector.shape_cast %71 : vector<8x8x8xf32> to vector<2x4x8x8xf32>
      %73 = vector.shape_cast %45 : vector<2x8x8xi1> to vector<2x1x8x8xi1>
      %cst_40 = arith.constant -2.38197633E+38 : f32
      %74 = vector.shape_cast %73 : vector<2x1x8x8xi1> to vector<2x1x8x8xi1>
      %75 = vector.broadcast %74 : vector<2x1x8x8xi1> to vector<2x4x8x8xi1>
      %76 = vector.broadcast %cst_40 : f32 to vector<2x4x8x8xf32>
      %77 = arith.select %75, %72, %76 : vector<2x4x8x8xi1>, vector<2x4x8x8xf32>
      %78 = vector.shape_cast %77 : vector<2x4x8x8xf32> to vector<8x8x8xf32>
      %cst_41 = arith.constant dense<0xFF800000> : vector<8x8xf32>
      %79 = vector.multi_reduction <maximumf>, %78, %cst_41 [2] : vector<8x8x8xf32> to vector<8x8xf32>
      %80 = vector.shape_cast %79 : vector<8x8xf32> to vector<8x8x1xf32>
      %81 = vector.broadcast %80 : vector<8x8x1xf32> to vector<8x8x8xf32>
      %82 = arith.subf %78, %81 : vector<8x8x8xf32>
      %83 = math.exp %82 : vector<8x8x8xf32>
      %cst_42 = arith.constant dense<0.000000e+00> : vector<8x8xf32>
      %84 = vector.multi_reduction <add>, %83, %cst_42 [2] : vector<8x8x8xf32> to vector<8x8xf32>
      %85 = vector.shape_cast %84 : vector<8x8xf32> to vector<8x8x1xf32>
      %86 = vector.broadcast %85 : vector<8x8x1xf32> to vector<8x8x8xf32>
      %87 = arith.divf %83, %86 : vector<8x8x8xf32>
      %88 = arith.truncf %87 : vector<8x8x8xf32> to vector<8x8x8xbf16>
      "tpu.trace_start"() <{level = 10 : i32, message = "bqk,bkd->bqd"}> : () -> ()
      %cst_43 = arith.constant dense<0.000000e+00> : vector<8x8x8xf32>
      %89 = tpu.matmul %88, %70, %cst_43 {dimension_numbers = #tpu.dot_dimension_numbers<[2], [1], [1], [2], [0, 0, 0, 1, 1, 2], [0], [0]>} : vector<8x8x8xbf16>, vector<8x8x8xbf16>, vector<8x8x8xf32> -> vector<8x8x8xf32>
      "tpu.trace_stop"() : () -> ()
      %90 = vector.shape_cast %89 : vector<8x8x8xf32> to vector<2x4x8x8xf32>
      %91 = tpu.transpose %90, [0, 2, 1, 3] : vector<2x4x8x8xf32> -> vector<2x8x4x8xf32>
      %92 = vector.shape_cast %91 : vector<2x8x4x8xf32> to vector<16x32xf32>
      %93 = arith.truncf %92 : vector<16x32xf32> to vector<16x32xbf16>
      %c0_44 = arith.constant 0 : index
      %c0_45 = arith.constant 0 : index
      %94 = vector.load %arg8[%c0_44, %c0_45] : memref<32x32xbf16, #tpu.memory_space<vmem>>, vector<32x32xbf16>
      %cst_46 = arith.constant dense<0.000000e+00> : vector<16x32xf32>
      %95 = tpu.matmul %93, %94, %cst_46 {dimension_numbers = #tpu.dot_dimension_numbers<[1], [0], [0], [1], [0, 0, 1, 1], [], []>} : vector<16x32xbf16>, vector<32x32xbf16>, vector<16x32xf32> -> vector<16x32xf32>
      %c0_47 = arith.constant 0 : index
      %c0_48 = arith.constant 0 : index
      %96 = vector.load %arg9[%c0_47, %c0_48] : memref<1x32xf32, #tpu.memory_space<vmem>>, vector<1x32xf32>
      %97 = vector.broadcast %96 : vector<1x32xf32> to vector<16x32xf32>
      %98 = arith.addf %95, %97 : vector<16x32xf32>
      %99 = arith.addf %98, %33 : vector<16x32xf32>
      %c0_49 = arith.constant 0 : index
      %c0_50 = arith.constant 0 : index
      %100 = vector.load %arg10[%c0_49, %c0_50] : memref<2x32xf32, #tpu.memory_space<vmem>>, vector<2x32xf32>
      %101 = vector.extract_strided_slice %100 {offsets = [0, 0], sizes = [1, 32], strides = [1, 1]} : vector<2x32xf32> to vector<1x32xf32>
      %102 = vector.extract_strided_slice %100 {offsets = [1, 0], sizes = [1, 32], strides = [1, 1]} : vector<2x32xf32> to vector<1x32xf32>
      %cst_51 = arith.constant dense<0.000000e+00> : vector<16xf32>
      %103 = vector.multi_reduction <add>, %99, %cst_51 [1] : vector<16x32xf32> to vector<16xf32>
      %104 = vector.shape_cast %103 : vector<16xf32> to vector<16x1xf32>
      %cst_52 = arith.constant 3.200000e+01 : f32
      %105 = vector.broadcast %cst_52 : f32 to vector<16x1xf32>
      %106 = arith.divf %104, %105 : vector<16x1xf32>
      %107 = vector.broadcast %106 : vector<16x1xf32> to vector<16x32xf32>
      %108 = arith.subf %99, %107 : vector<16x32xf32>
      %109 = arith.mulf %108, %108 : vector<16x32xf32>
      %cst_53 = arith.constant dense<0.000000e+00> : vector<16xf32>
      %110 = vector.multi_reduction <add>, %109, %cst_53 [1] : vector<16x32xf32> to vector<16xf32>
      %111 = vector.shape_cast %110 : vector<16xf32> to vector<16x1xf32>
      %cst_54 = arith.constant 3.200000e+01 : f32
      %112 = vector.broadcast %cst_54 : f32 to vector<16x1xf32>
      %113 = arith.divf %111, %112 : vector<16x1xf32>
      %114 = vector.broadcast %106 : vector<16x1xf32> to vector<16x32xf32>
      %115 = arith.subf %99, %114 : vector<16x32xf32>
      %cst_55 = arith.constant 9.99999974E-6 : f32
      %116 = vector.broadcast %cst_55 : f32 to vector<16x1xf32>
      %117 = arith.addf %113, %116 : vector<16x1xf32>
      %118 = math.rsqrt %117 : vector<16x1xf32>
      %119 = vector.broadcast %118 : vector<16x1xf32> to vector<16x32xf32>
      %120 = arith.mulf %115, %119 : vector<16x32xf32>
      %121 = vector.broadcast %101 : vector<1x32xf32> to vector<16x32xf32>
      %122 = arith.mulf %120, %121 : vector<16x32xf32>
      %123 = vector.broadcast %102 : vector<1x32xf32> to vector<16x32xf32>
      %124 = arith.addf %122, %123 : vector<16x32xf32>
      %125 = arith.truncf %124 : vector<16x32xf32> to vector<16x32xbf16>
      %c0_56 = arith.constant 0 : index
      %c0_57 = arith.constant 0 : index
      %126 = vector.load %arg11[%c0_56, %c0_57] : memref<32x32xbf16, #tpu.memory_space<vmem>>, vector<32x32xbf16>
      %cst_58 = arith.constant dense<0.000000e+00> : vector<16x32xf32>
      %127 = tpu.matmul %125, %126, %cst_58 {dimension_numbers = #tpu.dot_dimension_numbers<[1], [0], [0], [1], [0, 0, 1, 1], [], []>} : vector<16x32xbf16>, vector<32x32xbf16>, vector<16x32xf32> -> vector<16x32xf32>
      %c0_59 = arith.constant 0 : index
      %c0_60 = arith.constant 0 : index
      %128 = vector.load %arg12[%c0_59, %c0_60] : memref<1x32xf32, #tpu.memory_space<vmem>>, vector<1x32xf32>
      %129 = vector.broadcast %128 : vector<1x32xf32> to vector<16x32xf32>
      %130 = arith.addf %127, %129 : vector<16x32xf32>
      %cst_61 = arith.constant 0.353553385 : f32
      %131 = vector.broadcast %cst_61 : f32 to vector<16x32xf32>
      %132 = arith.mulf %130, %131 : vector<16x32xf32>
      %133 = arith.truncf %132 : vector<16x32xf32> to vector<16x32xbf16>
      %c0_62 = arith.constant 0 : index
      %c0_63 = arith.constant 0 : index
      %134 = vector.load %arg13[%c0_62, %c0_63] : memref<32x64xbf16, #tpu.memory_space<vmem>>, vector<32x64xbf16>
      %cst_64 = arith.constant dense<0.000000e+00> : vector<16x64xf32>
      %135 = tpu.matmul %35, %134, %cst_64 {dimension_numbers = #tpu.dot_dimension_numbers<[1], [0], [0], [1], [0, 0, 1, 1], [], []>} : vector<16x32xbf16>, vector<32x64xbf16>, vector<16x64xf32> -> vector<16x64xf32>
      %c0_65 = arith.constant 0 : index
      %c0_66 = arith.constant 0 : index
      %136 = vector.load %arg14[%c0_65, %c0_66] : memref<1x64xf32, #tpu.memory_space<vmem>>, vector<1x64xf32>
      %137 = vector.broadcast %136 : vector<1x64xf32> to vector<16x64xf32>
      %138 = arith.addf %135, %137 : vector<16x64xf32>
      %139 = vector.extract_strided_slice %138 {offsets = [0, 0], sizes = [16, 32], strides = [1, 1]} : vector<16x64xf32> to vector<16x32xf32>
      %140 = arith.truncf %139 : vector<16x32xf32> to vector<16x32xbf16>
      %141 = vector.extract_strided_slice %138 {offsets = [0, 32], sizes = [16, 32], strides = [1, 1]} : vector<16x64xf32> to vector<16x32xf32>
      %142 = arith.truncf %141 : vector<16x32xf32> to vector<16x32xbf16>
      %143 = vector.shape_cast %133 : vector<16x32xbf16> to vector<2x8x4x8xbf16>
      %144 = tpu.transpose %143, [0, 2, 1, 3] : vector<2x8x4x8xbf16> -> vector<2x4x8x8xbf16>
      %145 = vector.shape_cast %144 : vector<2x4x8x8xbf16> to vector<8x8x8xbf16>
      %146 = vector.shape_cast %140 : vector<16x32xbf16> to vector<2x8x4x8xbf16>
      %147 = tpu.transpose %146, [0, 2, 1, 3] : vector<2x8x4x8xbf16> -> vector<2x4x8x8xbf16>
      %148 = vector.shape_cast %147 : vector<2x4x8x8xbf16> to vector<8x8x8xbf16>
      %149 = vector.shape_cast %142 : vector<16x32xbf16> to vector<2x8x4x8xbf16>
      %150 = tpu.transpose %149, [0, 2, 1, 3] : vector<2x8x4x8xbf16> -> vector<2x4x8x8xbf16>
      %151 = vector.shape_cast %150 : vector<2x4x8x8xbf16> to vector<8x8x8xbf16>
      "tpu.trace_start"() <{level = 10 : i32, message = "bqd,bkd->bqk"}> : () -> ()
      %cst_67 = arith.constant dense<0.000000e+00> : vector<8x8x8xf32>
      %152 = tpu.matmul %145, %148, %cst_67 {dimension_numbers = #tpu.dot_dimension_numbers<[2], [2], [1], [1], [0, 0, 0, 1, 1, 1], [0], [0]>} : vector<8x8x8xbf16>, vector<8x8x8xbf16>, vector<8x8x8xf32> -> vector<8x8x8xf32>
      "tpu.trace_stop"() : () -> ()
      %153 = vector.shape_cast %152 : vector<8x8x8xf32> to vector<2x4x8x8xf32>
      %154 = vector.shape_cast %48 : vector<2x1x8xi1> to vector<2x1x1x8xi1>
      %cst_68 = arith.constant -2.38197633E+38 : f32
      %155 = vector.shape_cast %154 : vector<2x1x1x8xi1> to vector<2x1x1x8xi1>
      %156 = vector.broadcast %155 : vector<2x1x1x8xi1> to vector<2x4x8x8xi1>
      %157 = vector.broadcast %cst_68 : f32 to vector<2x4x8x8xf32>
      %158 = arith.select %156, %153, %157 : vector<2x4x8x8xi1>, vector<2x4x8x8xf32>
      %159 = vector.shape_cast %158 : vector<2x4x8x8xf32> to vector<8x8x8xf32>
      %cst_69 = arith.constant dense<0xFF800000> : vector<8x8xf32>
      %160 = vector.multi_reduction <maximumf>, %159, %cst_69 [2] : vector<8x8x8xf32> to vector<8x8xf32>
      %161 = vector.shape_cast %160 : vector<8x8xf32> to vector<8x8x1xf32>
      %162 = vector.broadcast %161 : vector<8x8x1xf32> to vector<8x8x8xf32>
      %163 = arith.subf %159, %162 : vector<8x8x8xf32>
      %164 = math.exp %163 : vector<8x8x8xf32>
      %cst_70 = arith.constant dense<0.000000e+00> : vector<8x8xf32>
      %165 = vector.multi_reduction <add>, %164, %cst_70 [2] : vector<8x8x8xf32> to vector<8x8xf32>
      %166 = vector.shape_cast %165 : vector<8x8xf32> to vector<8x8x1xf32>
      %167 = vector.broadcast %166 : vector<8x8x1xf32> to vector<8x8x8xf32>
      %168 = arith.divf %164, %167 : vector<8x8x8xf32>
      %169 = arith.truncf %168 : vector<8x8x8xf32> to vector<8x8x8xbf16>
      "tpu.trace_start"() <{level = 10 : i32, message = "bqk,bkd->bqd"}> : () -> ()
      %cst_71 = arith.constant dense<0.000000e+00> : vector<8x8x8xf32>
      %170 = tpu.matmul %169, %151, %cst_71 {dimension_numbers = #tpu.dot_dimension_numbers<[2], [1], [1], [2], [0, 0, 0, 1, 1, 2], [0], [0]>} : vector<8x8x8xbf16>, vector<8x8x8xbf16>, vector<8x8x8xf32> -> vector<8x8x8xf32>
      "tpu.trace_stop"() : () -> ()
      %171 = vector.shape_cast %170 : vector<8x8x8xf32> to vector<2x4x8x8xf32>
      %172 = tpu.transpose %171, [0, 2, 1, 3] : vector<2x4x8x8xf32> -> vector<2x8x4x8xf32>
      %173 = vector.shape_cast %172 : vector<2x8x4x8xf32> to vector<16x32xf32>
      %174 = arith.truncf %173 : vector<16x32xf32> to vector<16x32xbf16>
      %c0_72 = arith.constant 0 : index
      %c0_73 = arith.constant 0 : index
      %175 = vector.load %arg15[%c0_72, %c0_73] : memref<32x32xbf16, #tpu.memory_space<vmem>>, vector<32x32xbf16>
      %cst_74 = arith.constant dense<0.000000e+00> : vector<16x32xf32>
      %176 = tpu.matmul %174, %175, %cst_74 {dimension_numbers = #tpu.dot_dimension_numbers<[1], [0], [0], [1], [0, 0, 1, 1], [], []>} : vector<16x32xbf16>, vector<32x32xbf16>, vector<16x32xf32> -> vector<16x32xf32>
      %c0_75 = arith.constant 0 : index
      %c0_76 = arith.constant 0 : index
      %177 = vector.load %arg16[%c0_75, %c0_76] : memref<1x32xf32, #tpu.memory_space<vmem>>, vector<1x32xf32>
      %178 = vector.broadcast %177 : vector<1x32xf32> to vector<16x32xf32>
      %179 = arith.addf %176, %178 : vector<16x32xf32>
      %180 = arith.addf %179, %124 : vector<16x32xf32>
      %c0_77 = arith.constant 0 : index
      %c0_78 = arith.constant 0 : index
      %181 = vector.load %arg17[%c0_77, %c0_78] : memref<2x32xf32, #tpu.memory_space<vmem>>, vector<2x32xf32>
      %182 = vector.extract_strided_slice %181 {offsets = [0, 0], sizes = [1, 32], strides = [1, 1]} : vector<2x32xf32> to vector<1x32xf32>
      %183 = vector.extract_strided_slice %181 {offsets = [1, 0], sizes = [1, 32], strides = [1, 1]} : vector<2x32xf32> to vector<1x32xf32>
      %cst_79 = arith.constant dense<0.000000e+00> : vector<16xf32>
      %184 = vector.multi_reduction <add>, %180, %cst_79 [1] : vector<16x32xf32> to vector<16xf32>
      %185 = vector.shape_cast %184 : vector<16xf32> to vector<16x1xf32>
      %cst_80 = arith.constant 3.200000e+01 : f32
      %186 = vector.broadcast %cst_80 : f32 to vector<16x1xf32>
      %187 = arith.divf %185, %186 : vector<16x1xf32>
      %188 = vector.broadcast %187 : vector<16x1xf32> to vector<16x32xf32>
      %189 = arith.subf %180, %188 : vector<16x32xf32>
      %190 = arith.mulf %189, %189 : vector<16x32xf32>
      %cst_81 = arith.constant dense<0.000000e+00> : vector<16xf32>
      %191 = vector.multi_reduction <add>, %190, %cst_81 [1] : vector<16x32xf32> to vector<16xf32>
      %192 = vector.shape_cast %191 : vector<16xf32> to vector<16x1xf32>
      %cst_82 = arith.constant 3.200000e+01 : f32
      %193 = vector.broadcast %cst_82 : f32 to vector<16x1xf32>
      %194 = arith.divf %192, %193 : vector<16x1xf32>
      %195 = vector.broadcast %187 : vector<16x1xf32> to vector<16x32xf32>
      %196 = arith.subf %180, %195 : vector<16x32xf32>
      %cst_83 = arith.constant 9.99999974E-6 : f32
      %197 = vector.broadcast %cst_83 : f32 to vector<16x1xf32>
      %198 = arith.addf %194, %197 : vector<16x1xf32>
      %199 = math.rsqrt %198 : vector<16x1xf32>
      %200 = vector.broadcast %199 : vector<16x1xf32> to vector<16x32xf32>
      %201 = arith.mulf %196, %200 : vector<16x32xf32>
      %202 = vector.broadcast %182 : vector<1x32xf32> to vector<16x32xf32>
      %203 = arith.mulf %201, %202 : vector<16x32xf32>
      %204 = vector.broadcast %183 : vector<1x32xf32> to vector<16x32xf32>
      %205 = arith.addf %203, %204 : vector<16x32xf32>
      %206 = arith.truncf %205 : vector<16x32xf32> to vector<16x32xbf16>
      %c0_84 = arith.constant 0 : index
      %c0_85 = arith.constant 0 : index
      %207 = vector.load %arg24[%c0_84, %c0_85] : memref<16x32xbf16, #tpu.memory_space<vmem>>, vector<16x32xbf16>
      tpu.vector_store %arg24[%c0_84, %c0_85], %206 {strides = array<i32>} : memref<16x32xbf16, #tpu.memory_space<vmem>>, vector<16x32xbf16>,
      %cst_86 = arith.constant 0.000000e+00 : f32
      %208 = vector.broadcast %cst_86 : f32 to vector<16x32xf32>
      %c0_87 = arith.constant 0 : index
      %c0_88 = arith.constant 0 : index
      %209 = vector.load %arg25[%c0_87, %c0_88] : memref<16x32xf32, #tpu.memory_space<vmem>>, vector<16x32xf32>
      tpu.vector_store %arg25[%c0_87, %c0_88], %208 {strides = array<i32>} : memref<16x32xf32, #tpu.memory_space<vmem>>, vector<16x32xf32>,
    } else {
    }
    %c0 = arith.constant 0 : index
    %c0_1 = arith.constant 0 : index
    %3 = vector.load %arg24[%c0, %c0_1] : memref<16x32xbf16, #tpu.memory_space<vmem>>, vector<16x32xbf16>
    %c0_2 = arith.constant 0 : index
    %c0_3 = arith.constant 0 : index
    %4 = vector.load %arg18[%c0_2, %c0_3] : memref<32x64xbf16, #tpu.memory_space<vmem>>, vector<32x64xbf16>
    %cst = arith.constant dense<0.000000e+00> : vector<16x64xf32>
    %5 = tpu.matmul %3, %4, %cst {dimension_numbers = #tpu.dot_dimension_numbers<[1], [0], [0], [1], [0, 0, 1, 1], [], []>} : vector<16x32xbf16>, vector<32x64xbf16>, vector<16x64xf32> -> vector<16x64xf32>
    %c0_4 = arith.constant 0 : index
    %c0_5 = arith.constant 0 : index
    %6 = vector.load %arg19[%c0_4, %c0_5] : memref<1x64xf32, #tpu.memory_space<vmem>>, vector<1x64xf32>
    %7 = vector.broadcast %6 : vector<1x64xf32> to vector<16x64xf32>
    %8 = arith.addf %5, %7 : vector<16x64xf32>
    %9 = arith.mulf %8, %8 : vector<16x64xf32>
    %10 = arith.mulf %8, %9 : vector<16x64xf32>
    %cst_6 = arith.constant 4.471500e-02 : f32
    %11 = vector.broadcast %cst_6 : f32 to vector<16x64xf32>
    %12 = arith.mulf %11, %10 : vector<16x64xf32>
    %13 = arith.addf %8, %12 : vector<16x64xf32>
    %cst_7 = arith.constant 0.797884583 : f32
    %14 = vector.broadcast %cst_7 : f32 to vector<16x64xf32>
    %15 = arith.mulf %14, %13 : vector<16x64xf32>
    %16 = math.tanh %15 : vector<16x64xf32>
    %cst_8 = arith.constant 1.000000e+00 : f32
    %17 = vector.broadcast %cst_8 : f32 to vector<16x64xf32>
    %18 = arith.addf %17, %16 : vector<16x64xf32>
    %cst_9 = arith.constant 5.000000e-01 : f32
    %19 = vector.broadcast %cst_9 : f32 to vector<16x64xf32>
    %20 = arith.mulf %19, %18 : vector<16x64xf32>
    %21 = arith.mulf %8, %20 : vector<16x64xf32>
    %22 = arith.truncf %21 : vector<16x64xf32> to vector<16x64xbf16>
    %c0_10 = arith.constant 0 : index
    %c0_11 = arith.constant 0 : index
    %23 = vector.load %arg25[%c0_10, %c0_11] : memref<16x32xf32, #tpu.memory_space<vmem>>, vector<16x32xf32>
    %c0_12 = arith.constant 0 : index
    %c0_13 = arith.constant 0 : index
    %24 = vector.load %arg20[%c0_12, %c0_13] : memref<64x32xbf16, #tpu.memory_space<vmem>>, vector<64x32xbf16>
    %cst_14 = arith.constant dense<0.000000e+00> : vector<16x32xf32>
    %25 = tpu.matmul %22, %24, %cst_14 {dimension_numbers = #tpu.dot_dimension_numbers<[1], [0], [0], [1], [0, 0, 1, 1], [], []>} : vector<16x64xbf16>, vector<64x32xbf16>, vector<16x32xf32> -> vector<16x32xf32>
    %26 = arith.addf %23, %25 : vector<16x32xf32>
    %c0_15 = arith.constant 0 : index
    %c0_16 = arith.constant 0 : index
    %27 = vector.load %arg25[%c0_15, %c0_16] : memref<16x32xf32, #tpu.memory_space<vmem>>, vector<16x32xf32>
    tpu.vector_store %arg25[%c0_15, %c0_16], %26 {strides = array<i32>} : memref<16x32xf32, #tpu.memory_space<vmem>>, vector<16x32xf32>,
    %c0_i32_17 = arith.constant 0 : i32
    %28 = arith.cmpi eq, %arg1, %c0_i32_17 : i32
    %29 = arith.extui %28 : i1 to i32
    %c0_i32_18 = arith.constant 0 : i32
    %30 = arith.cmpi ne, %29, %c0_i32_18 : i32
    scf.if %30 {
      %c0_19 = arith.constant 0 : index
      %c0_20 = arith.constant 0 : index
      %c0_21 = arith.constant 0 : index
      %31 = vector.load %arg2[%c0_19, %c0_20, %c0_21] : memref<2x8x32xbf16, #tpu.memory_space<vmem>>, vector<2x8x32xbf16>
      %32 = vector.shape_cast %31 : vector<2x8x32xbf16> to vector<16x32xbf16>
      %33 = arith.extf %32 : vector<16x32xbf16> to vector<16x32xf32>
      %c0_22 = arith.constant 0 : index
      %c0_23 = arith.constant 0 : index
      %34 = vector.load %arg25[%c0_22, %c0_23] : memref<16x32xf32, #tpu.memory_space<vmem>>, vector<16x32xf32>
      %c0_24 = arith.constant 0 : index
      %c0_25 = arith.constant 0 : index
      %35 = vector.load %arg21[%c0_24, %c0_25] : memref<1x32xf32, #tpu.memory_space<vmem>>, vector<1x32xf32>
      %36 = vector.broadcast %35 : vector<1x32xf32> to vector<16x32xf32>
      %37 = arith.addf %34, %36 : vector<16x32xf32>
      %38 = arith.addf %37, %33 : vector<16x32xf32>
      %c0_26 = arith.constant 0 : index
      %c0_27 = arith.constant 0 : index
      %39 = vector.load %arg22[%c0_26, %c0_27] : memref<2x32xf32, #tpu.memory_space<vmem>>, vector<2x32xf32>
      %40 = vector.extract_strided_slice %39 {offsets = [0, 0], sizes = [1, 32], strides = [1, 1]} : vector<2x32xf32> to vector<1x32xf32>
      %41 = vector.extract_strided_slice %39 {offsets = [1, 0], sizes = [1, 32], strides = [1, 1]} : vector<2x32xf32> to vector<1x32xf32>
      %cst_28 = arith.constant dense<0.000000e+00> : vector<16xf32>
      %42 = vector.multi_reduction <add>, %38, %cst_28 [1] : vector<16x32xf32> to vector<16xf32>
      %43 = vector.shape_cast %42 : vector<16xf32> to vector<16x1xf32>
      %cst_29 = arith.constant 3.200000e+01 : f32
      %44 = vector.broadcast %cst_29 : f32 to vector<16x1xf32>
      %45 = arith.divf %43, %44 : vector<16x1xf32>
      %46 = vector.broadcast %45 : vector<16x1xf32> to vector<16x32xf32>
      %47 = arith.subf %38, %46 : vector<16x32xf32>
      %48 = arith.mulf %47, %47 : vector<16x32xf32>
      %cst_30 = arith.constant dense<0.000000e+00> : vector<16xf32>
      %49 = vector.multi_reduction <add>, %48, %cst_30 [1] : vector<16x32xf32> to vector<16xf32>
      %50 = vector.shape_cast %49 : vector<16xf32> to vector<16x1xf32>
      %cst_31 = arith.constant 3.200000e+01 : f32
      %51 = vector.broadcast %cst_31 : f32 to vector<16x1xf32>
      %52 = arith.divf %50, %51 : vector<16x1xf32>
      %53 = vector.broadcast %45 : vector<16x1xf32> to vector<16x32xf32>
      %54 = arith.subf %38, %53 : vector<16x32xf32>
      %cst_32 = arith.constant 9.99999974E-6 : f32
      %55 = vector.broadcast %cst_32 : f32 to vector<16x1xf32>
      %56 = arith.addf %52, %55 : vector<16x1xf32>
      %57 = math.rsqrt %56 : vector<16x1xf32>
      %58 = vector.broadcast %57 : vector<16x1xf32> to vector<16x32xf32>
      %59 = arith.mulf %54, %58 : vector<16x32xf32>
      %60 = vector.broadcast %40 : vector<1x32xf32> to vector<16x32xf32>
      %61 = arith.mulf %59, %60 : vector<16x32xf32>
      %62 = vector.broadcast %41 : vector<1x32xf32> to vector<16x32xf32>
      %63 = arith.addf %61, %62 : vector<16x32xf32>
      %64 = vector.shape_cast %63 : vector<16x32xf32> to vector<2x8x32xf32>
      %65 = arith.truncf %64 : vector<2x8x32xf32> to vector<2x8x32xbf16>
      %c0_33 = arith.constant 0 : index
      %c0_34 = arith.constant 0 : index
      %c0_35 = arith.constant 0 : index
      %66 = vector.load %arg23[%c0_33, %c0_34, %c0_35] : memref<2x8x32xbf16, #tpu.memory_space<vmem>>, vector<2x8x32xbf16>
      tpu.vector_store %arg23[%c0_33, %c0_34, %c0_35], %65 {strides = array<i32>} : memref<2x8x32xbf16, #tpu.memory_space<vmem>>, vector<2x8x32xbf16>,
    } else {
    }
    return
  }
  func.func @transform_0(%arg0: i32, %arg1: i32) -> (i32, i32, i32) {
    %c0_i32 = arith.constant 0 : i32
    %c0_i32_0 = arith.constant 0 : i32
    %c0_i32_1 = arith.constant 0 : i32
    return %arg0, %c0_i32, %c0_i32_0 : i32, i32, i32
  }
  func.func @transform_1(%arg0: i32, %arg1: i32) -> (i32, i32, i32) {
    %c0_i32 = arith.constant 0 : i32
    %c0_i32_0 = arith.constant 0 : i32
    %c0_i32_1 = arith.constant 0 : i32
    return %arg0, %c0_i32, %c0_i32_0 : i32, i32, i32
  }
  func.func @transform_2(%arg0: i32, %arg1: i32) -> (i32, i32, i32) {
    %c0_i32 = arith.constant 0 : i32
    %c0_i32_0 = arith.constant 0 : i32
    %c0_i32_1 = arith.constant 0 : i32
    return %arg0, %c0_i32, %c0_i32_0 : i32, i32, i32
  }
  func.func @transform_3(%arg0: i32, %arg1: i32) -> (i32, i32, i32) {
    %c0_i32 = arith.constant 0 : i32
    %c0_i32_0 = arith.constant 0 : i32
    %c0_i32_1 = arith.constant 0 : i32
    return %arg0, %c0_i32, %c0_i32_0 : i32, i32, i32
  }
  func.func @transform_4(%arg0: i32, %arg1: i32) -> (i32, i32) {
    %c0_i32 = arith.constant 0 : i32
    %c0_i32_0 = arith.constant 0 : i32
    %c0_i32_1 = arith.constant 0 : i32
    return %c0_i32, %c0_i32_0 : i32, i32
  }
  func.func @transform_5(%arg0: i32, %arg1: i32) -> (i32, i32) {
    %c0_i32 = arith.constant 0 : i32
    %c0_i32_0 = arith.constant 0 : i32
    %c0_i32_1 = arith.constant 0 : i32
    return %c0_i32, %c0_i32_0 : i32, i32
  }
  func.func @transform_6(%arg0: i32, %arg1: i32) -> (i32, i32) {
    %c0_i32 = arith.constant 0 : i32
    %c0_i32_0 = arith.constant 0 : i32
    %c0_i32_1 = arith.constant 0 : i32
    return %c0_i32, %c0_i32_0 : i32, i32
  }
  func.func @transform_7(%arg0: i32, %arg1: i32) -> (i32, i32) {
    %c0_i32 = arith.constant 0 : i32
    %c0_i32_0 = arith.constant 0 : i32
    %c0_i32_1 = arith.constant 0 : i32
    return %c0_i32, %c0_i32_0 : i32, i32
  }
  func.func @transform_8(%arg0: i32, %arg1: i32) -> (i32, i32) {
    %c0_i32 = arith.constant 0 : i32
    %c0_i32_0 = arith.constant 0 : i32
    %c0_i32_1 = arith.constant 0 : i32
    return %c0_i32, %c0_i32_0 : i32, i32
  }
  func.func @transform_9(%arg0: i32, %arg1: i32) -> (i32, i32) {
    %c0_i32 = arith.constant 0 : i32
    %c0_i32_0 = arith.constant 0 : i32
    %c0_i32_1 = arith.constant 0 : i32
    return %c0_i32, %c0_i32_0 : i32, i32
  }
  func.func @transform_10(%arg0: i32, %arg1: i32) -> (i32, i32) {
    %c0_i32 = arith.constant 0 : i32
    %c0_i32_0 = arith.constant 0 : i32
    %c0_i32_1 = arith.constant 0 : i32
    return %c0_i32, %c0_i32_0 : i32, i32
  }
  func.func @transform_11(%arg0: i32, %arg1: i32) -> (i32, i32) {
    %c0_i32 = arith.constant 0 : i32
    %c0_i32_0 = arith.constant 0 : i32
    %c0_i32_1 = arith.constant 0 : i32
    return %c0_i32, %c0_i32_0 : i32, i32
  }
  func.func @transform_12(%arg0: i32, %arg1: i32) -> (i32, i32) {
    %c0_i32 = arith.constant 0 : i32
    %c0_i32_0 = arith.constant 0 : i32
    %c0_i32_1 = arith.constant 0 : i32
    return %c0_i32, %c0_i32_0 : i32, i32
  }
  func.func @transform_13(%arg0: i32, %arg1: i32) -> (i32, i32) {
    %c0_i32 = arith.constant 0 : i32
    %c0_i32_0 = arith.constant 0 : i32
    %c0_i32_1 = arith.constant 0 : i32
    return %c0_i32, %c0_i32_0 : i32, i32
  }
  func.func @transform_14(%arg0: i32, %arg1: i32) -> (i32, i32) {
    %c0_i32 = arith.constant 0 : i32
    %c0_i32_0 = arith.constant 0 : i32
    %c0_i32_1 = arith.constant 0 : i32
    return %c0_i32, %c0_i32_0 : i32, i32
  }
  func.func @transform_15(%arg0: i32, %arg1: i32) -> (i32, i32) {
    %c0_i32 = arith.constant 0 : i32
    %c0_i32_0 = arith.constant 0 : i32
    %c0_i32_1 = arith.constant 0 : i32
    return %c0_i32, %c0_i32_0 : i32, i32
  }
  func.func @transform_16(%arg0: i32, %arg1: i32) -> (i32, i32) {
    %c0_i32 = arith.constant 0 : i32
    %c0_i32_0 = arith.constant 0 : i32
    return %c0_i32, %arg1 : i32, i32
  }
  func.func @transform_17(%arg0: i32, %arg1: i32) -> (i32, i32) {
    %c0_i32 = arith.constant 0 : i32
    %c0_i32_0 = arith.constant 0 : i32
    return %c0_i32, %arg1 : i32, i32
  }
  func.func @transform_18(%arg0: i32, %arg1: i32) -> (i32, i32) {
    %c0_i32 = arith.constant 0 : i32
    %c0_i32_0 = arith.constant 0 : i32
    return %arg1, %c0_i32 : i32, i32
  }
  func.func @transform_19(%arg0: i32, %arg1: i32) -> (i32, i32) {
    %c0_i32 = arith.constant 0 : i32
    %c0_i32_0 = arith.constant 0 : i32
    %c0_i32_1 = arith.constant 0 : i32
    return %c0_i32, %c0_i32_0 : i32, i32
  }
  func.func @transform_20(%arg0: i32, %arg1: i32) -> (i32, i32) {
    %c0_i32 = arith.constant 0 : i32
    %c0_i32_0 = arith.constant 0 : i32
    %c0_i32_1 = arith.constant 0 : i32
    return %c0_i32, %c0_i32_0 : i32, i32
  }
  func.func @transform_21(%arg0: i32, %arg1: i32) -> (i32, i32, i32) {
    %c0_i32 = arith.constant 0 : i32
    %c0_i32_0 = arith.constant 0 : i32
    %c0_i32_1 = arith.constant 0 : i32
    return %arg0, %c0_i32, %c0_i32_0 : i32, i32, i32
  }
}

</mosaic_0001>

<llo_original>
// kernel: tpu_custom_call.1
$region0: #{tpu_custom_call.1}
  #allocation0 [shape = 'u32[]', space=smem, size = 0x4, offset = 0x4, fixed_abs, tag = 'smem constant byte address 0x4 - core index']
  #allocation1 [shape = 'u32[72,128]{1,0:T(1,128)}', space=vmem, size = 0x9000, scoped, tag = 'internal scratch']
  #allocation2 [shape = 'bf16[16,32]{1,0:T(8,128)(2,1)}', space=vmem, size = 0x1000, scoped, tag = 'scratch operand']
  #allocation3 [shape = 'f32[16,32]{1,0:T(8,128)}', space=vmem, size = 0x2000, scoped, tag = 'scratch operand']
  %s0 = inlined_call_operand.hbm [shape: bf16[2,8,32], index: 0, kind: input, shape index: {}]
  %s1 = inlined_call_operand.hbm [shape: bf16[2,8,32], index: 1, kind: input, shape index: {}]
  %s2 = inlined_call_operand.hbm [shape: f32[2,1,8], index: 2, kind: input, shape index: {}]
  %s3 = inlined_call_operand.hbm [shape: f32[2,1,8], index: 3, kind: input, shape index: {}]
  %s4 = inlined_call_operand.vmem [shape: bf16[32,96], index: 4, kind: input, shape index: {}]
  %s5 = inlined_call_operand.hbm [shape: f32[1,96], index: 5, kind: input, shape index: {}]
  %s6 = inlined_call_operand.vmem [shape: bf16[32,32], index: 6, kind: input, shape index: {}]
  %s7 = inlined_call_operand.hbm [shape: f32[1,32], index: 7, kind: input, shape index: {}]
  %s8 = inlined_call_operand.hbm [shape: f32[2,32], index: 8, kind: input, shape index: {}]
  %s9 = inlined_call_operand.vmem [shape: bf16[32,32], index: 9, kind: input, shape index: {}]
  %s10 = inlined_call_operand.hbm [shape: f32[1,32], index: 10, kind: input, shape index: {}]
  %s11 = inlined_call_operand.hbm [shape: bf16[32,64], index: 11, kind: input, shape index: {}]
  %s12 = inlined_call_operand.hbm [shape: f32[1,64], index: 12, kind: input, shape index: {}]
  %s13 = inlined_call_operand.hbm [shape: bf16[32,32], index: 13, kind: input, shape index: {}]
  %s14 = inlined_call_operand.hbm [shape: f32[1,32], index: 14, kind: input, shape index: {}]
  %s15 = inlined_call_operand.hbm [shape: f32[2,32], index: 15, kind: input, shape index: {}]
  %s16 = inlined_call_operand.hbm [shape: bf16[32,64], index: 16, kind: input, shape index: {}]
  %s17 = inlined_call_operand.hbm [shape: f32[1,64], index: 17, kind: input, shape index: {}]
  %s18 = inlined_call_operand.vmem [shape: bf16[64,32], index: 18, kind: input, shape index: {}]
  %s19 = inlined_call_operand.hbm [shape: f32[1,32], index: 19, kind: input, shape index: {}]
  %s20 = inlined_call_operand.vmem [shape: f32[2,32], index: 20, kind: input, shape index: {}]
  %s21 = inlined_call_operand.hbm [shape: bf16[2,8,32], index: 21, kind: output, shape index: {}]
  %s22 = sld [smem:[#allocation0]]
  $region166: #{tpu_custom_call.1} parent=0
    _
  %s24 = ssub.s32 1, %s22
  %s25 = scalar_select 0, %s24, %s22
  $region1: #{tpu_custom_call.1} parent=0
    #allocation4 [shape = 'u8[4096]{0}', space=vmem, size = 0x1000, scoped, tag = 'input window, operand 0, single buffered']
    #allocation5 [shape = 's32[1]{0}', space=sflag, size = 0x4, scoped, tag = 'scoped memory for tpu_custom_call.1']
    #allocation6 [shape = 's32[1]{0}', space=sflag, size = 0x4, scoped, tag = 'scoped memory for tpu_custom_call.1']
    #allocation7 [shape = 'u8[4096]{0}', space=vmem, size = 0x1000, scoped, tag = 'input window, operand 1, single buffered']
    #allocation8 [shape = 's32[1]{0}', space=sflag, size = 0x4, scoped, tag = 'scoped memory for tpu_custom_call.1']
    #allocation9 [shape = 'u8[1024]{0}', space=vmem, size = 0x400, scoped, tag = 'input window, operand 2, single buffered']
    #allocation10 [shape = 'u8[1024]{0}', space=vmem, size = 0x400, scoped, tag = 'input window, operand 3, single buffered']
    #allocation11 [shape = 's32[1]{0}', space=sflag, size = 0x4, scoped, tag = 'scoped memory for tpu_custom_call.1']
    #allocation12 [shape = 'u8[512]{0}', space=vmem, size = 0x400, scoped, tag = 'input window, operand 5, single buffered']
    #allocation13 [shape = 'u8[512]{0}', space=vmem, size = 0x400, scoped, tag = 'input window, operand 7, single buffered']
    #allocation14 [shape = 's32[1]{0}', space=sflag, size = 0x4, scoped, tag = 'scoped memory for tpu_custom_call.1']
    #allocation15 [shape = 'u8[1024]{0}', space=vmem, size = 0x400, scoped, tag = 'input window, operand 8, single buffered']
    #allocation16 [shape = 'u8[512]{0}', space=vmem, size = 0x400, scoped, tag = 'input window, operand 10, single buffered']
    #allocation17 [shape = 's32[1]{0}', space=sflag, size = 0x4, scoped, tag = 'scoped memory for tpu_custom_call.1']
    #allocation18 [shape = 'u8[8192]{0}', space=vmem, size = 0x2000, scoped, tag = 'input window, operand 11, single buffered']
    #allocation19 [shape = 'u8[512]{0}', space=vmem, size = 0x400, scoped, tag = 'input window, operand 12, single buffered']
    #allocation20 [shape = 's32[1]{0}', space=sflag, size = 0x4, scoped, tag = 'scoped memory for tpu_custom_call.1']
    #allocation21 [shape = 'u8[8192]{0}', space=vmem, size = 0x2000, scoped, tag = 'input window, operand 13, single buffered']
    #allocation22 [shape = 'u8[512]{0}', space=vmem, size = 0x400, scoped, tag = 'input window, operand 14, single buffered']
    #allocation23 [shape = 's32[1]{0}', space=sflag, size = 0x4, scoped, tag = 'scoped memory for tpu_custom_call.1']
    #allocation24 [shape = 'u8[1024]{0}', space=vmem, size = 0x400, scoped, tag = 'input window, operand 15, single buffered']
    #allocation25 [shape = 'u8[8192]{0}', space=vmem, size = 0x2000, scoped, tag = 'input window, operand 16, single buffered']
    #allocation26 [shape = 's32[1]{0}', space=sflag, size = 0x4, scoped, tag = 'scoped memory for tpu_custom_call.1']
    #allocation27 [shape = 'u8[512]{0}', space=vmem, size = 0x400, scoped, tag = 'input window, operand 17, single buffered']
    #allocation28 [shape = 'u8[512]{0}', space=vmem, size = 0x400, scoped, tag = 'input window, operand 19, single buffered']
    #allocation29 [shape = 's32[1]{0}', space=sflag, size = 0x4, scoped, tag = 'scoped memory for tpu_custom_call.1']
    #allocation30 [shape = 'u8[4096]{0}', space=vmem, size = 0x1000, scoped, tag = 'output window, operand 0, single buffered']
    %26 = vsyncpa [#allocation5], 0
    %27 = vsyncpa [#allocation8], 0
    %28 = vsyncpa [#allocation11], 0
    %29 = vsyncpa [#allocation14], 0
    %30 = vsyncpa [#allocation17], 0
    %31 = vsyncpa [#allocation20], 0
    %32 = vsyncpa [#allocation23], 0
    %33 = vsyncpa [#allocation26], 0
    %34 = vsyncpa [#allocation29], 0
    %35 = vsyncpa [#allocation6], 0
    // Predicated region
    $region2: #{tpu_custom_call.1} parent=1 // pred_check
      _
    $region3: #{tpu_custom_call.1} parent=1 // pred_check_branch
      %37 = sbr.rel (0) target = $region5
    $region4: #{tpu_custom_call.1} parent=1 // pred_region
      %39 = vsyncadd [#allocation5], 0
      %s40 = sshll.u32 %s0, 4
      %s41 = int_to_ptr.hbm [resolvable:$true] %s40
      %s42 = sshll.u32 [#allocation4], 4
      %s43 = int_to_ptr.vmem [resolvable:$true] %s42
      %48 = dma.hbm_to_vmem [thread:$0]  %s41, 128, %s43, [#allocation5], 64, 64, 4
    $region5: #{tpu_custom_call.1} parent=1 // pred_fallthru
      _
    // Predicated region
    $region6: #{tpu_custom_call.1} parent=1 // pred_check
      _
    $region7: #{tpu_custom_call.1} parent=1 // pred_check_branch
      %50 = sbr.rel (0) target = $region9
    $region8: #{tpu_custom_call.1} parent=1 // pred_region
      %52 = vsyncadd [#allocation8], 0
      %s53 = sshll.u32 %s1, 4
      %s54 = int_to_ptr.hbm [resolvable:$true] %s53
      %s55 = sshll.u32 [#allocation7], 4
      %s56 = int_to_ptr.vmem [resolvable:$true] %s55
      %61 = dma.hbm_to_vmem [thread:$0]  %s54, 128, %s56, [#allocation8], 64, 64, 4
    $region9: #{tpu_custom_call.1} parent=1 // pred_fallthru
      _
    // Predicated region
    $region10: #{tpu_custom_call.1} parent=1 // pred_check
      _
    $region11: #{tpu_custom_call.1} parent=1 // pred_check_branch
      %63 = sbr.rel (0) target = $region13
    $region12: #{tpu_custom_call.1} parent=1 // pred_region
      %65 = vsyncadd [#allocation8], 0
      %s66 = sshll.u32 %s2, 4
      %s67 = int_to_ptr.hbm [resolvable:$true] %s66
      %s68 = sshll.u32 [#allocation9], 4
      %s69 = int_to_ptr.vmem [resolvable:$true] %s68
      %74 = dma.hbm_to_vmem [thread:$0]  %s67, 32, %s69, [#allocation8], 16, 16, 1
    $region13: #{tpu_custom_call.1} parent=1 // pred_fallthru
      _
    // Predicated region
    $region14: #{tpu_custom_call.1} parent=1 // pred_check
      _
    $region15: #{tpu_custom_call.1} parent=1 // pred_check_branch
      %76 = sbr.rel (0) target = $region17
    $region16: #{tpu_custom_call.1} parent=1 // pred_region
      %78 = vsyncadd [#allocation11], 0
      %s79 = sshll.u32 %s3, 4
      %s80 = int_to_ptr.hbm [resolvable:$true] %s79
      %s81 = sshll.u32 [#allocation10], 4
      %s82 = int_to_ptr.vmem [resolvable:$true] %s81
      %87 = dma.hbm_to_vmem [thread:$0]  %s80, 32, %s82, [#allocation11], 16, 16, 1
    $region17: #{tpu_custom_call.1} parent=1 // pred_fallthru
      _
    // Predicated region
    $region18: #{tpu_custom_call.1} parent=1 // pred_check
      _
    $region19: #{tpu_custom_call.1} parent=1 // pred_check_branch
      %89 = sbr.rel (0) target = $region21
    $region20: #{tpu_custom_call.1} parent=1 // pred_region
      _
    $region21: #{tpu_custom_call.1} parent=1 // pred_fallthru
      _
    // Predicated region
    $region22: #{tpu_custom_call.1} parent=1 // pred_check
      _
    $region23: #{tpu_custom_call.1} parent=1 // pred_check_branch
      %91 = sbr.rel (0) target = $region25
    $region24: #{tpu_custom_call.1} parent=1 // pred_region
      %93 = vsyncadd [#allocation11], 0
      %s95 = sshll.u32 %s5, 4
      %s96 = int_to_ptr.hbm [resolvable:$true] %s95
      %s97 = sshll.u32 [#allocation12], 4
      %s98 = int_to_ptr.vmem [resolvable:$true] %s97
      %100 = dma.hbm_to_vmem [thread:$0]  %s96, 16, %s98, [#allocation11]
    $region25: #{tpu_custom_call.1} parent=1 // pred_fallthru
      _
    // Predicated region
    $region26: #{tpu_custom_call.1} parent=1 // pred_check
      _
    $region27: #{tpu_custom_call.1} parent=1 // pred_check_branch
      %102 = sbr.rel (0) target = $region29
    $region28: #{tpu_custom_call.1} parent=1 // pred_region
      _
    $region29: #{tpu_custom_call.1} parent=1 // pred_fallthru
      _
    // Predicated region
    $region30: #{tpu_custom_call.1} parent=1 // pred_check
      _
    $region31: #{tpu_custom_call.1} parent=1 // pred_check_branch
      %104 = sbr.rel (0) target = $region33
    $region32: #{tpu_custom_call.1} parent=1 // pred_region
      %106 = vsyncadd [#allocation14], 0
      %s108 = sshll.u32 %s7, 4
      %s109 = int_to_ptr.hbm [resolvable:$true] %s108
      %s110 = sshll.u32 [#allocation13], 4
      %s111 = int_to_ptr.vmem [resolvable:$true] %s110
      %113 = dma.hbm_to_vmem [thread:$0]  %s109, 16, %s111, [#allocation14]
    $region33: #{tpu_custom_call.1} parent=1 // pred_fallthru
      _
    // Predicated region
    $region34: #{tpu_custom_call.1} parent=1 // pred_check
      _
    $region35: #{tpu_custom_call.1} parent=1 // pred_check_branch
      %115 = sbr.rel (0) target = $region37
    $region36: #{tpu_custom_call.1} parent=1 // pred_region
      %117 = vsyncadd [#allocation14], 0
      %s119 = sshll.u32 %s8, 4
      %s120 = int_to_ptr.hbm [resolvable:$true] %s119
      %s121 = sshll.u32 [#allocation15], 4
      %s122 = int_to_ptr.vmem [resolvable:$true] %s121
      %124 = dma.hbm_to_vmem [thread:$0]  %s120, 32, %s122, [#allocation14]
    $region37: #{tpu_custom_call.1} parent=1 // pred_fallthru
      _
    // Predicated region
    $region38: #{tpu_custom_call.1} parent=1 // pred_check
      _
    $region39: #{tpu_custom_call.1} parent=1 // pred_check_branch
      %126 = sbr.rel (0) target = $region41
    $region40: #{tpu_custom_call.1} parent=1 // pred_region
      _
    $region41: #{tpu_custom_call.1} parent=1 // pred_fallthru
      _
    // Predicated region
    $region42: #{tpu_custom_call.1} parent=1 // pred_check
      _
    $region43: #{tpu_custom_call.1} parent=1 // pred_check_branch
      %128 = sbr.rel (0) target = $region45
    $region44: #{tpu_custom_call.1} parent=1 // pred_region
      %130 = vsyncadd [#allocation17], 0
      %s132 = sshll.u32 %s10, 4
      %s133 = int_to_ptr.hbm [resolvable:$true] %s132
      %s134 = sshll.u32 [#allocation16], 4
      %s135 = int_to_ptr.vmem [resolvable:$true] %s134
      %137 = dma.hbm_to_vmem [thread:$0]  %s133, 16, %s135, [#allocation17]
    $region45: #{tpu_custom_call.1} parent=1 // pred_fallthru
      _
    // Predicated region
    $region46: #{tpu_custom_call.1} parent=1 // pred_check
      _
    $region47: #{tpu_custom_call.1} parent=1 // pred_check_branch
      %139 = sbr.rel (0) target = $region49
    $region48: #{tpu_custom_call.1} parent=1 // pred_region
      %141 = vsyncadd [#allocation17], 0
      %s142 = sshll.u32 %s11, 4
      %s143 = int_to_ptr.hbm [resolvable:$true] %s142
      %s144 = sshll.u32 [#allocation18], 4
      %s145 = int_to_ptr.vmem [resolvable:$true] %s144
      %150 = dma.hbm_to_vmem [thread:$0]  %s143, 256, %s145, [#allocation17], 64, 64, 4
    $region49: #{tpu_custom_call.1} parent=1 // pred_fallthru
      _
    // Predicated region
    $region50: #{tpu_custom_call.1} parent=1 // pred_check
      _
    $region51: #{tpu_custom_call.1} parent=1 // pred_check_branch
      %152 = sbr.rel (0) target = $region53
    $region52: #{tpu_custom_call.1} parent=1 // pred_region
      %154 = vsyncadd [#allocation20], 0
      %s156 = sshll.u32 %s12, 4
      %s157 = int_to_ptr.hbm [resolvable:$true] %s156
      %s158 = sshll.u32 [#allocation19], 4
      %s159 = int_to_ptr.vmem [resolvable:$true] %s158
      %161 = dma.hbm_to_vmem [thread:$0]  %s157, 16, %s159, [#allocation20]
    $region53: #{tpu_custom_call.1} parent=1 // pred_fallthru
      _
    // Predicated region
    $region54: #{tpu_custom_call.1} parent=1 // pred_check
      _
    $region55: #{tpu_custom_call.1} parent=1 // pred_check_branch
      %163 = sbr.rel (0) target = $region57
    $region56: #{tpu_custom_call.1} parent=1 // pred_region
      %165 = vsyncadd [#allocation20], 0
      %s166 = sshll.u32 %s13, 4
      %s167 = int_to_ptr.hbm [resolvable:$true] %s166
      %s168 = sshll.u32 [#allocation21], 4
      %s169 = int_to_ptr.vmem [resolvable:$true] %s168
      %174 = dma.hbm_to_vmem [thread:$0]  %s167, 256, %s169, [#allocation20], 64, 64, 4
    $region57: #{tpu_custom_call.1} parent=1 // pred_fallthru
      _
    // Predicated region
    $region58: #{tpu_custom_call.1} parent=1 // pred_check
      _
    $region59: #{tpu_custom_call.1} parent=1 // pred_check_branch
      %176 = sbr.rel (0) target = $region61
    $region60: #{tpu_custom_call.1} parent=1 // pred_region
      %178 = vsyncadd [#allocation23], 0
      %s180 = sshll.u32 %s14, 4
      %s181 = int_to_ptr.hbm [resolvable:$true] %s180
      %s182 = sshll.u32 [#allocation22], 4
      %s183 = int_to_ptr.vmem [resolvable:$true] %s182
      %185 = dma.hbm_to_vmem [thread:$0]  %s181, 16, %s183, [#allocation23]
    $region61: #{tpu_custom_call.1} parent=1 // pred_fallthru
      _
    // Predicated region
    $region62: #{tpu_custom_call.1} parent=1 // pred_check
      _
    $region63: #{tpu_custom_call.1} parent=1 // pred_check_branch
      %187 = sbr.rel (0) target = $region65
    $region64: #{tpu_custom_call.1} parent=1 // pred_region
      %189 = vsyncadd [#allocation23], 0
      %s191 = sshll.u32 %s15, 4
      %s192 = int_to_ptr.hbm [resolvable:$true] %s191
      %s193 = sshll.u32 [#allocation24], 4
      %s194 = int_to_ptr.vmem [resolvable:$true] %s193
      %196 = dma.hbm_to_vmem [thread:$0]  %s192, 32, %s194, [#allocation23]
    $region65: #{tpu_custom_call.1} parent=1 // pred_fallthru
      _
    // Predicated region
    $region66: #{tpu_custom_call.1} parent=1 // pred_check
      _
    $region67: #{tpu_custom_call.1} parent=1 // pred_check_branch
      %198 = sbr.rel (0) target = $region69
    $region68: #{tpu_custom_call.1} parent=1 // pred_region
      %200 = vsyncadd [#allocation26], 0
      %s201 = sshll.u32 %s16, 4
      %s202 = int_to_ptr.hbm [resolvable:$true] %s201
      %s203 = sshll.u32 [#allocation25], 4
      %s204 = int_to_ptr.vmem [resolvable:$true] %s203
      %209 = dma.hbm_to_vmem [thread:$0]  %s202, 256, %s204, [#allocation26], 64, 64, 4
    $region69: #{tpu_custom_call.1} parent=1 // pred_fallthru
      _
    // Predicated region
    $region70: #{tpu_custom_call.1} parent=1 // pred_check
      _
    $region71: #{tpu_custom_call.1} parent=1 // pred_check_branch
      %211 = sbr.rel (0) target = $region73
    $region72: #{tpu_custom_call.1} parent=1 // pred_region
      %213 = vsyncadd [#allocation26], 0
      %s215 = sshll.u32 %s17, 4
      %s216 = int_to_ptr.hbm [resolvable:$true] %s215
      %s217 = sshll.u32 [#allocation27], 4
      %s218 = int_to_ptr.vmem [resolvable:$true] %s217
      %220 = dma.hbm_to_vmem [thread:$0]  %s216, 16, %s218, [#allocation26]
    $region73: #{tpu_custom_call.1} parent=1 // pred_fallthru
      _
    // Predicated region
    $region74: #{tpu_custom_call.1} parent=1 // pred_check
      _
    $region75: #{tpu_custom_call.1} parent=1 // pred_check_branch
      %222 = sbr.rel (0) target = $region77
    $region76: #{tpu_custom_call.1} parent=1 // pred_region
      _
    $region77: #{tpu_custom_call.1} parent=1 // pred_fallthru
      _
    // Predicated region
    $region78: #{tpu_custom_call.1} parent=1 // pred_check
      _
    $region79: #{tpu_custom_call.1} parent=1 // pred_check_branch
      %224 = sbr.rel (0) target = $region81
    $region80: #{tpu_custom_call.1} parent=1 // pred_region
      %226 = vsyncadd [#allocation29], 0
      %s228 = sshll.u32 %s19, 4
      %s229 = int_to_ptr.hbm [resolvable:$true] %s228
      %s230 = sshll.u32 [#allocation28], 4
      %s231 = int_to_ptr.vmem [resolvable:$true] %s230
      %233 = dma.hbm_to_vmem [thread:$0]  %s229, 16, %s231, [#allocation29]
    $region81: #{tpu_custom_call.1} parent=1 // pred_fallthru
      _
    // Predicated region
    $region82: #{tpu_custom_call.1} parent=1 // pred_check
      _
    $region83: #{tpu_custom_call.1} parent=1 // pred_check_branch
      %235 = sbr.rel (0) target = $region85
    $region84: #{tpu_custom_call.1} parent=1 // pred_region
      _
    $region85: #{tpu_custom_call.1} parent=1 // pred_fallthru
      _
    // Predicated region
    $region86: #{tpu_custom_call.1} parent=1 // pred_check
      _
    $region87: #{tpu_custom_call.1} parent=1 // pred_check_branch
      %237 = sbr.rel (0) target = $region89
    $region88: #{tpu_custom_call.1} parent=1 // pred_region
      %239 = dma.done [#allocation5], 128
    $region89: #{tpu_custom_call.1} parent=1 // pred_fallthru
      _
    // Predicated region
    $region90: #{tpu_custom_call.1} parent=1 // pred_check
      _
    $region91: #{tpu_custom_call.1} parent=1 // pred_check_branch
      %241 = sbr.rel (0) target = $region93
    $region92: #{tpu_custom_call.1} parent=1 // pred_region
      %243 = dma.done [#allocation8], 128
    $region93: #{tpu_custom_call.1} parent=1 // pred_fallthru
      _
    // Predicated region
    $region94: #{tpu_custom_call.1} parent=1 // pred_check
      _
    $region95: #{tpu_custom_call.1} parent=1 // pred_check_branch
      %245 = sbr.rel (0) target = $region97
    $region96: #{tpu_custom_call.1} parent=1 // pred_region
      %247 = dma.done [#allocation8], 32
    $region97: #{tpu_custom_call.1} parent=1 // pred_fallthru
      _
    // Predicated region
    $region98: #{tpu_custom_call.1} parent=1 // pred_check
      _
    $region99: #{tpu_custom_call.1} parent=1 // pred_check_branch
      %249 = sbr.rel (0) target = $region101
    $region100: #{tpu_custom_call.1} parent=1 // pred_region
      %251 = dma.done [#allocation11], 32
    $region101: #{tpu_custom_call.1} parent=1 // pred_fallthru
      _
    // Predicated region
    $region102: #{tpu_custom_call.1} parent=1 // pred_check
      _
    $region103: #{tpu_custom_call.1} parent=1 // pred_check_branch
      %253 = sbr.rel (0) target = $region105
    $region104: #{tpu_custom_call.1} parent=1 // pred_region
      %255 = dma.done [#allocation11], 16
    $region105: #{tpu_custom_call.1} parent=1 // pred_fallthru
      _
    // Predicated region
    $region106: #{tpu_custom_call.1} parent=1 // pred_check
      _
    $region107: #{tpu_custom_call.1} parent=1 // pred_check_branch
      %257 = sbr.rel (0) target = $region109
    $region108: #{tpu_custom_call.1} parent=1 // pred_region
      %259 = dma.done [#allocation14], 16
    $region109: #{tpu_custom_call.1} parent=1 // pred_fallthru
      _
    // Predicated region
    $region110: #{tpu_custom_call.1} parent=1 // pred_check
      _
    $region111: #{tpu_custom_call.1} parent=1 // pred_check_branch
      %261 = sbr.rel (0) target = $region113
    $region112: #{tpu_custom_call.1} parent=1 // pred_region
      %263 = dma.done [#allocation14], 32
    $region113: #{tpu_custom_call.1} parent=1 // pred_fallthru
      _
    // Predicated region
    $region114: #{tpu_custom_call.1} parent=1 // pred_check
      _
    $region115: #{tpu_custom_call.1} parent=1 // pred_check_branch
      %265 = sbr.rel (0) target = $region117
    $region116: #{tpu_custom_call.1} parent=1 // pred_region
      %267 = dma.done [#allocation17], 16
    $region117: #{tpu_custom_call.1} parent=1 // pred_fallthru
      _
    // Predicated region
    $region118: #{tpu_custom_call.1} parent=1 // pred_check
      _
    $region119: #{tpu_custom_call.1} parent=1 // pred_check_branch
      %269 = sbr.rel (0) target = $region121
    $region120: #{tpu_custom_call.1} parent=1 // pred_region
      %271 = dma.done [#allocation17], 256
    $region121: #{tpu_custom_call.1} parent=1 // pred_fallthru
      _
    // Predicated region
    $region122: #{tpu_custom_call.1} parent=1 // pred_check
      _
    $region123: #{tpu_custom_call.1} parent=1 // pred_check_branch
      %273 = sbr.rel (0) target = $region125
    $region124: #{tpu_custom_call.1} parent=1 // pred_region
      %275 = dma.done [#allocation20], 16
    $region125: #{tpu_custom_call.1} parent=1 // pred_fallthru
      _
    // Predicated region
    $region126: #{tpu_custom_call.1} parent=1 // pred_check
      _
    $region127: #{tpu_custom_call.1} parent=1 // pred_check_branch
      %277 = sbr.rel (0) target = $region129
    $region128: #{tpu_custom_call.1} parent=1 // pred_region
      %279 = dma.done [#allocation20], 256
    $region129: #{tpu_custom_call.1} parent=1 // pred_fallthru
      _
    // Predicated region
    $region130: #{tpu_custom_call.1} parent=1 // pred_check
      _
    $region131: #{tpu_custom_call.1} parent=1 // pred_check_branch
      %281 = sbr.rel (0) target = $region133
    $region132: #{tpu_custom_call.1} parent=1 // pred_region
      %283 = dma.done [#allocation23], 16
    $region133: #{tpu_custom_call.1} parent=1 // pred_fallthru
      _
    // Predicated region
    $region134: #{tpu_custom_call.1} parent=1 // pred_check
      _
    $region135: #{tpu_custom_call.1} parent=1 // pred_check_branch
      %285 = sbr.rel (0) target = $region137
    $region136: #{tpu_custom_call.1} parent=1 // pred_region
      %287 = dma.done [#allocation23], 32
    $region137: #{tpu_custom_call.1} parent=1 // pred_fallthru
      _
    // Predicated region
    $region138: #{tpu_custom_call.1} parent=1 // pred_check
      _
    $region139: #{tpu_custom_call.1} parent=1 // pred_check_branch
      %289 = sbr.rel (0) target = $region141
    $region140: #{tpu_custom_call.1} parent=1 // pred_region
      %291 = dma.done [#allocation26], 256
    $region141: #{tpu_custom_call.1} parent=1 // pred_fallthru
      _
    // Predicated region
    $region142: #{tpu_custom_call.1} parent=1 // pred_check
      _
    $region143: #{tpu_custom_call.1} parent=1 // pred_check_branch
      %293 = sbr.rel (0) target = $region145
    $region144: #{tpu_custom_call.1} parent=1 // pred_region
      %295 = dma.done [#allocation26], 16
    $region145: #{tpu_custom_call.1} parent=1 // pred_fallthru
      _
    // Predicated region
    $region146: #{tpu_custom_call.1} parent=1 // pred_check
      _
    $region147: #{tpu_custom_call.1} parent=1 // pred_check_branch
      %297 = sbr.rel (0) target = $region149
    $region148: #{tpu_custom_call.1} parent=1 // pred_region
      %299 = dma.done [#allocation29], 16
    $region149: #{tpu_custom_call.1} parent=1 // pred_fallthru
      _
    %p301 = scmp.eq.s32.totalorder 0, 0
    // Predicated region
    $region150: #{tpu_custom_call.1} parent=1 // pred_check
      %p302 = pneg %p301
    $region151: #{tpu_custom_call.1} parent=1 // pred_check_branch
      %304 = sbr.rel (%p302) target = $region153
    $region152: #{tpu_custom_call.1} parent=1 // pred_region
      %v305 = vld [vmem:[#allocation4] sm:$0xf]
      %v306 = vld [vmem:[#allocation4 + $0x4] sm:$0xf]
      %v307 = vunpack.c.l.bf16 %v305
      %v308 = vunpack.c.l.bf16 %v306
      %v309 = vld [vmem:[#allocation7] sm:$0xf]
      %v310 = vld [vmem:[#allocation7 + $0x4] sm:$0xf]
      %v311 = vlaneseq
      %v312 = vshrl.u32 %v311, 7
      %v313 = vlaneseq
      %v314 = vand.u32 %v313, 127
      %vm315 = vcmp.le.s32.totalorder %v314, %v312
      %v316 = vld [vmem:[#allocation9] sm:$0x1]
      %v317 = vld [vmem:[#allocation9 + $0x1] sm:$0x1]
      %vm318 = vcmp.gt.f32.partialorder %v316, 0.5
      %vm319 = vcmp.gt.f32.partialorder %v317, 0.5
      %v320 = vsel %vm315, 1, 0
      %vm321 = vcmp.eq.s32.totalorder %v320, 1
      %v322 = vsel %vm318, 1, 0
      %v323 = vsel %vm319, 1, 0
      %v324 = vperm.slane %v322, 0
      %v325 = vperm.slane %v323, 0
      %vm326 = vcmp.eq.s32.totalorder %v324, 1
      %vm327 = vcmp.eq.s32.totalorder %v325, 1
      %vm328 = vmand %vm321, %vm326
      %vm329 = vmand %vm321, %vm327
      %v330 = vld [vmem:[#allocation10] sm:$0x1]
      %v331 = vld [vmem:[#allocation10 + $0x1] sm:$0x1]
      %vm332 = vcmp.gt.f32.partialorder %v330, 0.5
      %vm333 = vcmp.gt.f32.partialorder %v331, 0.5
      %v334 = vld [vmem:[%s4] sm:$0xf]
      %v335 = vld [vmem:[%s4 + $0x4] sm:$0xf]
      %v336 = vld [vmem:[%s4 + $0x8] sm:$0xf]
      %v337 = vld [vmem:[%s4 + $0xc] sm:$0xf]
      %v338 = vld [vmem:[#allocation12] sm:$0x1]
      %v340 = vperm.slane %v338, 0
      %v344 = vunpack.c.l.b16 %v305
      %v345 = vunpack.c.l.b16 %v306
      %v346 = vpack.c.b16 %v345, %v344
      %v351 = vunpack.c.l.b16 %v334
      %v352 = vunpack.c.l.b16 %v335
      %v353 = vunpack.c.l.b16 %v336
      %v354 = vunpack.c.l.b16 %v337
      %v355 = vpack.c.b16 %v352, %v351
      %v356 = vpack.c.b16 %v354, %v353
      %vm359 = vcmask 261120
      %v361 = vsel %vm359, %v346, 0
      %363 = vmatpush.bf16.msra.mxu0 0
      %364 = vmatpush.bf16.msra.mxu0 0
      %365 = vmatpush.bf16.msra.mxu0 0
      %366 = vmatpush.bf16.msra.mxu0 0
      %367 = vmatpush.bf16.msra.mxu0 0
      %368 = vmatpush.bf16.msra.mxu0 0
      %369 = vmatpush.bf16.msra.mxu0 %v356
      %370 = vmatpush.bf16.msra.mxu0 %v355
      %371 = vmatmul.bf16.gmra.mxu0 %v361
      %v372 = vpop.f32.mrf.mxu0
      %v373 = vadd.f32 %v340, %v372
      %v374 = vpop.f32.mrf.mxu0
      %v375 = vadd.f32 %v340, %v374
      %376 = vdwg.mxu0
      %v377 = vmul.f32 %v373, 0.35355338
      %v378 = vmul.f32 %v375, 0.35355338
      %v379 = vpack.c.bf16 %v377, %v377
      %v380 = vpack.c.bf16 %v378, %v378
      %v381 = vpack.c.bf16 %v373, %v373
      %v382 = vpack.c.bf16 %v375, %v375
      %385 = vrot.lane.b32.xlu0 %v379, 120
      %v386 = vpop.permute.xlu0 %385
      %387 = vrot.lane.b32.xlu0 %v380, 120
      %v388 = vpop.permute.xlu0 %387
      %389 = vrot.lane.b32.xlu0 %v379, 112
      %v390 = vpop.permute.xlu0 %389
      %391 = vrot.lane.b32.xlu0 %v380, 112
      %v392 = vpop.permute.xlu0 %391
      %393 = vrot.lane.b32.xlu0 %v379, 104
      %v394 = vpop.permute.xlu0 %393
      %395 = vrot.lane.b32.xlu0 %v380, 104
      %v396 = vpop.permute.xlu0 %395
      %v399 = vpack.i.b16 %v386, %v379
      %v400 = vshrl.u32 %v379, 16
      %v401 = vshrl.u32 %v386, 16
      %v402 = vpack.i.b16 %v401, %v400
      %v405 = vpack.i.b16 %v394, %v390
      %v406 = vshrl.u32 %v390, 16
      %v407 = vshrl.u32 %v394, 16
      %v408 = vpack.i.b16 %v407, %v406
      %v411 = vpack.i.b16 %v388, %v380
      %v412 = vshrl.u32 %v380, 16
      %v413 = vshrl.u32 %v388, 16
      %v414 = vpack.i.b16 %v413, %v412
      %v417 = vpack.i.b16 %v396, %v392
      %v418 = vshrl.u32 %v392, 16
      %v419 = vshrl.u32 %v396, 16
      %v420 = vpack.i.b16 %v419, %v418
      %v423 = vunpack.c.l.s4 1983009808
      %v424 = vunpack.c.0.s8 %v423
      %v425 = vperm.slane %v399, %v424
      %v428 = vunpack.c.l.s4 1983009808
      %v429 = vunpack.c.0.s8 %v428
      %v430 = vperm.slane %v405, %v429
      %v431 = vrot.slane %v430, 4
      %vm432 = vcmask 1047556
      %v433 = vsel %vm432, %v431, %v425
      %v434 = vrot.slane %v425, 4
      %v435 = vsel %vm432, %v430, %v434
      %v437 = vunpack.c.l.s4 1934713408
      %v438 = vunpack.c.0.s8 %v437
      %v439 = vperm.slane %v433, %v438
      %v441 = vunpack.c.l.s4 1934713408
      %v442 = vunpack.c.0.s8 %v441
      %v443 = vperm.slane %v435, %v442
      %v444 = vrot.slane %v439, 4
      %v445 = vsel %vm432, 0, %v444
      %v446 = vrot.slane %v443, 4
      %v447 = vsel %vm432, 0, %v446
      %v450 = vunpack.c.l.s4 1983009808
      %v451 = vunpack.c.0.s8 %v450
      %v452 = vperm.slane %v402, %v451
      %v455 = vunpack.c.l.s4 1983009808
      %v456 = vunpack.c.0.s8 %v455
      %v457 = vperm.slane %v408, %v456
      %v458 = vrot.slane %v457, 4
      %v459 = vsel %vm432, %v458, %v452
      %v460 = vrot.slane %v452, 4
      %v461 = vsel %vm432, %v457, %v460
      %v463 = vunpack.c.l.s4 1934713408
      %v464 = vunpack.c.0.s8 %v463
      %v465 = vperm.slane %v459, %v464
      %v467 = vunpack.c.l.s4 1934713408
      %v468 = vunpack.c.0.s8 %v467
      %v469 = vperm.slane %v461, %v468
      %v470 = vrot.slane %v465, 4
      %v471 = vsel %vm432, 0, %v470
      %v472 = vrot.slane %v469, 4
      %v473 = vsel %vm432, 0, %v472
      %v476 = vunpack.c.l.s4 1983009808
      %v477 = vunpack.c.0.s8 %v476
      %v478 = vperm.slane %v411, %v477
      %v481 = vunpack.c.l.s4 1983009808
      %v482 = vunpack.c.0.s8 %v481
      %v483 = vperm.slane %v417, %v482
      %v484 = vrot.slane %v483, 4
      %v485 = vsel %vm432, %v484, %v478
      %v486 = vrot.slane %v478, 4
      %v487 = vsel %vm432, %v483, %v486
      %v489 = vunpack.c.l.s4 1934713408
      %v490 = vunpack.c.0.s8 %v489
      %v491 = vperm.slane %v485, %v490
      %v493 = vunpack.c.l.s4 1934713408
      %v494 = vunpack.c.0.s8 %v493
      %v495 = vperm.slane %v487, %v494
      %v496 = vrot.slane %v491, 4
      %v497 = vsel %vm432, 0, %v496
      %v498 = vrot.slane %v495, 4
      %v499 = vsel %vm432, 0, %v498
      %v502 = vunpack.c.l.s4 1983009808
      %v503 = vunpack.c.0.s8 %v502
      %v504 = vperm.slane %v414, %v503
      %v507 = vunpack.c.l.s4 1983009808
      %v508 = vunpack.c.0.s8 %v507
      %v509 = vperm.slane %v420, %v508
      %v510 = vrot.slane %v509, 4
      %v511 = vsel %vm432, %v510, %v504
      %v512 = vrot.slane %v504, 4
      %v513 = vsel %vm432, %v509, %v512
      %v515 = vunpack.c.l.s4 1934713408
      %v516 = vunpack.c.0.s8 %v515
      %v517 = vperm.slane %v511, %v516
      %v519 = vunpack.c.l.s4 1934713408
      %v520 = vunpack.c.0.s8 %v519
      %v521 = vperm.slane %v513, %v520
      %v522 = vrot.slane %v517, 4
      %v523 = vsel %vm432, 0, %v522
      %v524 = vrot.slane %v521, 4
      %v525 = vsel %vm432, 0, %v524
      %v526 = vsel %vm432, %v446, %v439
      %v528 = vunpack.c.l.s4 1983009808
      %v529 = vunpack.c.0.s8 %v528
      %v530 = vperm.slane %v526, %v529
      %v531 = vrot.slane %v447, 4
      %v532 = vsel %vm432, %v531, %v445
      %v534 = vunpack.c.l.s4 1983009808
      %v535 = vunpack.c.0.s8 %v534
      %v536 = vperm.slane %v532, %v535
      %v537 = vrot.slane %v536, 4
      %v538 = vsel %vm432, %v537, %v530
      %v540 = vunpack.c.l.s4 1934713408
      %v541 = vunpack.c.0.s8 %v540
      %v542 = vperm.slane %v538, %v541
      %v543 = vrot.slane %v542, 4
      %v544 = vsel %vm432, 0, %v543
      %v545 = vsel %vm432, %v472, %v465
      %v547 = vunpack.c.l.s4 1983009808
      %v548 = vunpack.c.0.s8 %v547
      %v549 = vperm.slane %v545, %v548
      %v550 = vrot.slane %v473, 4
      %v551 = vsel %vm432, %v550, %v471
      %v553 = vunpack.c.l.s4 1983009808
      %v554 = vunpack.c.0.s8 %v553
      %v555 = vperm.slane %v551, %v554
      %v556 = vrot.slane %v555, 4
      %v557 = vsel %vm432, %v556, %v549
      %v559 = vunpack.c.l.s4 1934713408
      %v560 = vunpack.c.0.s8 %v559
      %v561 = vperm.slane %v557, %v560
      %v562 = vrot.slane %v561, 4
      %v563 = vsel %vm432, 0, %v562
      %v564 = vsel %vm432, %v498, %v491
      %v566 = vunpack.c.l.s4 1983009808
      %v567 = vunpack.c.0.s8 %v566
      %v568 = vperm.slane %v564, %v567
      %v569 = vrot.slane %v499, 4
      %v570 = vsel %vm432, %v569, %v497
      %v572 = vunpack.c.l.s4 1983009808
      %v573 = vunpack.c.0.s8 %v572
      %v574 = vperm.slane %v570, %v573
      %v575 = vrot.slane %v574, 4
      %v576 = vsel %vm432, %v575, %v568
      %v578 = vunpack.c.l.s4 1934713408
      %v579 = vunpack.c.0.s8 %v578
      %v580 = vperm.slane %v576, %v579
      %v581 = vrot.slane %v580, 4
      %v582 = vsel %vm432, 0, %v581
      %v583 = vsel %vm432, %v524, %v517
      %v585 = vunpack.c.l.s4 1983009808
      %v586 = vunpack.c.0.s8 %v585
      %v587 = vperm.slane %v583, %v586
      %v588 = vrot.slane %v525, 4
      %v589 = vsel %vm432, %v588, %v523
      %v591 = vunpack.c.l.s4 1983009808
      %v592 = vunpack.c.0.s8 %v591
      %v593 = vperm.slane %v589, %v592
      %v594 = vrot.slane %v593, 4
      %v595 = vsel %vm432, %v594, %v587
      %v597 = vunpack.c.l.s4 1934713408
      %v598 = vunpack.c.0.s8 %v597
      %v599 = vperm.slane %v595, %v598
      %v600 = vrot.slane %v599, 4
      %v601 = vsel %vm432, 0, %v600
      %v604 = vpack.i.b16 %v561, %v542
      %v605 = vshrl.u32 %v542, 16
      %v606 = vshrl.u32 %v561, 16
      %v607 = vpack.i.b16 %v606, %v605
      %v610 = vpack.i.b16 %v563, %v544
      %v611 = vshrl.u32 %v544, 16
      %v612 = vshrl.u32 %v563, 16
      %v613 = vpack.i.b16 %v612, %v611
      %v616 = vpack.i.b16 %v599, %v580
      %v617 = vshrl.u32 %v580, 16
      %v618 = vshrl.u32 %v599, 16
      %v619 = vpack.i.b16 %v618, %v617
      %v622 = vpack.i.b16 %v601, %v582
      %v623 = vshrl.u32 %v582, 16
      %v624 = vshrl.u32 %v601, 16
      %v625 = vpack.i.b16 %v624, %v623
      %628 = vrot.lane.b32.xlu0 %v381, 120
      %v629 = vpop.permute.xlu0 %628
      %630 = vrot.lane.b32.xlu0 %v382, 120
      %v631 = vpop.permute.xlu0 %630
      %632 = vrot.lane.b32.xlu0 %v381, 112
      %v633 = vpop.permute.xlu0 %632
      %634 = vrot.lane.b32.xlu0 %v382, 112
      %v635 = vpop.permute.xlu0 %634
      %636 = vrot.lane.b32.xlu0 %v381, 104
      %v637 = vpop.permute.xlu0 %636
      %638 = vrot.lane.b32.xlu0 %v382, 104
      %v639 = vpop.permute.xlu0 %638
      %640 = vrot.lane.b32.xlu0 %v381, 96
      %v641 = vpop.permute.xlu0 %640
      %642 = vrot.lane.b32.xlu0 %v382, 96
      %v643 = vpop.permute.xlu0 %642
      %644 = vrot.lane.b32.xlu0 %v629, 96
      %v645 = vpop.permute.xlu0 %644
      %646 = vrot.lane.b32.xlu0 %v631, 96
      %v647 = vpop.permute.xlu0 %646
      %648 = vrot.lane.b32.xlu0 %v633, 96
      %v649 = vpop.permute.xlu0 %648
      %650 = vrot.lane.b32.xlu0 %v635, 96
      %v651 = vpop.permute.xlu0 %650
      %652 = vrot.lane.b32.xlu0 %v637, 96
      %v653 = vpop.permute.xlu0 %652
      %654 = vrot.lane.b32.xlu0 %v639, 96
      %v655 = vpop.permute.xlu0 %654
      %v658 = vpack.i.b16 %v645, %v641
      %v659 = vshrl.u32 %v641, 16
      %v660 = vshrl.u32 %v645, 16
      %v661 = vpack.i.b16 %v660, %v659
      %v664 = vpack.i.b16 %v653, %v649
      %v665 = vshrl.u32 %v649, 16
      %v666 = vshrl.u32 %v653, 16
      %v667 = vpack.i.b16 %v666, %v665
      %v670 = vpack.i.b16 %v647, %v643
      %v671 = vshrl.u32 %v643, 16
      %v672 = vshrl.u32 %v647, 16
      %v673 = vpack.i.b16 %v672, %v671
      %v676 = vpack.i.b16 %v655, %v651
      %v677 = vshrl.u32 %v651, 16
      %v678 = vshrl.u32 %v655, 16
      %v679 = vpack.i.b16 %v678, %v677
      %v682 = vunpack.c.l.s4 1983009808
      %v683 = vunpack.c.0.s8 %v682
      %v684 = vperm.slane %v658, %v683
      %v687 = vunpack.c.l.s4 1983009808
      %v688 = vunpack.c.0.s8 %v687
      %v689 = vperm.slane %v664, %v688
      %v690 = vrot.slane %v689, 4
      %v691 = vsel %vm432, %v690, %v684
      %v692 = vrot.slane %v684, 4
      %v693 = vsel %vm432, %v689, %v692
      %v695 = vunpack.c.l.s4 1934713408
      %v696 = vunpack.c.0.s8 %v695
      %v697 = vperm.slane %v691, %v696
      %v699 = vunpack.c.l.s4 1934713408
      %v700 = vunpack.c.0.s8 %v699
      %v701 = vperm.slane %v693, %v700
      %v702 = vrot.slane %v697, 4
      %v703 = vsel %vm432, 0, %v702
      %v704 = vrot.slane %v701, 4
      %v705 = vsel %vm432, 0, %v704
      %v708 = vunpack.c.l.s4 1983009808
      %v709 = vunpack.c.0.s8 %v708
      %v710 = vperm.slane %v661, %v709
      %v713 = vunpack.c.l.s4 1983009808
      %v714 = vunpack.c.0.s8 %v713
      %v715 = vperm.slane %v667, %v714
      %v716 = vrot.slane %v715, 4
      %v717 = vsel %vm432, %v716, %v710
      %v718 = vrot.slane %v710, 4
      %v719 = vsel %vm432, %v715, %v718
      %v721 = vunpack.c.l.s4 1934713408
      %v722 = vunpack.c.0.s8 %v721
      %v723 = vperm.slane %v717, %v722
      %v725 = vunpack.c.l.s4 1934713408
      %v726 = vunpack.c.0.s8 %v725
      %v727 = vperm.slane %v719, %v726
      %v728 = vrot.slane %v723, 4
      %v729 = vsel %vm432, 0, %v728
      %v730 = vrot.slane %v727, 4
      %v731 = vsel %vm432, 0, %v730
      %v734 = vunpack.c.l.s4 1983009808
      %v735 = vunpack.c.0.s8 %v734
      %v736 = vperm.slane %v670, %v735
      %v739 = vunpack.c.l.s4 1983009808
      %v740 = vunpack.c.0.s8 %v739
      %v741 = vperm.slane %v676, %v740
      %v742 = vrot.slane %v741, 4
      %v743 = vsel %vm432, %v742, %v736
      %v744 = vrot.slane %v736, 4
      %v745 = vsel %vm432, %v741, %v744
      %v747 = vunpack.c.l.s4 1934713408
      %v748 = vunpack.c.0.s8 %v747
      %v749 = vperm.slane %v743, %v748
      %v751 = vunpack.c.l.s4 1934713408
      %v752 = vunpack.c.0.s8 %v751
      %v753 = vperm.slane %v745, %v752
      %v754 = vrot.slane %v749, 4
      %v755 = vsel %vm432, 0, %v754
      %v756 = vrot.slane %v753, 4
      %v757 = vsel %vm432, 0, %v756
      %v760 = vunpack.c.l.s4 1983009808
      %v761 = vunpack.c.0.s8 %v760
      %v762 = vperm.slane %v673, %v761
      %v765 = vunpack.c.l.s4 1983009808
      %v766 = vunpack.c.0.s8 %v765
      %v767 = vperm.slane %v679, %v766
      %v768 = vrot.slane %v767, 4
      %v769 = vsel %vm432, %v768, %v762
      %v770 = vrot.slane %v762, 4
      %v771 = vsel %vm432, %v767, %v770
      %v773 = vunpack.c.l.s4 1934713408
      %v774 = vunpack.c.0.s8 %v773
      %v775 = vperm.slane %v769, %v774
      %v777 = vunpack.c.l.s4 1934713408
      %v778 = vunpack.c.0.s8 %v777
      %v779 = vperm.slane %v771, %v778
      %v780 = vrot.slane %v775, 4
      %v781 = vsel %vm432, 0, %v780
      %v782 = vrot.slane %v779, 4
      %v783 = vsel %vm432, 0, %v782
      %v784 = vsel %vm432, %v704, %v697
      %v786 = vunpack.c.l.s4 1983009808
      %v787 = vunpack.c.0.s8 %v786
      %v788 = vperm.slane %v784, %v787
      %v789 = vrot.slane %v705, 4
      %v790 = vsel %vm432, %v789, %v703
      %v792 = vunpack.c.l.s4 1983009808
      %v793 = vunpack.c.0.s8 %v792
      %v794 = vperm.slane %v790, %v793
      %v795 = vrot.slane %v794, 4
      %v796 = vsel %vm432, %v795, %v788
      %v798 = vunpack.c.l.s4 1934713408
      %v799 = vunpack.c.0.s8 %v798
      %v800 = vperm.slane %v796, %v799
      %v801 = vrot.slane %v800, 4
      %v802 = vsel %vm432, 0, %v801
      %v803 = vsel %vm432, %v730, %v723
      %v805 = vunpack.c.l.s4 1983009808
      %v806 = vunpack.c.0.s8 %v805
      %v807 = vperm.slane %v803, %v806
      %v808 = vrot.slane %v731, 4
      %v809 = vsel %vm432, %v808, %v729
      %v811 = vunpack.c.l.s4 1983009808
      %v812 = vunpack.c.0.s8 %v811
      %v813 = vperm.slane %v809, %v812
      %v814 = vrot.slane %v813, 4
      %v815 = vsel %vm432, %v814, %v807
      %v817 = vunpack.c.l.s4 1934713408
      %v818 = vunpack.c.0.s8 %v817
      %v819 = vperm.slane %v815, %v818
      %v820 = vrot.slane %v819, 4
      %v821 = vsel %vm432, 0, %v820
      %v822 = vsel %vm432, %v756, %v749
      %v824 = vunpack.c.l.s4 1983009808
      %v825 = vunpack.c.0.s8 %v824
      %v826 = vperm.slane %v822, %v825
      %v827 = vrot.slane %v757, 4
      %v828 = vsel %vm432, %v827, %v755
      %v830 = vunpack.c.l.s4 1983009808
      %v831 = vunpack.c.0.s8 %v830
      %v832 = vperm.slane %v828, %v831
      %v833 = vrot.slane %v832, 4
      %v834 = vsel %vm432, %v833, %v826
      %v836 = vunpack.c.l.s4 1934713408
      %v837 = vunpack.c.0.s8 %v836
      %v838 = vperm.slane %v834, %v837
      %v839 = vrot.slane %v838, 4
      %v840 = vsel %vm432, 0, %v839
      %v841 = vsel %vm432, %v782, %v775
      %v843 = vunpack.c.l.s4 1983009808
      %v844 = vunpack.c.0.s8 %v843
      %v845 = vperm.slane %v841, %v844
      %v846 = vrot.slane %v783, 4
      %v847 = vsel %vm432, %v846, %v781
      %v849 = vunpack.c.l.s4 1983009808
      %v850 = vunpack.c.0.s8 %v849
      %v851 = vperm.slane %v847, %v850
      %v852 = vrot.slane %v851, 4
      %v853 = vsel %vm432, %v852, %v845
      %v855 = vunpack.c.l.s4 1934713408
      %v856 = vunpack.c.0.s8 %v855
      %v857 = vperm.slane %v853, %v856
      %v858 = vrot.slane %v857, 4
      %v859 = vsel %vm432, 0, %v858
      %v862 = vpack.i.b16 %v819, %v800
      %v863 = vshrl.u32 %v800, 16
      %v864 = vshrl.u32 %v819, 16
      %v865 = vpack.i.b16 %v864, %v863
      %v868 = vpack.i.b16 %v821, %v802
      %v869 = vshrl.u32 %v802, 16
      %v870 = vshrl.u32 %v821, 16
      %v871 = vpack.i.b16 %v870, %v869
      %v874 = vpack.i.b16 %v857, %v838
      %v875 = vshrl.u32 %v838, 16
      %v876 = vshrl.u32 %v857, 16
      %v877 = vpack.i.b16 %v876, %v875
      %v880 = vpack.i.b16 %v859, %v840
      %v881 = vshrl.u32 %v840, 16
      %v882 = vshrl.u32 %v859, 16
      %v883 = vpack.i.b16 %v882, %v881
      %884 = vrot.lane.b32.xlu0 %v381, 64
      %v885 = vpop.permute.xlu0 %884
      %886 = vrot.lane.b32.xlu0 %v382, 64
      %v887 = vpop.permute.xlu0 %886
      %888 = vrot.lane.b32.xlu0 %v629, 64
      %v889 = vpop.permute.xlu0 %888
      %890 = vrot.lane.b32.xlu0 %v631, 64
      %v891 = vpop.permute.xlu0 %890
      %892 = vrot.lane.b32.xlu0 %v633, 64
      %v893 = vpop.permute.xlu0 %892
      %894 = vrot.lane.b32.xlu0 %v635, 64
      %v895 = vpop.permute.xlu0 %894
      %896 = vrot.lane.b32.xlu0 %v637, 64
      %v897 = vpop.permute.xlu0 %896
      %898 = vrot.lane.b32.xlu0 %v639, 64
      %v899 = vpop.permute.xlu0 %898
      %v902 = vpack.i.b16 %v889, %v885
      %v903 = vshrl.u32 %v885, 16
      %v904 = vshrl.u32 %v889, 16
      %v905 = vpack.i.b16 %v904, %v903
      %v908 = vpack.i.b16 %v897, %v893
      %v909 = vshrl.u32 %v893, 16
      %v910 = vshrl.u32 %v897, 16
      %v911 = vpack.i.b16 %v910, %v909
      %v914 = vpack.i.b16 %v891, %v887
      %v915 = vshrl.u32 %v887, 16
      %v916 = vshrl.u32 %v891, 16
      %v917 = vpack.i.b16 %v916, %v915
      %v920 = vpack.i.b16 %v899, %v895
      %v921 = vshrl.u32 %v895, 16
      %v922 = vshrl.u32 %v899, 16
      %v923 = vpack.i.b16 %v922, %v921
      %v926 = vunpack.c.l.s4 1983009808
      %v927 = vunpack.c.0.s8 %v926
      %v928 = vperm.slane %v902, %v927
      %v931 = vunpack.c.l.s4 1983009808
      %v932 = vunpack.c.0.s8 %v931
      %v933 = vperm.slane %v908, %v932
      %v934 = vrot.slane %v933, 4
      %v935 = vsel %vm432, %v934, %v928
      %v936 = vrot.slane %v928, 4
      %v937 = vsel %vm432, %v933, %v936
      %v939 = vunpack.c.l.s4 1934713408
      %v940 = vunpack.c.0.s8 %v939
      %v941 = vperm.slane %v935, %v940
      %v943 = vunpack.c.l.s4 1934713408
      %v944 = vunpack.c.0.s8 %v943
      %v945 = vperm.slane %v937, %v944
      %v946 = vrot.slane %v941, 4
      %v947 = vsel %vm432, 0, %v946
      %v948 = vrot.slane %v945, 4
      %v949 = vsel %vm432, 0, %v948
      %v952 = vunpack.c.l.s4 1983009808
      %v953 = vunpack.c.0.s8 %v952
      %v954 = vperm.slane %v905, %v953
      %v957 = vunpack.c.l.s4 1983009808
      %v958 = vunpack.c.0.s8 %v957
      %v959 = vperm.slane %v911, %v958
      %v960 = vrot.slane %v959, 4
      %v961 = vsel %vm432, %v960, %v954
      %v962 = vrot.slane %v954, 4
      %v963 = vsel %vm432, %v959, %v962
      %v965 = vunpack.c.l.s4 1934713408
      %v966 = vunpack.c.0.s8 %v965
      %v967 = vperm.slane %v961, %v966
      %v969 = vunpack.c.l.s4 1934713408
      %v970 = vunpack.c.0.s8 %v969
      %v971 = vperm.slane %v963, %v970
      %v972 = vrot.slane %v967, 4
      %v973 = vsel %vm432, 0, %v972
      %v974 = vrot.slane %v971, 4
      %v975 = vsel %vm432, 0, %v974
      %v978 = vunpack.c.l.s4 1983009808
      %v979 = vunpack.c.0.s8 %v978
      %v980 = vperm.slane %v914, %v979
      %v983 = vunpack.c.l.s4 1983009808
      %v984 = vunpack.c.0.s8 %v983
      %v985 = vperm.slane %v920, %v984
      %v986 = vrot.slane %v985, 4
      %v987 = vsel %vm432, %v986, %v980
      %v988 = vrot.slane %v980, 4
      %v989 = vsel %vm432, %v985, %v988
      %v991 = vunpack.c.l.s4 1934713408
      %v992 = vunpack.c.0.s8 %v991
      %v993 = vperm.slane %v987, %v992
      %v995 = vunpack.c.l.s4 1934713408
      %v996 = vunpack.c.0.s8 %v995
      %v997 = vperm.slane %v989, %v996
      %v998 = vrot.slane %v993, 4
      %v999 = vsel %vm432, 0, %v998
      %v1000 = vrot.slane %v997, 4
      %v1001 = vsel %vm432, 0, %v1000
      %v1004 = vunpack.c.l.s4 1983009808
      %v1005 = vunpack.c.0.s8 %v1004
      %v1006 = vperm.slane %v917, %v1005
      %v1009 = vunpack.c.l.s4 1983009808
      %v1010 = vunpack.c.0.s8 %v1009
      %v1011 = vperm.slane %v923, %v1010
      %v1012 = vrot.slane %v1011, 4
      %v1013 = vsel %vm432, %v1012, %v1006
      %v1014 = vrot.slane %v1006, 4
      %v1015 = vsel %vm432, %v1011, %v1014
      %v1017 = vunpack.c.l.s4 1934713408
      %v1018 = vunpack.c.0.s8 %v1017
      %v1019 = vperm.slane %v1013, %v1018
      %v1021 = vunpack.c.l.s4 1934713408
      %v1022 = vunpack.c.0.s8 %v1021
      %v1023 = vperm.slane %v1015, %v1022
      %v1024 = vrot.slane %v1019, 4
      %v1025 = vsel %vm432, 0, %v1024
      %v1026 = vrot.slane %v1023, 4
      %v1027 = vsel %vm432, 0, %v1026
      %v1028 = vsel %vm432, %v948, %v941
      %v1030 = vunpack.c.l.s4 1983009808
      %v1031 = vunpack.c.0.s8 %v1030
      %v1032 = vperm.slane %v1028, %v1031
      %v1033 = vrot.slane %v949, 4
      %v1034 = vsel %vm432, %v1033, %v947
      %v1036 = vunpack.c.l.s4 1983009808
      %v1037 = vunpack.c.0.s8 %v1036
      %v1038 = vperm.slane %v1034, %v1037
      %v1039 = vrot.slane %v1038, 4
      %v1040 = vsel %vm432, %v1039, %v1032
      %v1042 = vunpack.c.l.s4 1934713408
      %v1043 = vunpack.c.0.s8 %v1042
      %v1044 = vperm.slane %v1040, %v1043
      %v1045 = vrot.slane %v1044, 4
      %v1046 = vsel %vm432, 0, %v1045
      %v1047 = vsel %vm432, %v974, %v967
      %v1049 = vunpack.c.l.s4 1983009808
      %v1050 = vunpack.c.0.s8 %v1049
      %v1051 = vperm.slane %v1047, %v1050
      %v1052 = vrot.slane %v975, 4
      %v1053 = vsel %vm432, %v1052, %v973
      %v1055 = vunpack.c.l.s4 1983009808
      %v1056 = vunpack.c.0.s8 %v1055
      %v1057 = vperm.slane %v1053, %v1056
      %v1058 = vrot.slane %v1057, 4
      %v1059 = vsel %vm432, %v1058, %v1051
      %v1061 = vunpack.c.l.s4 1934713408
      %v1062 = vunpack.c.0.s8 %v1061
      %v1063 = vperm.slane %v1059, %v1062
      %v1064 = vrot.slane %v1063, 4
      %v1065 = vsel %vm432, 0, %v1064
      %v1066 = vsel %vm432, %v1000, %v993
      %v1068 = vunpack.c.l.s4 1983009808
      %v1069 = vunpack.c.0.s8 %v1068
      %v1070 = vperm.slane %v1066, %v1069
      %v1071 = vrot.slane %v1001, 4
      %v1072 = vsel %vm432, %v1071, %v999
      %v1074 = vunpack.c.l.s4 1983009808
      %v1075 = vunpack.c.0.s8 %v1074
      %v1076 = vperm.slane %v1072, %v1075
      %v1077 = vrot.slane %v1076, 4
      %v1078 = vsel %vm432, %v1077, %v1070
      %v1080 = vunpack.c.l.s4 1934713408
      %v1081 = vunpack.c.0.s8 %v1080
      %v1082 = vperm.slane %v1078, %v1081
      %v1083 = vrot.slane %v1082, 4
      %v1084 = vsel %vm432, 0, %v1083
      %v1085 = vsel %vm432, %v1026, %v1019
      %v1087 = vunpack.c.l.s4 1983009808
      %v1088 = vunpack.c.0.s8 %v1087
      %v1089 = vperm.slane %v1085, %v1088
      %v1090 = vrot.slane %v1027, 4
      %v1091 = vsel %vm432, %v1090, %v1025
      %v1093 = vunpack.c.l.s4 1983009808
      %v1094 = vunpack.c.0.s8 %v1093
      %v1095 = vperm.slane %v1091, %v1094
      %v1096 = vrot.slane %v1095, 4
      %v1097 = vsel %vm432, %v1096, %v1089
      %v1099 = vunpack.c.l.s4 1934713408
      %v1100 = vunpack.c.0.s8 %v1099
      %v1101 = vperm.slane %v1097, %v1100
      %v1102 = vrot.slane %v1101, 4
      %v1103 = vsel %vm432, 0, %v1102
      %v1106 = vpack.i.b16 %v1063, %v1044
      %v1107 = vshrl.u32 %v1044, 16
      %v1108 = vshrl.u32 %v1063, 16
      %v1109 = vpack.i.b16 %v1108, %v1107
      %v1112 = vpack.i.b16 %v1065, %v1046
      %v1113 = vshrl.u32 %v1046, 16
      %v1114 = vshrl.u32 %v1065, 16
      %v1115 = vpack.i.b16 %v1114, %v1113
      %v1118 = vpack.i.b16 %v1101, %v1082
      %v1119 = vshrl.u32 %v1082, 16
      %v1120 = vshrl.u32 %v1101, 16
      %v1121 = vpack.i.b16 %v1120, %v1119
      %v1124 = vpack.i.b16 %v1103, %v1084
      %v1125 = vshrl.u32 %v1084, 16
      %v1126 = vshrl.u32 %v1103, 16
      %v1127 = vpack.i.b16 %v1126, %v1125
      %vm1128 = vcmask 64512
      %v1130 = vsel %vm1128, %v604, 0
      %v1133 = vsel %vm1128, %v862, 0
      %1135 = vmatpush.bf16.xpose.msra.mxu0 0
      %1136 = vmatpush.bf16.xpose.msra.mxu0 0
      %1137 = vmatpush.bf16.xpose.msra.mxu0 0
      %1138 = vmatpush.bf16.xpose.msra.mxu0 0
      %1139 = vmatpush.bf16.xpose.msra.mxu0 0
      %1140 = vmatpush.bf16.xpose.msra.mxu0 0
      %1141 = vmatpush.bf16.xpose.msra.mxu0 0
      %1142 = vmatpush.bf16.xpose.msra.mxu0 %v1133
      %1143 = vmatmul.bf16.gmra.mxu0 %v1130
      %v1144 = vpop.f32.mrf.mxu0
      %v1145 = vadd.f32 0.0, %v1144
      %v1146 = vpop.f32.mrf.mxu0
      %1147 = vdwg.mxu0
      %v1149 = vsel %vm1128, %v607, 0
      %v1152 = vsel %vm1128, %v865, 0
      %1154 = vmatpush.bf16.xpose.msra.mxu0 0
      %1155 = vmatpush.bf16.xpose.msra.mxu0 0
      %1156 = vmatpush.bf16.xpose.msra.mxu0 0
      %1157 = vmatpush.bf16.xpose.msra.mxu0 0
      %1158 = vmatpush.bf16.xpose.msra.mxu0 0
      %1159 = vmatpush.bf16.xpose.msra.mxu0 0
      %1160 = vmatpush.bf16.xpose.msra.mxu0 0
      %1161 = vmatpush.bf16.xpose.msra.mxu0 %v1152
      %1162 = vmatmul.bf16.gmra.mxu0 %v1149
      %v1163 = vpop.f32.mrf.mxu0
      %v1164 = vadd.f32 0.0, %v1163
      %v1165 = vpop.f32.mrf.mxu0
      %1166 = vdwg.mxu0
      %v1168 = vsel %vm1128, %v610, 0
      %v1171 = vsel %vm1128, %v868, 0
      %1173 = vmatpush.bf16.xpose.msra.mxu0 0
      %1174 = vmatpush.bf16.xpose.msra.mxu0 0
      %1175 = vmatpush.bf16.xpose.msra.mxu0 0
      %1176 = vmatpush.bf16.xpose.msra.mxu0 0
      %1177 = vmatpush.bf16.xpose.msra.mxu0 0
      %1178 = vmatpush.bf16.xpose.msra.mxu0 0
      %1179 = vmatpush.bf16.xpose.msra.mxu0 0
      %1180 = vmatpush.bf16.xpose.msra.mxu0 %v1171
      %1181 = vmatmul.bf16.gmra.mxu0 %v1168
      %v1182 = vpop.f32.mrf.mxu0
      %v1183 = vadd.f32 0.0, %v1182
      %v1184 = vpop.f32.mrf.mxu0
      %1185 = vdwg.mxu0
      %v1187 = vsel %vm1128, %v613, 0
      %v1190 = vsel %vm1128, %v871, 0
      %1192 = vmatpush.bf16.xpose.msra.mxu0 0
      %1193 = vmatpush.bf16.xpose.msra.mxu0 0
      %1194 = vmatpush.bf16.xpose.msra.mxu0 0
      %1195 = vmatpush.bf16.xpose.msra.mxu0 0
      %1196 = vmatpush.bf16.xpose.msra.mxu0 0
      %1197 = vmatpush.bf16.xpose.msra.mxu0 0
      %1198 = vmatpush.bf16.xpose.msra.mxu0 0
      %1199 = vmatpush.bf16.xpose.msra.mxu0 %v1190
      %1200 = vmatmul.bf16.gmra.mxu0 %v1187
      %v1201 = vpop.f32.mrf.mxu0
      %v1202 = vadd.f32 0.0, %v1201
      %v1203 = vpop.f32.mrf.mxu0
      %1204 = vdwg.mxu0
      %v1206 = vsel %vm1128, %v616, 0
      %v1209 = vsel %vm1128, %v874, 0
      %1211 = vmatpush.bf16.xpose.msra.mxu0 0
      %1212 = vmatpush.bf16.xpose.msra.mxu0 0
      %1213 = vmatpush.bf16.xpose.msra.mxu0 0
      %1214 = vmatpush.bf16.xpose.msra.mxu0 0
      %1215 = vmatpush.bf16.xpose.msra.mxu0 0
      %1216 = vmatpush.bf16.xpose.msra.mxu0 0
      %1217 = vmatpush.bf16.xpose.msra.mxu0 0
      %1218 = vmatpush.bf16.xpose.msra.mxu0 %v1209
      %1219 = vmatmul.bf16.gmra.mxu0 %v1206
      %v1220 = vpop.f32.mrf.mxu0
      %v1221 = vadd.f32 0.0, %v1220
      %v1222 = vpop.f32.mrf.mxu0
      %1223 = vdwg.mxu0
      %v1225 = vsel %vm1128, %v619, 0
      %v1228 = vsel %vm1128, %v877, 0
      %1230 = vmatpush.bf16.xpose.msra.mxu0 0
      %1231 = vmatpush.bf16.xpose.msra.mxu0 0
      %1232 = vmatpush.bf16.xpose.msra.mxu0 0
      %1233 = vmatpush.bf16.xpose.msra.mxu0 0
      %1234 = vmatpush.bf16.xpose.msra.mxu0 0
      %1235 = vmatpush.bf16.xpose.msra.mxu0 0
      %1236 = vmatpush.bf16.xpose.msra.mxu0 0
      %1237 = vmatpush.bf16.xpose.msra.mxu0 %v1228
      %1238 = vmatmul.bf16.gmra.mxu0 %v1225
      %v1239 = vpop.f32.mrf.mxu0
      %v1240 = vadd.f32 0.0, %v1239
      %v1241 = vpop.f32.mrf.mxu0
      %1242 = vdwg.mxu0
      %v1244 = vsel %vm1128, %v622, 0
      %v1247 = vsel %vm1128, %v880, 0
      %1249 = vmatpush.bf16.xpose.msra.mxu0 0
      %1250 = vmatpush.bf16.xpose.msra.mxu0 0
      %1251 = vmatpush.bf16.xpose.msra.mxu0 0
      %1252 = vmatpush.bf16.xpose.msra.mxu0 0
      %1253 = vmatpush.bf16.xpose.msra.mxu0 0
      %1254 = vmatpush.bf16.xpose.msra.mxu0 0
      %1255 = vmatpush.bf16.xpose.msra.mxu0 0
      %1256 = vmatpush.bf16.xpose.msra.mxu0 %v1247
      %1257 = vmatmul.bf16.gmra.mxu0 %v1244
      %v1258 = vpop.f32.mrf.mxu0
      %v1259 = vadd.f32 0.0, %v1258
      %v1260 = vpop.f32.mrf.mxu0
      %1261 = vdwg.mxu0
      %v1263 = vsel %vm1128, %v625, 0
      %v1266 = vsel %vm1128, %v883, 0
      %1268 = vmatpush.bf16.xpose.msra.mxu0 0
      %1269 = vmatpush.bf16.xpose.msra.mxu0 0
      %1270 = vmatpush.bf16.xpose.msra.mxu0 0
      %1271 = vmatpush.bf16.xpose.msra.mxu0 0
      %1272 = vmatpush.bf16.xpose.msra.mxu0 0
      %1273 = vmatpush.bf16.xpose.msra.mxu0 0
      %1274 = vmatpush.bf16.xpose.msra.mxu0 0
      %1275 = vmatpush.bf16.xpose.msra.mxu0 %v1266
      %1276 = vmatmul.bf16.gmra.mxu0 %v1263
      %v1277 = vpop.f32.mrf.mxu0
      %v1278 = vadd.f32 0.0, %v1277
      %v1279 = vpop.f32.mrf.mxu0
      %1280 = vdwg.mxu0
      %v1281 = vsel %vm328, 1, 0
      %v1282 = vsel %vm329, 1, 0
      %vm1283 = vcmp.eq.s32.totalorder %v1281, 1
      %vm1284 = vcmp.eq.s32.totalorder %v1282, 1
      %v1285 = vsel %vm1283, %v1145, -2.3819763e+38
      %v1286 = vsel %vm1283, %v1164, -2.3819763e+38
      %v1287 = vsel %vm1283, %v1183, -2.3819763e+38
      %v1288 = vsel %vm1283, %v1202, -2.3819763e+38
      %v1289 = vsel %vm1284, %v1221, -2.3819763e+38
      %v1290 = vsel %vm1284, %v1240, -2.3819763e+38
      %v1291 = vsel %vm1284, %v1259, -2.3819763e+38
      %v1292 = vsel %vm1284, %v1278, -2.3819763e+38
      %v1293 = vsel %vm1128, %v1285, -inf
      %1294 = vmax.xlane.f32.xlu0 %v1293
      %v1295 = vpop.xlane.xlu0 %1294
      %v1296 = vsel %vm1128, %v1286, -inf
      %1297 = vmax.xlane.f32.xlu0 %v1296
      %v1298 = vpop.xlane.xlu0 %1297
      %v1299 = vsel %vm1128, %v1287, -inf
      %1300 = vmax.xlane.f32.xlu0 %v1299
      %v1301 = vpop.xlane.xlu0 %1300
      %v1302 = vsel %vm1128, %v1288, -inf
      %1303 = vmax.xlane.f32.xlu0 %v1302
      %v1304 = vpop.xlane.xlu0 %1303
      %v1305 = vsel %vm1128, %v1289, -inf
      %1306 = vmax.xlane.f32.xlu0 %v1305
      %v1307 = vpop.xlane.xlu0 %1306
      %v1308 = vsel %vm1128, %v1290, -inf
      %1309 = vmax.xlane.f32.xlu0 %v1308
      %v1310 = vpop.xlane.xlu0 %1309
      %v1311 = vsel %vm1128, %v1291, -inf
      %1312 = vmax.xlane.f32.xlu0 %v1311
      %v1313 = vpop.xlane.xlu0 %1312
      %v1314 = vsel %vm1128, %v1292, -inf
      %1315 = vmax.xlane.f32.xlu0 %v1314
      %v1316 = vpop.xlane.xlu0 %1315
      %v1317 = vsub.f32 %v1285, %v1295
      %v1318 = vsub.f32 %v1286, %v1298
      %v1319 = vsub.f32 %v1287, %v1301
      %v1320 = vsub.f32 %v1288, %v1304
      %v1321 = vsub.f32 %v1289, %v1307
      %v1322 = vsub.f32 %v1290, %v1310
      %v1323 = vsub.f32 %v1291, %v1313
      %v1324 = vsub.f32 %v1292, %v1316
      %v1325 = vmul.f32 %v1317, 1.442695
      %v1326 = vpow.pop %v1325
      %v1327 = vmul.f32 %v1318, 1.442695
      %v1328 = vpow.pop %v1327
      %v1329 = vmul.f32 %v1319, 1.442695
      %v1330 = vpow.pop %v1329
      %v1331 = vmul.f32 %v1320, 1.442695
      %v1332 = vpow.pop %v1331
      %v1333 = vmul.f32 %v1321, 1.442695
      %v1334 = vpow.pop %v1333
      %v1335 = vmul.f32 %v1322, 1.442695
      %v1336 = vpow.pop %v1335
      %v1337 = vmul.f32 %v1323, 1.442695
      %v1338 = vpow.pop %v1337
      %v1339 = vmul.f32 %v1324, 1.442695
      %v1340 = vpow.pop %v1339
      %v1341 = vsel %vm1128, %v1326, 0.0
      %1342 = vadd.xlane.f32.xlu0 %v1341
      %v1343 = vpop.xlane.xlu0 %1342
      %v1344 = vsel %vm1128, %v1328, 0.0
      %1345 = vadd.xlane.f32.xlu0 %v1344
      %v1346 = vpop.xlane.xlu0 %1345
      %v1347 = vsel %vm1128, %v1330, 0.0
      %1348 = vadd.xlane.f32.xlu0 %v1347
      %v1349 = vpop.xlane.xlu0 %1348
      %v1350 = vsel %vm1128, %v1332, 0.0
      %1351 = vadd.xlane.f32.xlu0 %v1350
      %v1352 = vpop.xlane.xlu0 %1351
      %v1353 = vsel %vm1128, %v1334, 0.0
      %1354 = vadd.xlane.f32.xlu0 %v1353
      %v1355 = vpop.xlane.xlu0 %1354
      %v1356 = vsel %vm1128, %v1336, 0.0
      %1357 = vadd.xlane.f32.xlu0 %v1356
      %v1358 = vpop.xlane.xlu0 %1357
      %v1359 = vsel %vm1128, %v1338, 0.0
      %1360 = vadd.xlane.f32.xlu0 %v1359
      %v1361 = vpop.xlane.xlu0 %1360
      %v1362 = vsel %vm1128, %v1340, 0.0
      %1363 = vadd.xlane.f32.xlu0 %v1362
      %v1364 = vpop.xlane.xlu0 %1363
      %v1365 = vrcp.pop %v1343
      %v1366 = vmul.f32 %v1343, %v1365
      %v1367 = vsub.f32 1.0, %v1366
      %v1368 = vmul.f32 %v1365, %v1367
      %v1369 = vadd.f32 %v1365, %v1368
      %vm1370 = vweird.f32 %v1343
      %vm1371 = vweird.f32 %v1365
      %vm1372 = vmor %vm1370, %vm1371
      %v1373 = vsel %vm1372, %v1365, %v1369
      %v1374 = vand.u32 2147483647, %v1343
      %vm1375 = vcmp.eq.f32.partialorder %v1374, 8.507059e+37
      %v1376 = vand.u32 %v1343, 2147483648
      %v1377 = vor.u32 1.1754944e-38, %v1376
      %v1378 = vsel %vm1375, %v1377, %v1373
      %v1379 = vmul.f32 %v1326, %v1378
      %v1380 = vrcp.pop %v1346
      %v1381 = vmul.f32 %v1346, %v1380
      %v1382 = vsub.f32 1.0, %v1381
      %v1383 = vmul.f32 %v1380, %v1382
      %v1384 = vadd.f32 %v1380, %v1383
      %vm1385 = vweird.f32 %v1346
      %vm1386 = vweird.f32 %v1380
      %vm1387 = vmor %vm1385, %vm1386
      %v1388 = vsel %vm1387, %v1380, %v1384
      %v1389 = vand.u32 2147483647, %v1346
      %vm1390 = vcmp.eq.f32.partialorder %v1389, 8.507059e+37
      %v1391 = vand.u32 %v1346, 2147483648
      %v1392 = vor.u32 1.1754944e-38, %v1391
      %v1393 = vsel %vm1390, %v1392, %v1388
      %v1394 = vmul.f32 %v1328, %v1393
      %v1395 = vrcp.pop %v1349
      %v1396 = vmul.f32 %v1349, %v1395
      %v1397 = vsub.f32 1.0, %v1396
      %v1398 = vmul.f32 %v1395, %v1397
      %v1399 = vadd.f32 %v1395, %v1398
      %vm1400 = vweird.f32 %v1349
      %vm1401 = vweird.f32 %v1395
      %vm1402 = vmor %vm1400, %vm1401
      %v1403 = vsel %vm1402, %v1395, %v1399
      %v1404 = vand.u32 2147483647, %v1349
      %vm1405 = vcmp.eq.f32.partialorder %v1404, 8.507059e+37
      %v1406 = vand.u32 %v1349, 2147483648
      %v1407 = vor.u32 1.1754944e-38, %v1406
      %v1408 = vsel %vm1405, %v1407, %v1403
      %v1409 = vmul.f32 %v1330, %v1408
      %v1410 = vrcp.pop %v1352
      %v1411 = vmul.f32 %v1352, %v1410
      %v1412 = vsub.f32 1.0, %v1411
      %v1413 = vmul.f32 %v1410, %v1412
      %v1414 = vadd.f32 %v1410, %v1413
      %vm1415 = vweird.f32 %v1352
      %vm1416 = vweird.f32 %v1410
      %vm1417 = vmor %vm1415, %vm1416
      %v1418 = vsel %vm1417, %v1410, %v1414
      %v1419 = vand.u32 2147483647, %v1352
      %vm1420 = vcmp.eq.f32.partialorder %v1419, 8.507059e+37
      %v1421 = vand.u32 %v1352, 2147483648
      %v1422 = vor.u32 1.1754944e-38, %v1421
      %v1423 = vsel %vm1420, %v1422, %v1418
      %v1424 = vmul.f32 %v1332, %v1423
      %v1425 = vrcp.pop %v1355
      %v1426 = vmul.f32 %v1355, %v1425
      %v1427 = vsub.f32 1.0, %v1426
      %v1428 = vmul.f32 %v1425, %v1427
      %v1429 = vadd.f32 %v1425, %v1428
      %vm1430 = vweird.f32 %v1355
      %vm1431 = vweird.f32 %v1425
      %vm1432 = vmor %vm1430, %vm1431
      %v1433 = vsel %vm1432, %v1425, %v1429
      %v1434 = vand.u32 2147483647, %v1355
      %vm1435 = vcmp.eq.f32.partialorder %v1434, 8.507059e+37
      %v1436 = vand.u32 %v1355, 2147483648
      %v1437 = vor.u32 1.1754944e-38, %v1436
      %v1438 = vsel %vm1435, %v1437, %v1433
      %v1439 = vmul.f32 %v1334, %v1438
      %v1440 = vrcp.pop %v1358
      %v1441 = vmul.f32 %v1358, %v1440
      %v1442 = vsub.f32 1.0, %v1441
      %v1443 = vmul.f32 %v1440, %v1442
      %v1444 = vadd.f32 %v1440, %v1443
      %vm1445 = vweird.f32 %v1358
      %vm1446 = vweird.f32 %v1440
      %vm1447 = vmor %vm1445, %vm1446
      %v1448 = vsel %vm1447, %v1440, %v1444
      %v1449 = vand.u32 2147483647, %v1358
      %vm1450 = vcmp.eq.f32.partialorder %v1449, 8.507059e+37
      %v1451 = vand.u32 %v1358, 2147483648
      %v1452 = vor.u32 1.1754944e-38, %v1451
      %v1453 = vsel %vm1450, %v1452, %v1448
      %v1454 = vmul.f32 %v1336, %v1453
      %v1455 = vrcp.pop %v1361
      %v1456 = vmul.f32 %v1361, %v1455
      %v1457 = vsub.f32 1.0, %v1456
      %v1458 = vmul.f32 %v1455, %v1457
      %v1459 = vadd.f32 %v1455, %v1458
      %vm1460 = vweird.f32 %v1361
      %vm1461 = vweird.f32 %v1455
      %vm1462 = vmor %vm1460, %vm1461
      %v1463 = vsel %vm1462, %v1455, %v1459
      %v1464 = vand.u32 2147483647, %v1361
      %vm1465 = vcmp.eq.f32.partialorder %v1464, 8.507059e+37
      %v1466 = vand.u32 %v1361, 2147483648
      %v1467 = vor.u32 1.1754944e-38, %v1466
      %v1468 = vsel %vm1465, %v1467, %v1463
      %v1469 = vmul.f32 %v1338, %v1468
      %v1470 = vrcp.pop %v1364
      %v1471 = vmul.f32 %v1364, %v1470
      %v1472 = vsub.f32 1.0, %v1471
      %v1473 = vmul.f32 %v1470, %v1472
      %v1474 = vadd.f32 %v1470, %v1473
      %vm1475 = vweird.f32 %v1364
      %vm1476 = vweird.f32 %v1470
      %vm1477 = vmor %vm1475, %vm1476
      %v1478 = vsel %vm1477, %v1470, %v1474
      %v1479 = vand.u32 2147483647, %v1364
      %vm1480 = vcmp.eq.f32.partialorder %v1479, 8.507059e+37
      %v1481 = vand.u32 %v1364, 2147483648
      %v1482 = vor.u32 1.1754944e-38, %v1481
      %v1483 = vsel %vm1480, %v1482, %v1478
      %v1484 = vmul.f32 %v1340, %v1483
      %v1485 = vpack.c.bf16 %v1379, %v1379
      %v1486 = vpack.c.bf16 %v1394, %v1394
      %v1487 = vpack.c.bf16 %v1409, %v1409
      %v1488 = vpack.c.bf16 %v1424, %v1424
      %v1489 = vpack.c.bf16 %v1439, %v1439
      %v1490 = vpack.c.bf16 %v1454, %v1454
      %v1491 = vpack.c.bf16 %v1469, %v1469
      %v1492 = vpack.c.bf16 %v1484, %v1484
      %v1494 = vsel %vm1128, %v1485, 0
      %vm1496 = vcmask 1043456
      %v1498 = vsel %vm1496, %v1106, 0
      %1500 = vmatpush.bf16.msra.mxu0 0
      %1501 = vmatpush.bf16.msra.mxu0 0
      %1502 = vmatpush.bf16.msra.mxu0 0
      %1503 = vmatpush.bf16.msra.mxu0 0
      %1504 = vmatpush.bf16.msra.mxu0 0
      %1505 = vmatpush.bf16.msra.mxu0 0
      %1506 = vmatpush.bf16.msra.mxu0 0
      %1507 = vmatpush.bf16.msra.mxu0 %v1498
      %1508 = vmatmul.bf16.gmra.mxu0 %v1494
      %v1509 = vpop.f32.mrf.mxu0
      %v1510 = vadd.f32 0.0, %v1509
      %v1511 = vpop.f32.mrf.mxu0
      %1512 = vdwg.mxu0
      %v1514 = vsel %vm1128, %v1486, 0
      %v1517 = vsel %vm1496, %v1109, 0
      %1519 = vmatpush.bf16.msra.mxu0 0
      %1520 = vmatpush.bf16.msra.mxu0 0
      %1521 = vmatpush.bf16.msra.mxu0 0
      %1522 = vmatpush.bf16.msra.mxu0 0
      %1523 = vmatpush.bf16.msra.mxu0 0
      %1524 = vmatpush.bf16.msra.mxu0 0
      %1525 = vmatpush.bf16.msra.mxu0 0
      %1526 = vmatpush.bf16.msra.mxu0 %v1517
      %1527 = vmatmul.bf16.gmra.mxu0 %v1514
      %v1528 = vpop.f32.mrf.mxu0
      %v1529 = vadd.f32 0.0, %v1528
      %v1530 = vpop.f32.mrf.mxu0
      %1531 = vdwg.mxu0
      %v1533 = vsel %vm1128, %v1487, 0
      %v1536 = vsel %vm1496, %v1112, 0
      %1538 = vmatpush.bf16.msra.mxu0 0
      %1539 = vmatpush.bf16.msra.mxu0 0
      %1540 = vmatpush.bf16.msra.mxu0 0
      %1541 = vmatpush.bf16.msra.mxu0 0
      %1542 = vmatpush.bf16.msra.mxu0 0
      %1543 = vmatpush.bf16.msra.mxu0 0
      %1544 = vmatpush.bf16.msra.mxu0 0
      %1545 = vmatpush.bf16.msra.mxu0 %v1536
      %1546 = vmatmul.bf16.gmra.mxu0 %v1533
      %v1547 = vpop.f32.mrf.mxu0
      %v1548 = vadd.f32 0.0, %v1547
      %v1549 = vpop.f32.mrf.mxu0
      %1550 = vdwg.mxu0
      %v1552 = vsel %vm1128, %v1488, 0
      %v1555 = vsel %vm1496, %v1115, 0
      %1557 = vmatpush.bf16.msra.mxu0 0
      %1558 = vmatpush.bf16.msra.mxu0 0
      %1559 = vmatpush.bf16.msra.mxu0 0
      %1560 = vmatpush.bf16.msra.mxu0 0
      %1561 = vmatpush.bf16.msra.mxu0 0
      %1562 = vmatpush.bf16.msra.mxu0 0
      %1563 = vmatpush.bf16.msra.mxu0 0
      %1564 = vmatpush.bf16.msra.mxu0 %v1555
      %1565 = vmatmul.bf16.gmra.mxu0 %v1552
      %v1566 = vpop.f32.mrf.mxu0
      %v1567 = vadd.f32 0.0, %v1566
      %v1568 = vpop.f32.mrf.mxu0
      %1569 = vdwg.mxu0
      %v1571 = vsel %vm1128, %v1489, 0
      %v1574 = vsel %vm1496, %v1118, 0
      %1576 = vmatpush.bf16.msra.mxu0 0
      %1577 = vmatpush.bf16.msra.mxu0 0
      %1578 = vmatpush.bf16.msra.mxu0 0
      %1579 = vmatpush.bf16.msra.mxu0 0
      %1580 = vmatpush.bf16.msra.mxu0 0
      %1581 = vmatpush.bf16.msra.mxu0 0
      %1582 = vmatpush.bf16.msra.mxu0 0
      %1583 = vmatpush.bf16.msra.mxu0 %v1574
      %1584 = vmatmul.bf16.gmra.mxu0 %v1571
      %v1585 = vpop.f32.mrf.mxu0
      %v1586 = vadd.f32 0.0, %v1585
      %v1587 = vpop.f32.mrf.mxu0
      %1588 = vdwg.mxu0
      %v1590 = vsel %vm1128, %v1490, 0
      %v1593 = vsel %vm1496, %v1121, 0
      %1595 = vmatpush.bf16.msra.mxu0 0
      %1596 = vmatpush.bf16.msra.mxu0 0
      %1597 = vmatpush.bf16.msra.mxu0 0
      %1598 = vmatpush.bf16.msra.mxu0 0
      %1599 = vmatpush.bf16.msra.mxu0 0
      %1600 = vmatpush.bf16.msra.mxu0 0
      %1601 = vmatpush.bf16.msra.mxu0 0
      %1602 = vmatpush.bf16.msra.mxu0 %v1593
      %1603 = vmatmul.bf16.gmra.mxu0 %v1590
      %v1604 = vpop.f32.mrf.mxu0
      %v1605 = vadd.f32 0.0, %v1604
      %v1606 = vpop.f32.mrf.mxu0
      %1607 = vdwg.mxu0
      %v1609 = vsel %vm1128, %v1491, 0
      %v1612 = vsel %vm1496, %v1124, 0
      %1614 = vmatpush.bf16.msra.mxu0 0
      %1615 = vmatpush.bf16.msra.mxu0 0
      %1616 = vmatpush.bf16.msra.mxu0 0
      %1617 = vmatpush.bf16.msra.mxu0 0
      %1618 = vmatpush.bf16.msra.mxu0 0
      %1619 = vmatpush.bf16.msra.mxu0 0
      %1620 = vmatpush.bf16.msra.mxu0 0
      %1621 = vmatpush.bf16.msra.mxu0 %v1612
      %1622 = vmatmul.bf16.gmra.mxu0 %v1609
      %v1623 = vpop.f32.mrf.mxu0
      %v1624 = vadd.f32 0.0, %v1623
      %v1625 = vpop.f32.mrf.mxu0
      %1626 = vdwg.mxu0
      %v1628 = vsel %vm1128, %v1492, 0
      %v1631 = vsel %vm1496, %v1127, 0
      %1633 = vmatpush.bf16.msra.mxu0 0
      %1634 = vmatpush.bf16.msra.mxu0 0
      %1635 = vmatpush.bf16.msra.mxu0 0
      %1636 = vmatpush.bf16.msra.mxu0 0
      %1637 = vmatpush.bf16.msra.mxu0 0
      %1638 = vmatpush.bf16.msra.mxu0 0
      %1639 = vmatpush.bf16.msra.mxu0 0
      %1640 = vmatpush.bf16.msra.mxu0 %v1631
      %1641 = vmatmul.bf16.gmra.mxu0 %v1628
      %v1642 = vpop.f32.mrf.mxu0
      %v1643 = vadd.f32 0.0, %v1642
      %v1644 = vpop.f32.mrf.mxu0
      %1645 = vdwg.mxu0
      %v1646 = vrot.slane %v1548, 4
      %vm1647 = vcmask 1047556
      %v1648 = vsel %vm1647, %v1646, %v1510
      %v1649 = vrot.slane %v1510, 4
      %v1650 = vsel %vm1647, %v1548, %v1649
      %v1652 = vunpack.c.l.s4 1983009808
      %v1653 = vunpack.c.0.s8 %v1652
      %v1654 = vperm.slane %v1648, %v1653
      %v1656 = vunpack.c.l.s4 1983009808
      %v1657 = vunpack.c.0.s8 %v1656
      %v1658 = vperm.slane %v1650, %v1657
      %v1659 = vrot.slane %v1567, 4
      %v1660 = vsel %vm1647, %v1659, %v1529
      %v1661 = vrot.slane %v1529, 4
      %v1662 = vsel %vm1647, %v1567, %v1661
      %v1664 = vunpack.c.l.s4 1983009808
      %v1665 = vunpack.c.0.s8 %v1664
      %v1666 = vperm.slane %v1660, %v1665
      %v1668 = vunpack.c.l.s4 1983009808
      %v1669 = vunpack.c.0.s8 %v1668
      %v1670 = vperm.slane %v1662, %v1669
      %v1671 = vrot.slane %v1666, 4
      %v1672 = vsel %vm1647, %v1671, %v1654
      %v1673 = vrot.slane %v1654, 4
      %v1674 = vsel %vm1647, %v1666, %v1673
      %v1676 = vunpack.c.l.s4 1934713408
      %v1677 = vunpack.c.0.s8 %v1676
      %v1678 = vperm.slane %v1672, %v1677
      %v1680 = vunpack.c.l.s4 1934713408
      %v1681 = vunpack.c.0.s8 %v1680
      %v1682 = vperm.slane %v1674, %v1681
      %v1683 = vrot.slane %v1670, 4
      %v1684 = vsel %vm1647, %v1683, %v1658
      %v1685 = vrot.slane %v1658, 4
      %v1686 = vsel %vm1647, %v1670, %v1685
      %v1688 = vunpack.c.l.s4 1934713408
      %v1689 = vunpack.c.0.s8 %v1688
      %v1690 = vperm.slane %v1684, %v1689
      %v1692 = vunpack.c.l.s4 1934713408
      %v1693 = vunpack.c.0.s8 %v1692
      %v1694 = vperm.slane %v1686, %v1693
      %v1695 = vrot.slane %v1678, 4
      %v1696 = vsel %vm1647, 0.0, %v1695
      %v1697 = vrot.slane %v1682, 4
      %v1698 = vsel %vm1647, 0.0, %v1697
      %v1699 = vrot.slane %v1690, 4
      %v1700 = vsel %vm1647, 0.0, %v1699
      %v1701 = vrot.slane %v1694, 4
      %v1702 = vsel %vm1647, 0.0, %v1701
      %v1703 = vrot.slane %v1624, 4
      %v1704 = vsel %vm1647, %v1703, %v1586
      %v1705 = vrot.slane %v1586, 4
      %v1706 = vsel %vm1647, %v1624, %v1705
      %v1708 = vunpack.c.l.s4 1983009808
      %v1709 = vunpack.c.0.s8 %v1708
      %v1710 = vperm.slane %v1704, %v1709
      %v1712 = vunpack.c.l.s4 1983009808
      %v1713 = vunpack.c.0.s8 %v1712
      %v1714 = vperm.slane %v1706, %v1713
      %v1715 = vrot.slane %v1643, 4
      %v1716 = vsel %vm1647, %v1715, %v1605
      %v1717 = vrot.slane %v1605, 4
      %v1718 = vsel %vm1647, %v1643, %v1717
      %v1720 = vunpack.c.l.s4 1983009808
      %v1721 = vunpack.c.0.s8 %v1720
      %v1722 = vperm.slane %v1716, %v1721
      %v1724 = vunpack.c.l.s4 1983009808
      %v1725 = vunpack.c.0.s8 %v1724
      %v1726 = vperm.slane %v1718, %v1725
      %v1727 = vrot.slane %v1722, 4
      %v1728 = vsel %vm1647, %v1727, %v1710
      %v1729 = vrot.slane %v1710, 4
      %v1730 = vsel %vm1647, %v1722, %v1729
      %v1732 = vunpack.c.l.s4 1934713408
      %v1733 = vunpack.c.0.s8 %v1732
      %v1734 = vperm.slane %v1728, %v1733
      %v1736 = vunpack.c.l.s4 1934713408
      %v1737 = vunpack.c.0.s8 %v1736
      %v1738 = vperm.slane %v1730, %v1737
      %v1739 = vrot.slane %v1726, 4
      %v1740 = vsel %vm1647, %v1739, %v1714
      %v1741 = vrot.slane %v1714, 4
      %v1742 = vsel %vm1647, %v1726, %v1741
      %v1744 = vunpack.c.l.s4 1934713408
      %v1745 = vunpack.c.0.s8 %v1744
      %v1746 = vperm.slane %v1740, %v1745
      %v1748 = vunpack.c.l.s4 1934713408
      %v1749 = vunpack.c.0.s8 %v1748
      %v1750 = vperm.slane %v1742, %v1749
      %v1751 = vrot.slane %v1734, 4
      %v1752 = vsel %vm1647, 0.0, %v1751
      %v1753 = vrot.slane %v1738, 4
      %v1754 = vsel %vm1647, 0.0, %v1753
      %v1755 = vrot.slane %v1746, 4
      %v1756 = vsel %vm1647, 0.0, %v1755
      %v1757 = vrot.slane %v1750, 4
      %v1758 = vsel %vm1647, 0.0, %v1757
      %v1759 = vsel %vm1647, %v1697, %v1678
      %v1761 = vunpack.c.l.s4 1983009808
      %v1762 = vunpack.c.0.s8 %v1761
      %v1763 = vperm.slane %v1759, %v1762
      %v1764 = vrot.slane %v1698, 4
      %v1765 = vsel %vm1647, %v1764, %v1696
      %v1767 = vunpack.c.l.s4 1983009808
      %v1768 = vunpack.c.0.s8 %v1767
      %v1769 = vperm.slane %v1765, %v1768
      %v1770 = vsel %vm1647, %v1701, %v1690
      %v1772 = vunpack.c.l.s4 1983009808
      %v1773 = vunpack.c.0.s8 %v1772
      %v1774 = vperm.slane %v1770, %v1773
      %v1775 = vrot.slane %v1702, 4
      %v1776 = vsel %vm1647, %v1775, %v1700
      %v1778 = vunpack.c.l.s4 1983009808
      %v1779 = vunpack.c.0.s8 %v1778
      %v1780 = vperm.slane %v1776, %v1779
      %v1781 = vrot.slane %v1769, 4
      %v1782 = vsel %vm1647, %v1781, %v1763
      %v1783 = vrot.slane %v1763, 4
      %v1784 = vsel %vm1647, %v1769, %v1783
      %v1786 = vunpack.c.l.s4 1934713408
      %v1787 = vunpack.c.0.s8 %v1786
      %v1788 = vperm.slane %v1782, %v1787
      %v1790 = vunpack.c.l.s4 1934713408
      %v1791 = vunpack.c.0.s8 %v1790
      %v1792 = vperm.slane %v1784, %v1791
      %v1793 = vrot.slane %v1780, 4
      %v1794 = vsel %vm1647, %v1793, %v1774
      %v1795 = vrot.slane %v1774, 4
      %v1796 = vsel %vm1647, %v1780, %v1795
      %v1798 = vunpack.c.l.s4 1934713408
      %v1799 = vunpack.c.0.s8 %v1798
      %v1800 = vperm.slane %v1794, %v1799
      %v1802 = vunpack.c.l.s4 1934713408
      %v1803 = vunpack.c.0.s8 %v1802
      %v1804 = vperm.slane %v1796, %v1803
      %v1805 = vrot.slane %v1800, 4
      %v1806 = vsel %vm1647, %v1805, %v1788
      %v1807 = vrot.slane %v1788, 4
      %v1808 = vsel %vm1647, %v1800, %v1807
      %v1809 = vrot.slane %v1804, 4
      %v1810 = vsel %vm1647, %v1809, %v1792
      %v1811 = vrot.slane %v1792, 4
      %v1812 = vsel %vm1647, %v1804, %v1811
      %v1813 = vsel %vm1647, %v1753, %v1734
      %v1815 = vunpack.c.l.s4 1983009808
      %v1816 = vunpack.c.0.s8 %v1815
      %v1817 = vperm.slane %v1813, %v1816
      %v1818 = vrot.slane %v1754, 4
      %v1819 = vsel %vm1647, %v1818, %v1752
      %v1821 = vunpack.c.l.s4 1983009808
      %v1822 = vunpack.c.0.s8 %v1821
      %v1823 = vperm.slane %v1819, %v1822
      %v1824 = vsel %vm1647, %v1757, %v1746
      %v1826 = vunpack.c.l.s4 1983009808
      %v1827 = vunpack.c.0.s8 %v1826
      %v1828 = vperm.slane %v1824, %v1827
      %v1829 = vrot.slane %v1758, 4
      %v1830 = vsel %vm1647, %v1829, %v1756
      %v1832 = vunpack.c.l.s4 1983009808
      %v1833 = vunpack.c.0.s8 %v1832
      %v1834 = vperm.slane %v1830, %v1833
      %v1835 = vrot.slane %v1823, 4
      %v1836 = vsel %vm1647, %v1835, %v1817
      %v1837 = vrot.slane %v1817, 4
      %v1838 = vsel %vm1647, %v1823, %v1837
      %v1840 = vunpack.c.l.s4 1934713408
      %v1841 = vunpack.c.0.s8 %v1840
      %v1842 = vperm.slane %v1836, %v1841
      %v1844 = vunpack.c.l.s4 1934713408
      %v1845 = vunpack.c.0.s8 %v1844
      %v1846 = vperm.slane %v1838, %v1845
      %v1847 = vrot.slane %v1834, 4
      %v1848 = vsel %vm1647, %v1847, %v1828
      %v1849 = vrot.slane %v1828, 4
      %v1850 = vsel %vm1647, %v1834, %v1849
      %v1852 = vunpack.c.l.s4 1934713408
      %v1853 = vunpack.c.0.s8 %v1852
      %v1854 = vperm.slane %v1848, %v1853
      %v1856 = vunpack.c.l.s4 1934713408
      %v1857 = vunpack.c.0.s8 %v1856
      %v1858 = vperm.slane %v1850, %v1857
      %v1859 = vrot.slane %v1854, 4
      %v1860 = vsel %vm1647, %v1859, %v1842
      %v1861 = vrot.slane %v1842, 4
      %v1862 = vsel %vm1647, %v1854, %v1861
      %v1863 = vrot.slane %v1858, 4
      %v1864 = vsel %vm1647, %v1863, %v1846
      %v1865 = vrot.slane %v1846, 4
      %v1866 = vsel %vm1647, %v1858, %v1865
      %1869 = vrot.lane.b32.xlu0 %v1808, 8
      %v1870 = vpop.permute.xlu0 %1869
      %1871 = vrot.lane.b32.xlu0 %v1862, 8
      %v1872 = vpop.permute.xlu0 %1871
      %1877 = vrot.lane.b32.xlu0 %v1810, 16
      %v1878 = vpop.permute.xlu0 %1877
      %1879 = vrot.lane.b32.xlu0 %v1864, 16
      %v1880 = vpop.permute.xlu0 %1879
      %1885 = vrot.lane.b32.xlu0 %v1812, 24
      %v1886 = vpop.permute.xlu0 %1885
      %1887 = vrot.lane.b32.xlu0 %v1866, 24
      %v1888 = vpop.permute.xlu0 %1887
      %v1891 = vsel %vm1128, %v1806, %v1870
      %v1892 = vsel %vm1128, %v1860, %v1872
      %vm1893 = vcmask 130048
      %v1894 = vsel %vm1893, %v1891, %v1878
      %v1895 = vsel %vm1893, %v1892, %v1880
      %vm1896 = vcmask 195584
      %v1897 = vsel %vm1896, %v1894, %v1886
      %v1898 = vsel %vm1896, %v1895, %v1888
      %v1899 = vpack.c.bf16 %v1898, %v1897
      %v1900 = vld [vmem:[%s6] sm:$0xf]
      %v1901 = vld [vmem:[%s6 + $0x4] sm:$0xf]
      %v1902 = vld [vmem:[%s6 + $0x8] sm:$0xf]
      %v1903 = vld [vmem:[%s6 + $0xc] sm:$0xf]
      %v1904 = vld [vmem:[#allocation13] sm:$0x1]
      %v1906 = vperm.slane %v1904, 0
      %v1912 = vunpack.c.l.b16 %v1900
      %v1913 = vunpack.c.l.b16 %v1901
      %v1914 = vunpack.c.l.b16 %v1902
      %v1915 = vunpack.c.l.b16 %v1903
      %v1916 = vpack.c.b16 %v1913, %v1912
      %v1917 = vpack.c.b16 %v1915, %v1914
      %v1921 = vsel %vm359, %v1899, 0
      %1923 = vmatpush.bf16.msra.mxu0 0
      %1924 = vmatpush.bf16.msra.mxu0 0
      %1925 = vmatpush.bf16.msra.mxu0 0
      %1926 = vmatpush.bf16.msra.mxu0 0
      %1927 = vmatpush.bf16.msra.mxu0 0
      %1928 = vmatpush.bf16.msra.mxu0 0
      %1929 = vmatpush.bf16.msra.mxu0 %v1917
      %1930 = vmatpush.bf16.msra.mxu0 %v1916
      %1931 = vmatmul.bf16.gmra.mxu0 %v1921
      %v1932 = vpop.f32.mrf.mxu0
      %v1933 = vadd.f32 %v1906, %v1932
      %v1934 = vpop.f32.mrf.mxu0
      %v1935 = vadd.f32 %v1906, %v1934
      %1936 = vdwg.mxu0
      %v1937 = vadd.f32 %v1933, %v307
      %v1938 = vadd.f32 %v1935, %v308
      %v1939 = vld [vmem:[#allocation15] sm:$0x3]
      %v1940 = vsel %vm359, %v1937, 0.0
      %1941 = vadd.xlane.f32.xlu0 %v1940
      %v1942 = vpop.xlane.xlu0 %1941
      %v1943 = vsel %vm359, %v1938, 0.0
      %1944 = vadd.xlane.f32.xlu0 %v1943
      %v1945 = vpop.xlane.xlu0 %1944
      %v1946 = vrcp.pop 32.0
      %v1947 = vmul.f32 32.0, %v1946
      %v1948 = vsub.f32 1.0, %v1947
      %v1949 = vmul.f32 %v1946, %v1948
      %v1950 = vadd.f32 %v1946, %v1949
      %vm1951 = vweird.f32 %v1946
      %v1952 = vsel %vm1951, %v1946, %v1950
      %v1953 = vmul.f32 %v1942, %v1952
      %v1954 = vmul.f32 %v1945, %v1952
      %v1955 = vsub.f32 %v1937, %v1953
      %v1956 = vsub.f32 %v1938, %v1954
      %v1957 = vmul.f32 %v1955, %v1955
      %v1958 = vmul.f32 %v1956, %v1956
      %v1959 = vsel %vm359, %v1957, 0.0
      %1960 = vadd.xlane.f32.xlu0 %v1959
      %v1961 = vpop.xlane.xlu0 %1960
      %v1962 = vsel %vm359, %v1958, 0.0
      %1963 = vadd.xlane.f32.xlu0 %v1962
      %v1964 = vpop.xlane.xlu0 %1963
      %v1965 = vmul.f32 %v1961, %v1952
      %v1966 = vmul.f32 %v1964, %v1952
      %v1967 = vadd.f32 %v1965, 1e-05
      %v1968 = vadd.f32 %v1966, 1e-05
      %v1969 = vrsqrt.pop %v1967
      %v1970 = vmul.f32 %v1969, %v1967
      %v1971 = vmul.f32 %v1970, %v1969
      %v1972 = vmul.f32 0.5, %v1971
      %v1973 = vsub.f32 1.5, %v1972
      %v1974 = vmul.f32 %v1969, %v1973
      %vm1975 = vweird.f32 %v1967
      %vm1976 = vweird.f32 %v1969
      %vm1977 = vmor %vm1975, %vm1976
      %v1978 = vsel %vm1977, %v1969, %v1974
      %v1979 = vrsqrt.pop %v1968
      %v1980 = vmul.f32 %v1979, %v1968
      %v1981 = vmul.f32 %v1980, %v1979
      %v1982 = vmul.f32 0.5, %v1981
      %v1983 = vsub.f32 1.5, %v1982
      %v1984 = vmul.f32 %v1979, %v1983
      %vm1985 = vweird.f32 %v1968
      %vm1986 = vweird.f32 %v1979
      %vm1987 = vmor %vm1985, %vm1986
      %v1988 = vsel %vm1987, %v1979, %v1984
      %v1989 = vmul.f32 %v1955, %v1978
      %v1990 = vmul.f32 %v1956, %v1988
      %v1991 = vperm.slane %v1939, 0
      %v1992 = vmul.f32 %v1989, %v1991
      %v1993 = vmul.f32 %v1990, %v1991
      %v1994 = vperm.slane %v1939, 1
      %v1995 = vadd.f32 %v1992, %v1994
      %v1996 = vadd.f32 %v1993, %v1994
      %v1997 = vpack.c.bf16 %v1996, %v1995
      %v1998 = vld [vmem:[%s9] sm:$0xf]
      %v1999 = vld [vmem:[%s9 + $0x4] sm:$0xf]
      %v2000 = vld [vmem:[%s9 + $0x8] sm:$0xf]
      %v2001 = vld [vmem:[%s9 + $0xc] sm:$0xf]
      %v2002 = vld [vmem:[#allocation16] sm:$0x1]
      %v2004 = vperm.slane %v2002, 0
      %v2010 = vunpack.c.l.b16 %v1998
      %v2011 = vunpack.c.l.b16 %v1999
      %v2012 = vunpack.c.l.b16 %v2000
      %v2013 = vunpack.c.l.b16 %v2001
      %v2014 = vpack.c.b16 %v2011, %v2010
      %v2015 = vpack.c.b16 %v2013, %v2012
      %v2019 = vsel %vm359, %v1997, 0
      %2021 = vmatpush.bf16.msra.mxu0 0
      %2022 = vmatpush.bf16.msra.mxu0 0
      %2023 = vmatpush.bf16.msra.mxu0 0
      %2024 = vmatpush.bf16.msra.mxu0 0
      %2025 = vmatpush.bf16.msra.mxu0 0
      %2026 = vmatpush.bf16.msra.mxu0 0
      %2027 = vmatpush.bf16.msra.mxu0 %v2015
      %2028 = vmatpush.bf16.msra.mxu0 %v2014
      %2029 = vmatmul.bf16.gmra.mxu0 %v2019
      %v2030 = vpop.f32.mrf.mxu0
      %v2031 = vadd.f32 %v2004, %v2030
      %v2032 = vpop.f32.mrf.mxu0
      %v2033 = vadd.f32 %v2004, %v2032
      %2034 = vdwg.mxu0
      %v2035 = vmul.f32 %v2031, 0.35355338
      %v2036 = vmul.f32 %v2033, 0.35355338
      %v2037 = vpack.c.bf16 %v2035, %v2035
      %v2038 = vpack.c.bf16 %v2036, %v2036
      %v2039 = vld [vmem:[#allocation18] sm:$0xf]
      %v2040 = vld [vmem:[#allocation18 + $0x4] sm:$0xf]
      %v2041 = vld [vmem:[#allocation18 + $0x8] sm:$0xf]
      %v2042 = vld [vmem:[#allocation18 + $0xc] sm:$0xf]
      %v2043 = vld [vmem:[#allocation19] sm:$0x1]
      %v2045 = vperm.slane %v2043, 0
      %v2049 = vunpack.c.l.b16 %v309
      %v2050 = vunpack.c.l.b16 %v310
      %v2051 = vpack.c.b16 %v2050, %v2049
      %v2056 = vunpack.c.l.b16 %v2039
      %v2057 = vunpack.c.l.b16 %v2040
      %v2058 = vunpack.c.l.b16 %v2041
      %v2059 = vunpack.c.l.b16 %v2042
      %v2060 = vpack.c.b16 %v2057, %v2056
      %v2061 = vpack.c.b16 %v2059, %v2058
      %v2065 = vsel %vm359, %v2051, 0
      %2067 = vmatpush.bf16.msra.mxu0 0
      %2068 = vmatpush.bf16.msra.mxu0 0
      %2069 = vmatpush.bf16.msra.mxu0 0
      %2070 = vmatpush.bf16.msra.mxu0 0
      %2071 = vmatpush.bf16.msra.mxu0 0
      %2072 = vmatpush.bf16.msra.mxu0 0
      %2073 = vmatpush.bf16.msra.mxu0 %v2061
      %2074 = vmatpush.bf16.msra.mxu0 %v2060
      %2075 = vmatmul.bf16.gmra.mxu0 %v2065
      %v2076 = vpop.f32.mrf.mxu0
      %v2077 = vadd.f32 %v2045, %v2076
      %v2078 = vpop.f32.mrf.mxu0
      %v2079 = vadd.f32 %v2045, %v2078
      %2080 = vdwg.mxu0
      %v2081 = vpack.c.bf16 %v2077, %v2077
      %v2082 = vpack.c.bf16 %v2079, %v2079
      %2085 = vrot.lane.b32.xlu0 %v2037, 120
      %v2086 = vpop.permute.xlu0 %2085
      %2087 = vrot.lane.b32.xlu0 %v2038, 120
      %v2088 = vpop.permute.xlu0 %2087
      %2089 = vrot.lane.b32.xlu0 %v2037, 112
      %v2090 = vpop.permute.xlu0 %2089
      %2091 = vrot.lane.b32.xlu0 %v2038, 112
      %v2092 = vpop.permute.xlu0 %2091
      %2093 = vrot.lane.b32.xlu0 %v2037, 104
      %v2094 = vpop.permute.xlu0 %2093
      %2095 = vrot.lane.b32.xlu0 %v2038, 104
      %v2096 = vpop.permute.xlu0 %2095
      %v2099 = vpack.i.b16 %v2086, %v2037
      %v2100 = vshrl.u32 %v2037, 16
      %v2101 = vshrl.u32 %v2086, 16
      %v2102 = vpack.i.b16 %v2101, %v2100
      %v2105 = vpack.i.b16 %v2094, %v2090
      %v2106 = vshrl.u32 %v2090, 16
      %v2107 = vshrl.u32 %v2094, 16
      %v2108 = vpack.i.b16 %v2107, %v2106
      %v2111 = vpack.i.b16 %v2088, %v2038
      %v2112 = vshrl.u32 %v2038, 16
      %v2113 = vshrl.u32 %v2088, 16
      %v2114 = vpack.i.b16 %v2113, %v2112
      %v2117 = vpack.i.b16 %v2096, %v2092
      %v2118 = vshrl.u32 %v2092, 16
      %v2119 = vshrl.u32 %v2096, 16
      %v2120 = vpack.i.b16 %v2119, %v2118
      %v2123 = vunpack.c.l.s4 1983009808
      %v2124 = vunpack.c.0.s8 %v2123
      %v2125 = vperm.slane %v2099, %v2124
      %v2128 = vunpack.c.l.s4 1983009808
      %v2129 = vunpack.c.0.s8 %v2128
      %v2130 = vperm.slane %v2105, %v2129
      %v2131 = vrot.slane %v2130, 4
      %v2132 = vsel %vm432, %v2131, %v2125
      %v2133 = vrot.slane %v2125, 4
      %v2134 = vsel %vm432, %v2130, %v2133
      %v2136 = vunpack.c.l.s4 1934713408
      %v2137 = vunpack.c.0.s8 %v2136
      %v2138 = vperm.slane %v2132, %v2137
      %v2140 = vunpack.c.l.s4 1934713408
      %v2141 = vunpack.c.0.s8 %v2140
      %v2142 = vperm.slane %v2134, %v2141
      %v2143 = vrot.slane %v2138, 4
      %v2144 = vsel %vm432, 0, %v2143
      %v2145 = vrot.slane %v2142, 4
      %v2146 = vsel %vm432, 0, %v2145
      %v2149 = vunpack.c.l.s4 1983009808
      %v2150 = vunpack.c.0.s8 %v2149
      %v2151 = vperm.slane %v2102, %v2150
      %v2154 = vunpack.c.l.s4 1983009808
      %v2155 = vunpack.c.0.s8 %v2154
      %v2156 = vperm.slane %v2108, %v2155
      %v2157 = vrot.slane %v2156, 4
      %v2158 = vsel %vm432, %v2157, %v2151
      %v2159 = vrot.slane %v2151, 4
      %v2160 = vsel %vm432, %v2156, %v2159
      %v2162 = vunpack.c.l.s4 1934713408
      %v2163 = vunpack.c.0.s8 %v2162
      %v2164 = vperm.slane %v2158, %v2163
      %v2166 = vunpack.c.l.s4 1934713408
      %v2167 = vunpack.c.0.s8 %v2166
      %v2168 = vperm.slane %v2160, %v2167
      %v2169 = vrot.slane %v2164, 4
      %v2170 = vsel %vm432, 0, %v2169
      %v2171 = vrot.slane %v2168, 4
      %v2172 = vsel %vm432, 0, %v2171
      %v2175 = vunpack.c.l.s4 1983009808
      %v2176 = vunpack.c.0.s8 %v2175
      %v2177 = vperm.slane %v2111, %v2176
      %v2180 = vunpack.c.l.s4 1983009808
      %v2181 = vunpack.c.0.s8 %v2180
      %v2182 = vperm.slane %v2117, %v2181
      %v2183 = vrot.slane %v2182, 4
      %v2184 = vsel %vm432, %v2183, %v2177
      %v2185 = vrot.slane %v2177, 4
      %v2186 = vsel %vm432, %v2182, %v2185
      %v2188 = vunpack.c.l.s4 1934713408
      %v2189 = vunpack.c.0.s8 %v2188
      %v2190 = vperm.slane %v2184, %v2189
      %v2192 = vunpack.c.l.s4 1934713408
      %v2193 = vunpack.c.0.s8 %v2192
      %v2194 = vperm.slane %v2186, %v2193
      %v2195 = vrot.slane %v2190, 4
      %v2196 = vsel %vm432, 0, %v2195
      %v2197 = vrot.slane %v2194, 4
      %v2198 = vsel %vm432, 0, %v2197
      %v2201 = vunpack.c.l.s4 1983009808
      %v2202 = vunpack.c.0.s8 %v2201
      %v2203 = vperm.slane %v2114, %v2202
      %v2206 = vunpack.c.l.s4 1983009808
      %v2207 = vunpack.c.0.s8 %v2206
      %v2208 = vperm.slane %v2120, %v2207
      %v2209 = vrot.slane %v2208, 4
      %v2210 = vsel %vm432, %v2209, %v2203
      %v2211 = vrot.slane %v2203, 4
      %v2212 = vsel %vm432, %v2208, %v2211
      %v2214 = vunpack.c.l.s4 1934713408
      %v2215 = vunpack.c.0.s8 %v2214
      %v2216 = vperm.slane %v2210, %v2215
      %v2218 = vunpack.c.l.s4 1934713408
      %v2219 = vunpack.c.0.s8 %v2218
      %v2220 = vperm.slane %v2212, %v2219
      %v2221 = vrot.slane %v2216, 4
      %v2222 = vsel %vm432, 0, %v2221
      %v2223 = vrot.slane %v2220, 4
      %v2224 = vsel %vm432, 0, %v2223
      %v2225 = vsel %vm432, %v2145, %v2138
      %v2227 = vunpack.c.l.s4 1983009808
      %v2228 = vunpack.c.0.s8 %v2227
      %v2229 = vperm.slane %v2225, %v2228
      %v2230 = vrot.slane %v2146, 4
      %v2231 = vsel %vm432, %v2230, %v2144
      %v2233 = vunpack.c.l.s4 1983009808
      %v2234 = vunpack.c.0.s8 %v2233
      %v2235 = vperm.slane %v2231, %v2234
      %v2236 = vrot.slane %v2235, 4
      %v2237 = vsel %vm432, %v2236, %v2229
      %v2239 = vunpack.c.l.s4 1934713408
      %v2240 = vunpack.c.0.s8 %v2239
      %v2241 = vperm.slane %v2237, %v2240
      %v2242 = vrot.slane %v2241, 4
      %v2243 = vsel %vm432, 0, %v2242
      %v2244 = vsel %vm432, %v2171, %v2164
      %v2246 = vunpack.c.l.s4 1983009808
      %v2247 = vunpack.c.0.s8 %v2246
      %v2248 = vperm.slane %v2244, %v2247
      %v2249 = vrot.slane %v2172, 4
      %v2250 = vsel %vm432, %v2249, %v2170
      %v2252 = vunpack.c.l.s4 1983009808
      %v2253 = vunpack.c.0.s8 %v2252
      %v2254 = vperm.slane %v2250, %v2253
      %v2255 = vrot.slane %v2254, 4
      %v2256 = vsel %vm432, %v2255, %v2248
      %v2258 = vunpack.c.l.s4 1934713408
      %v2259 = vunpack.c.0.s8 %v2258
      %v2260 = vperm.slane %v2256, %v2259
      %v2261 = vrot.slane %v2260, 4
      %v2262 = vsel %vm432, 0, %v2261
      %v2263 = vsel %vm432, %v2197, %v2190
      %v2265 = vunpack.c.l.s4 1983009808
      %v2266 = vunpack.c.0.s8 %v2265
      %v2267 = vperm.slane %v2263, %v2266
      %v2268 = vrot.slane %v2198, 4
      %v2269 = vsel %vm432, %v2268, %v2196
      %v2271 = vunpack.c.l.s4 1983009808
      %v2272 = vunpack.c.0.s8 %v2271
      %v2273 = vperm.slane %v2269, %v2272
      %v2274 = vrot.slane %v2273, 4
      %v2275 = vsel %vm432, %v2274, %v2267
      %v2277 = vunpack.c.l.s4 1934713408
      %v2278 = vunpack.c.0.s8 %v2277
      %v2279 = vperm.slane %v2275, %v2278
      %v2280 = vrot.slane %v2279, 4
      %v2281 = vsel %vm432, 0, %v2280
      %v2282 = vsel %vm432, %v2223, %v2216
      %v2284 = vunpack.c.l.s4 1983009808
      %v2285 = vunpack.c.0.s8 %v2284
      %v2286 = vperm.slane %v2282, %v2285
      %v2287 = vrot.slane %v2224, 4
      %v2288 = vsel %vm432, %v2287, %v2222
      %v2290 = vunpack.c.l.s4 1983009808
      %v2291 = vunpack.c.0.s8 %v2290
      %v2292 = vperm.slane %v2288, %v2291
      %v2293 = vrot.slane %v2292, 4
      %v2294 = vsel %vm432, %v2293, %v2286
      %v2296 = vunpack.c.l.s4 1934713408
      %v2297 = vunpack.c.0.s8 %v2296
      %v2298 = vperm.slane %v2294, %v2297
      %v2299 = vrot.slane %v2298, 4
      %v2300 = vsel %vm432, 0, %v2299
      %v2303 = vpack.i.b16 %v2260, %v2241
      %v2304 = vshrl.u32 %v2241, 16
      %v2305 = vshrl.u32 %v2260, 16
      %v2306 = vpack.i.b16 %v2305, %v2304
      %v2309 = vpack.i.b16 %v2262, %v2243
      %v2310 = vshrl.u32 %v2243, 16
      %v2311 = vshrl.u32 %v2262, 16
      %v2312 = vpack.i.b16 %v2311, %v2310
      %v2315 = vpack.i.b16 %v2298, %v2279
      %v2316 = vshrl.u32 %v2279, 16
      %v2317 = vshrl.u32 %v2298, 16
      %v2318 = vpack.i.b16 %v2317, %v2316
      %v2321 = vpack.i.b16 %v2300, %v2281
      %v2322 = vshrl.u32 %v2281, 16
      %v2323 = vshrl.u32 %v2300, 16
      %v2324 = vpack.i.b16 %v2323, %v2322
      %2327 = vrot.lane.b32.xlu0 %v2081, 120
      %v2328 = vpop.permute.xlu0 %2327
      %2329 = vrot.lane.b32.xlu0 %v2082, 120
      %v2330 = vpop.permute.xlu0 %2329
      %2331 = vrot.lane.b32.xlu0 %v2081, 112
      %v2332 = vpop.permute.xlu0 %2331
      %2333 = vrot.lane.b32.xlu0 %v2082, 112
      %v2334 = vpop.permute.xlu0 %2333
      %2335 = vrot.lane.b32.xlu0 %v2081, 104
      %v2336 = vpop.permute.xlu0 %2335
      %2337 = vrot.lane.b32.xlu0 %v2082, 104
      %v2338 = vpop.permute.xlu0 %2337
      %v2341 = vpack.i.b16 %v2328, %v2081
      %v2342 = vshrl.u32 %v2081, 16
      %v2343 = vshrl.u32 %v2328, 16
      %v2344 = vpack.i.b16 %v2343, %v2342
      %v2347 = vpack.i.b16 %v2336, %v2332
      %v2348 = vshrl.u32 %v2332, 16
      %v2349 = vshrl.u32 %v2336, 16
      %v2350 = vpack.i.b16 %v2349, %v2348
      %v2353 = vpack.i.b16 %v2330, %v2082
      %v2354 = vshrl.u32 %v2082, 16
      %v2355 = vshrl.u32 %v2330, 16
      %v2356 = vpack.i.b16 %v2355, %v2354
      %v2359 = vpack.i.b16 %v2338, %v2334
      %v2360 = vshrl.u32 %v2334, 16
      %v2361 = vshrl.u32 %v2338, 16
      %v2362 = vpack.i.b16 %v2361, %v2360
      %v2365 = vunpack.c.l.s4 1983009808
      %v2366 = vunpack.c.0.s8 %v2365
      %v2367 = vperm.slane %v2341, %v2366
      %v2370 = vunpack.c.l.s4 1983009808
      %v2371 = vunpack.c.0.s8 %v2370
      %v2372 = vperm.slane %v2347, %v2371
      %v2373 = vrot.slane %v2372, 4
      %v2374 = vsel %vm432, %v2373, %v2367
      %v2375 = vrot.slane %v2367, 4
      %v2376 = vsel %vm432, %v2372, %v2375
      %v2378 = vunpack.c.l.s4 1934713408
      %v2379 = vunpack.c.0.s8 %v2378
      %v2380 = vperm.slane %v2374, %v2379
      %v2382 = vunpack.c.l.s4 1934713408
      %v2383 = vunpack.c.0.s8 %v2382
      %v2384 = vperm.slane %v2376, %v2383
      %v2385 = vrot.slane %v2380, 4
      %v2386 = vsel %vm432, 0, %v2385
      %v2387 = vrot.slane %v2384, 4
      %v2388 = vsel %vm432, 0, %v2387
      %v2391 = vunpack.c.l.s4 1983009808
      %v2392 = vunpack.c.0.s8 %v2391
      %v2393 = vperm.slane %v2344, %v2392
      %v2396 = vunpack.c.l.s4 1983009808
      %v2397 = vunpack.c.0.s8 %v2396
      %v2398 = vperm.slane %v2350, %v2397
      %v2399 = vrot.slane %v2398, 4
      %v2400 = vsel %vm432, %v2399, %v2393
      %v2401 = vrot.slane %v2393, 4
      %v2402 = vsel %vm432, %v2398, %v2401
      %v2404 = vunpack.c.l.s4 1934713408
      %v2405 = vunpack.c.0.s8 %v2404
      %v2406 = vperm.slane %v2400, %v2405
      %v2408 = vunpack.c.l.s4 1934713408
      %v2409 = vunpack.c.0.s8 %v2408
      %v2410 = vperm.slane %v2402, %v2409
      %v2411 = vrot.slane %v2406, 4
      %v2412 = vsel %vm432, 0, %v2411
      %v2413 = vrot.slane %v2410, 4
      %v2414 = vsel %vm432, 0, %v2413
      %v2417 = vunpack.c.l.s4 1983009808
      %v2418 = vunpack.c.0.s8 %v2417
      %v2419 = vperm.slane %v2353, %v2418
      %v2422 = vunpack.c.l.s4 1983009808
      %v2423 = vunpack.c.0.s8 %v2422
      %v2424 = vperm.slane %v2359, %v2423
      %v2425 = vrot.slane %v2424, 4
      %v2426 = vsel %vm432, %v2425, %v2419
      %v2427 = vrot.slane %v2419, 4
      %v2428 = vsel %vm432, %v2424, %v2427
      %v2430 = vunpack.c.l.s4 1934713408
      %v2431 = vunpack.c.0.s8 %v2430
      %v2432 = vperm.slane %v2426, %v2431
      %v2434 = vunpack.c.l.s4 1934713408
      %v2435 = vunpack.c.0.s8 %v2434
      %v2436 = vperm.slane %v2428, %v2435
      %v2437 = vrot.slane %v2432, 4
      %v2438 = vsel %vm432, 0, %v2437
      %v2439 = vrot.slane %v2436, 4
      %v2440 = vsel %vm432, 0, %v2439
      %v2443 = vunpack.c.l.s4 1983009808
      %v2444 = vunpack.c.0.s8 %v2443
      %v2445 = vperm.slane %v2356, %v2444
      %v2448 = vunpack.c.l.s4 1983009808
      %v2449 = vunpack.c.0.s8 %v2448
      %v2450 = vperm.slane %v2362, %v2449
      %v2451 = vrot.slane %v2450, 4
      %v2452 = vsel %vm432, %v2451, %v2445
      %v2453 = vrot.slane %v2445, 4
      %v2454 = vsel %vm432, %v2450, %v2453
      %v2456 = vunpack.c.l.s4 1934713408
      %v2457 = vunpack.c.0.s8 %v2456
      %v2458 = vperm.slane %v2452, %v2457
      %v2460 = vunpack.c.l.s4 1934713408
      %v2461 = vunpack.c.0.s8 %v2460
      %v2462 = vperm.slane %v2454, %v2461
      %v2463 = vrot.slane %v2458, 4
      %v2464 = vsel %vm432, 0, %v2463
      %v2465 = vrot.slane %v2462, 4
      %v2466 = vsel %vm432, 0, %v2465
      %v2467 = vsel %vm432, %v2387, %v2380
      %v2469 = vunpack.c.l.s4 1983009808
      %v2470 = vunpack.c.0.s8 %v2469
      %v2471 = vperm.slane %v2467, %v2470
      %v2472 = vrot.slane %v2388, 4
      %v2473 = vsel %vm432, %v2472, %v2386
      %v2475 = vunpack.c.l.s4 1983009808
      %v2476 = vunpack.c.0.s8 %v2475
      %v2477 = vperm.slane %v2473, %v2476
      %v2478 = vrot.slane %v2477, 4
      %v2479 = vsel %vm432, %v2478, %v2471
      %v2481 = vunpack.c.l.s4 1934713408
      %v2482 = vunpack.c.0.s8 %v2481
      %v2483 = vperm.slane %v2479, %v2482
      %v2484 = vrot.slane %v2483, 4
      %v2485 = vsel %vm432, 0, %v2484
      %v2486 = vsel %vm432, %v2413, %v2406
      %v2488 = vunpack.c.l.s4 1983009808
      %v2489 = vunpack.c.0.s8 %v2488
      %v2490 = vperm.slane %v2486, %v2489
      %v2491 = vrot.slane %v2414, 4
      %v2492 = vsel %vm432, %v2491, %v2412
      %v2494 = vunpack.c.l.s4 1983009808
      %v2495 = vunpack.c.0.s8 %v2494
      %v2496 = vperm.slane %v2492, %v2495
      %v2497 = vrot.slane %v2496, 4
      %v2498 = vsel %vm432, %v2497, %v2490
      %v2500 = vunpack.c.l.s4 1934713408
      %v2501 = vunpack.c.0.s8 %v2500
      %v2502 = vperm.slane %v2498, %v2501
      %v2503 = vrot.slane %v2502, 4
      %v2504 = vsel %vm432, 0, %v2503
      %v2505 = vsel %vm432, %v2439, %v2432
      %v2507 = vunpack.c.l.s4 1983009808
      %v2508 = vunpack.c.0.s8 %v2507
      %v2509 = vperm.slane %v2505, %v2508
      %v2510 = vrot.slane %v2440, 4
      %v2511 = vsel %vm432, %v2510, %v2438
      %v2513 = vunpack.c.l.s4 1983009808
      %v2514 = vunpack.c.0.s8 %v2513
      %v2515 = vperm.slane %v2511, %v2514
      %v2516 = vrot.slane %v2515, 4
      %v2517 = vsel %vm432, %v2516, %v2509
      %v2519 = vunpack.c.l.s4 1934713408
      %v2520 = vunpack.c.0.s8 %v2519
      %v2521 = vperm.slane %v2517, %v2520
      %v2522 = vrot.slane %v2521, 4
      %v2523 = vsel %vm432, 0, %v2522
      %v2524 = vsel %vm432, %v2465, %v2458
      %v2526 = vunpack.c.l.s4 1983009808
      %v2527 = vunpack.c.0.s8 %v2526
      %v2528 = vperm.slane %v2524, %v2527
      %v2529 = vrot.slane %v2466, 4
      %v2530 = vsel %vm432, %v2529, %v2464
      %v2532 = vunpack.c.l.s4 1983009808
      %v2533 = vunpack.c.0.s8 %v2532
      %v2534 = vperm.slane %v2530, %v2533
      %v2535 = vrot.slane %v2534, 4
      %v2536 = vsel %vm432, %v2535, %v2528
      %v2538 = vunpack.c.l.s4 1934713408
      %v2539 = vunpack.c.0.s8 %v2538
      %v2540 = vperm.slane %v2536, %v2539
      %v2541 = vrot.slane %v2540, 4
      %v2542 = vsel %vm432, 0, %v2541
      %v2545 = vpack.i.b16 %v2502, %v2483
      %v2546 = vshrl.u32 %v2483, 16
      %v2547 = vshrl.u32 %v2502, 16
      %v2548 = vpack.i.b16 %v2547, %v2546
      %v2551 = vpack.i.b16 %v2504, %v2485
      %v2552 = vshrl.u32 %v2485, 16
      %v2553 = vshrl.u32 %v2504, 16
      %v2554 = vpack.i.b16 %v2553, %v2552
      %v2557 = vpack.i.b16 %v2540, %v2521
      %v2558 = vshrl.u32 %v2521, 16
      %v2559 = vshrl.u32 %v2540, 16
      %v2560 = vpack.i.b16 %v2559, %v2558
      %v2563 = vpack.i.b16 %v2542, %v2523
      %v2564 = vshrl.u32 %v2523, 16
      %v2565 = vshrl.u32 %v2542, 16
      %v2566 = vpack.i.b16 %v2565, %v2564
      %2567 = vrot.lane.b32.xlu0 %v2081, 96
      %v2568 = vpop.permute.xlu0 %2567
      %2569 = vrot.lane.b32.xlu0 %v2082, 96
      %v2570 = vpop.permute.xlu0 %2569
      %2571 = vrot.lane.b32.xlu0 %v2328, 96
      %v2572 = vpop.permute.xlu0 %2571
      %2573 = vrot.lane.b32.xlu0 %v2330, 96
      %v2574 = vpop.permute.xlu0 %2573
      %2575 = vrot.lane.b32.xlu0 %v2332, 96
      %v2576 = vpop.permute.xlu0 %2575
      %2577 = vrot.lane.b32.xlu0 %v2334, 96
      %v2578 = vpop.permute.xlu0 %2577
      %2579 = vrot.lane.b32.xlu0 %v2336, 96
      %v2580 = vpop.permute.xlu0 %2579
      %2581 = vrot.lane.b32.xlu0 %v2338, 96
      %v2582 = vpop.permute.xlu0 %2581
      %v2585 = vpack.i.b16 %v2572, %v2568
      %v2586 = vshrl.u32 %v2568, 16
      %v2587 = vshrl.u32 %v2572, 16
      %v2588 = vpack.i.b16 %v2587, %v2586
      %v2591 = vpack.i.b16 %v2580, %v2576
      %v2592 = vshrl.u32 %v2576, 16
      %v2593 = vshrl.u32 %v2580, 16
      %v2594 = vpack.i.b16 %v2593, %v2592
      %v2597 = vpack.i.b16 %v2574, %v2570
      %v2598 = vshrl.u32 %v2570, 16
      %v2599 = vshrl.u32 %v2574, 16
      %v2600 = vpack.i.b16 %v2599, %v2598
      %v2603 = vpack.i.b16 %v2582, %v2578
      %v2604 = vshrl.u32 %v2578, 16
      %v2605 = vshrl.u32 %v2582, 16
      %v2606 = vpack.i.b16 %v2605, %v2604
      %v2609 = vunpack.c.l.s4 1983009808
      %v2610 = vunpack.c.0.s8 %v2609
      %v2611 = vperm.slane %v2585, %v2610
      %v2614 = vunpack.c.l.s4 1983009808
      %v2615 = vunpack.c.0.s8 %v2614
      %v2616 = vperm.slane %v2591, %v2615
      %v2617 = vrot.slane %v2616, 4
      %v2618 = vsel %vm432, %v2617, %v2611
      %v2619 = vrot.slane %v2611, 4
      %v2620 = vsel %vm432, %v2616, %v2619
      %v2622 = vunpack.c.l.s4 1934713408
      %v2623 = vunpack.c.0.s8 %v2622
      %v2624 = vperm.slane %v2618, %v2623
      %v2626 = vunpack.c.l.s4 1934713408
      %v2627 = vunpack.c.0.s8 %v2626
      %v2628 = vperm.slane %v2620, %v2627
      %v2629 = vrot.slane %v2624, 4
      %v2630 = vsel %vm432, 0, %v2629
      %v2631 = vrot.slane %v2628, 4
      %v2632 = vsel %vm432, 0, %v2631
      %v2635 = vunpack.c.l.s4 1983009808
      %v2636 = vunpack.c.0.s8 %v2635
      %v2637 = vperm.slane %v2588, %v2636
      %v2640 = vunpack.c.l.s4 1983009808
      %v2641 = vunpack.c.0.s8 %v2640
      %v2642 = vperm.slane %v2594, %v2641
      %v2643 = vrot.slane %v2642, 4
      %v2644 = vsel %vm432, %v2643, %v2637
      %v2645 = vrot.slane %v2637, 4
      %v2646 = vsel %vm432, %v2642, %v2645
      %v2648 = vunpack.c.l.s4 1934713408
      %v2649 = vunpack.c.0.s8 %v2648
      %v2650 = vperm.slane %v2644, %v2649
      %v2652 = vunpack.c.l.s4 1934713408
      %v2653 = vunpack.c.0.s8 %v2652
      %v2654 = vperm.slane %v2646, %v2653
      %v2655 = vrot.slane %v2650, 4
      %v2656 = vsel %vm432, 0, %v2655
      %v2657 = vrot.slane %v2654, 4
      %v2658 = vsel %vm432, 0, %v2657
      %v2661 = vunpack.c.l.s4 1983009808
      %v2662 = vunpack.c.0.s8 %v2661
      %v2663 = vperm.slane %v2597, %v2662
      %v2666 = vunpack.c.l.s4 1983009808
      %v2667 = vunpack.c.0.s8 %v2666
      %v2668 = vperm.slane %v2603, %v2667
      %v2669 = vrot.slane %v2668, 4
      %v2670 = vsel %vm432, %v2669, %v2663
      %v2671 = vrot.slane %v2663, 4
      %v2672 = vsel %vm432, %v2668, %v2671
      %v2674 = vunpack.c.l.s4 1934713408
      %v2675 = vunpack.c.0.s8 %v2674
      %v2676 = vperm.slane %v2670, %v2675
      %v2678 = vunpack.c.l.s4 1934713408
      %v2679 = vunpack.c.0.s8 %v2678
      %v2680 = vperm.slane %v2672, %v2679
      %v2681 = vrot.slane %v2676, 4
      %v2682 = vsel %vm432, 0, %v2681
      %v2683 = vrot.slane %v2680, 4
      %v2684 = vsel %vm432, 0, %v2683
      %v2687 = vunpack.c.l.s4 1983009808
      %v2688 = vunpack.c.0.s8 %v2687
      %v2689 = vperm.slane %v2600, %v2688
      %v2692 = vunpack.c.l.s4 1983009808
      %v2693 = vunpack.c.0.s8 %v2692
      %v2694 = vperm.slane %v2606, %v2693
      %v2695 = vrot.slane %v2694, 4
      %v2696 = vsel %vm432, %v2695, %v2689
      %v2697 = vrot.slane %v2689, 4
      %v2698 = vsel %vm432, %v2694, %v2697
      %v2700 = vunpack.c.l.s4 1934713408
      %v2701 = vunpack.c.0.s8 %v2700
      %v2702 = vperm.slane %v2696, %v2701
      %v2704 = vunpack.c.l.s4 1934713408
      %v2705 = vunpack.c.0.s8 %v2704
      %v2706 = vperm.slane %v2698, %v2705
      %v2707 = vrot.slane %v2702, 4
      %v2708 = vsel %vm432, 0, %v2707
      %v2709 = vrot.slane %v2706, 4
      %v2710 = vsel %vm432, 0, %v2709
      %v2711 = vsel %vm432, %v2631, %v2624
      %v2713 = vunpack.c.l.s4 1983009808
      %v2714 = vunpack.c.0.s8 %v2713
      %v2715 = vperm.slane %v2711, %v2714
      %v2716 = vrot.slane %v2632, 4
      %v2717 = vsel %vm432, %v2716, %v2630
      %v2719 = vunpack.c.l.s4 1983009808
      %v2720 = vunpack.c.0.s8 %v2719
      %v2721 = vperm.slane %v2717, %v2720
      %v2722 = vrot.slane %v2721, 4
      %v2723 = vsel %vm432, %v2722, %v2715
      %v2725 = vunpack.c.l.s4 1934713408
      %v2726 = vunpack.c.0.s8 %v2725
      %v2727 = vperm.slane %v2723, %v2726
      %v2728 = vrot.slane %v2727, 4
      %v2729 = vsel %vm432, 0, %v2728
      %v2730 = vsel %vm432, %v2657, %v2650
      %v2732 = vunpack.c.l.s4 1983009808
      %v2733 = vunpack.c.0.s8 %v2732
      %v2734 = vperm.slane %v2730, %v2733
      %v2735 = vrot.slane %v2658, 4
      %v2736 = vsel %vm432, %v2735, %v2656
      %v2738 = vunpack.c.l.s4 1983009808
      %v2739 = vunpack.c.0.s8 %v2738
      %v2740 = vperm.slane %v2736, %v2739
      %v2741 = vrot.slane %v2740, 4
      %v2742 = vsel %vm432, %v2741, %v2734
      %v2744 = vunpack.c.l.s4 1934713408
      %v2745 = vunpack.c.0.s8 %v2744
      %v2746 = vperm.slane %v2742, %v2745
      %v2747 = vrot.slane %v2746, 4
      %v2748 = vsel %vm432, 0, %v2747
      %v2749 = vsel %vm432, %v2683, %v2676
      %v2751 = vunpack.c.l.s4 1983009808
      %v2752 = vunpack.c.0.s8 %v2751
      %v2753 = vperm.slane %v2749, %v2752
      %v2754 = vrot.slane %v2684, 4
      %v2755 = vsel %vm432, %v2754, %v2682
      %v2757 = vunpack.c.l.s4 1983009808
      %v2758 = vunpack.c.0.s8 %v2757
      %v2759 = vperm.slane %v2755, %v2758
      %v2760 = vrot.slane %v2759, 4
      %v2761 = vsel %vm432, %v2760, %v2753
      %v2763 = vunpack.c.l.s4 1934713408
      %v2764 = vunpack.c.0.s8 %v2763
      %v2765 = vperm.slane %v2761, %v2764
      %v2766 = vrot.slane %v2765, 4
      %v2767 = vsel %vm432, 0, %v2766
      %v2768 = vsel %vm432, %v2709, %v2702
      %v2770 = vunpack.c.l.s4 1983009808
      %v2771 = vunpack.c.0.s8 %v2770
      %v2772 = vperm.slane %v2768, %v2771
      %v2773 = vrot.slane %v2710, 4
      %v2774 = vsel %vm432, %v2773, %v2708
      %v2776 = vunpack.c.l.s4 1983009808
      %v2777 = vunpack.c.0.s8 %v2776
      %v2778 = vperm.slane %v2774, %v2777
      %v2779 = vrot.slane %v2778, 4
      %v2780 = vsel %vm432, %v2779, %v2772
      %v2782 = vunpack.c.l.s4 1934713408
      %v2783 = vunpack.c.0.s8 %v2782
      %v2784 = vperm.slane %v2780, %v2783
      %v2785 = vrot.slane %v2784, 4
      %v2786 = vsel %vm432, 0, %v2785
      %v2789 = vpack.i.b16 %v2746, %v2727
      %v2790 = vshrl.u32 %v2727, 16
      %v2791 = vshrl.u32 %v2746, 16
      %v2792 = vpack.i.b16 %v2791, %v2790
      %v2795 = vpack.i.b16 %v2748, %v2729
      %v2796 = vshrl.u32 %v2729, 16
      %v2797 = vshrl.u32 %v2748, 16
      %v2798 = vpack.i.b16 %v2797, %v2796
      %v2801 = vpack.i.b16 %v2784, %v2765
      %v2802 = vshrl.u32 %v2765, 16
      %v2803 = vshrl.u32 %v2784, 16
      %v2804 = vpack.i.b16 %v2803, %v2802
      %v2807 = vpack.i.b16 %v2786, %v2767
      %v2808 = vshrl.u32 %v2767, 16
      %v2809 = vshrl.u32 %v2786, 16
      %v2810 = vpack.i.b16 %v2809, %v2808
      %v2812 = vsel %vm1128, %v2303, 0
      %v2815 = vsel %vm1128, %v2545, 0
      %2817 = vmatpush.bf16.xpose.msra.mxu0 0
      %2818 = vmatpush.bf16.xpose.msra.mxu0 0
      %2819 = vmatpush.bf16.xpose.msra.mxu0 0
      %2820 = vmatpush.bf16.xpose.msra.mxu0 0
      %2821 = vmatpush.bf16.xpose.msra.mxu0 0
      %2822 = vmatpush.bf16.xpose.msra.mxu0 0
      %2823 = vmatpush.bf16.xpose.msra.mxu0 0
      %2824 = vmatpush.bf16.xpose.msra.mxu0 %v2815
      %2825 = vmatmul.bf16.gmra.mxu0 %v2812
      %v2826 = vpop.f32.mrf.mxu0
      %v2827 = vadd.f32 0.0, %v2826
      %v2828 = vpop.f32.mrf.mxu0
      %2829 = vdwg.mxu0
      %v2831 = vsel %vm1128, %v2306, 0
      %v2834 = vsel %vm1128, %v2548, 0
      %2836 = vmatpush.bf16.xpose.msra.mxu0 0
      %2837 = vmatpush.bf16.xpose.msra.mxu0 0
      %2838 = vmatpush.bf16.xpose.msra.mxu0 0
      %2839 = vmatpush.bf16.xpose.msra.mxu0 0
      %2840 = vmatpush.bf16.xpose.msra.mxu0 0
      %2841 = vmatpush.bf16.xpose.msra.mxu0 0
      %2842 = vmatpush.bf16.xpose.msra.mxu0 0
      %2843 = vmatpush.bf16.xpose.msra.mxu0 %v2834
      %2844 = vmatmul.bf16.gmra.mxu0 %v2831
      %v2845 = vpop.f32.mrf.mxu0
      %v2846 = vadd.f32 0.0, %v2845
      %v2847 = vpop.f32.mrf.mxu0
      %2848 = vdwg.mxu0
      %v2850 = vsel %vm1128, %v2309, 0
      %v2853 = vsel %vm1128, %v2551, 0
      %2855 = vmatpush.bf16.xpose.msra.mxu0 0
      %2856 = vmatpush.bf16.xpose.msra.mxu0 0
      %2857 = vmatpush.bf16.xpose.msra.mxu0 0
      %2858 = vmatpush.bf16.xpose.msra.mxu0 0
      %2859 = vmatpush.bf16.xpose.msra.mxu0 0
      %2860 = vmatpush.bf16.xpose.msra.mxu0 0
      %2861 = vmatpush.bf16.xpose.msra.mxu0 0
      %2862 = vmatpush.bf16.xpose.msra.mxu0 %v2853
      %2863 = vmatmul.bf16.gmra.mxu0 %v2850
      %v2864 = vpop.f32.mrf.mxu0
      %v2865 = vadd.f32 0.0, %v2864
      %v2866 = vpop.f32.mrf.mxu0
      %2867 = vdwg.mxu0
      %v2869 = vsel %vm1128, %v2312, 0
      %v2872 = vsel %vm1128, %v2554, 0
      %2874 = vmatpush.bf16.xpose.msra.mxu0 0
      %2875 = vmatpush.bf16.xpose.msra.mxu0 0
      %2876 = vmatpush.bf16.xpose.msra.mxu0 0
      %2877 = vmatpush.bf16.xpose.msra.mxu0 0
      %2878 = vmatpush.bf16.xpose.msra.mxu0 0
      %2879 = vmatpush.bf16.xpose.msra.mxu0 0
      %2880 = vmatpush.bf16.xpose.msra.mxu0 0
      %2881 = vmatpush.bf16.xpose.msra.mxu0 %v2872
      %2882 = vmatmul.bf16.gmra.mxu0 %v2869
      %v2883 = vpop.f32.mrf.mxu0
      %v2884 = vadd.f32 0.0, %v2883
      %v2885 = vpop.f32.mrf.mxu0
      %2886 = vdwg.mxu0
      %v2888 = vsel %vm1128, %v2315, 0
      %v2891 = vsel %vm1128, %v2557, 0
      %2893 = vmatpush.bf16.xpose.msra.mxu0 0
      %2894 = vmatpush.bf16.xpose.msra.mxu0 0
      %2895 = vmatpush.bf16.xpose.msra.mxu0 0
      %2896 = vmatpush.bf16.xpose.msra.mxu0 0
      %2897 = vmatpush.bf16.xpose.msra.mxu0 0
      %2898 = vmatpush.bf16.xpose.msra.mxu0 0
      %2899 = vmatpush.bf16.xpose.msra.mxu0 0
      %2900 = vmatpush.bf16.xpose.msra.mxu0 %v2891
      %2901 = vmatmul.bf16.gmra.mxu0 %v2888
      %v2902 = vpop.f32.mrf.mxu0
      %v2903 = vadd.f32 0.0, %v2902
      %v2904 = vpop.f32.mrf.mxu0
      %2905 = vdwg.mxu0
      %v2907 = vsel %vm1128, %v2318, 0
      %v2910 = vsel %vm1128, %v2560, 0
      %2912 = vmatpush.bf16.xpose.msra.mxu0 0
      %2913 = vmatpush.bf16.xpose.msra.mxu0 0
      %2914 = vmatpush.bf16.xpose.msra.mxu0 0
      %2915 = vmatpush.bf16.xpose.msra.mxu0 0
      %2916 = vmatpush.bf16.xpose.msra.mxu0 0
      %2917 = vmatpush.bf16.xpose.msra.mxu0 0
      %2918 = vmatpush.bf16.xpose.msra.mxu0 0
      %2919 = vmatpush.bf16.xpose.msra.mxu0 %v2910
      %2920 = vmatmul.bf16.gmra.mxu0 %v2907
      %v2921 = vpop.f32.mrf.mxu0
      %v2922 = vadd.f32 0.0, %v2921
      %v2923 = vpop.f32.mrf.mxu0
      %2924 = vdwg.mxu0
      %v2926 = vsel %vm1128, %v2321, 0
      %v2929 = vsel %vm1128, %v2563, 0
      %2931 = vmatpush.bf16.xpose.msra.mxu0 0
      %2932 = vmatpush.bf16.xpose.msra.mxu0 0
      %2933 = vmatpush.bf16.xpose.msra.mxu0 0
      %2934 = vmatpush.bf16.xpose.msra.mxu0 0
      %2935 = vmatpush.bf16.xpose.msra.mxu0 0
      %2936 = vmatpush.bf16.xpose.msra.mxu0 0
      %2937 = vmatpush.bf16.xpose.msra.mxu0 0
      %2938 = vmatpush.bf16.xpose.msra.mxu0 %v2929
      %2939 = vmatmul.bf16.gmra.mxu0 %v2926
      %v2940 = vpop.f32.mrf.mxu0
      %v2941 = vadd.f32 0.0, %v2940
      %v2942 = vpop.f32.mrf.mxu0
      %2943 = vdwg.mxu0
      %v2945 = vsel %vm1128, %v2324, 0
      %v2948 = vsel %vm1128, %v2566, 0
      %2950 = vmatpush.bf16.xpose.msra.mxu0 0
      %2951 = vmatpush.bf16.xpose.msra.mxu0 0
      %2952 = vmatpush.bf16.xpose.msra.mxu0 0
      %2953 = vmatpush.bf16.xpose.msra.mxu0 0
      %2954 = vmatpush.bf16.xpose.msra.mxu0 0
      %2955 = vmatpush.bf16.xpose.msra.mxu0 0
      %2956 = vmatpush.bf16.xpose.msra.mxu0 0
      %2957 = vmatpush.bf16.xpose.msra.mxu0 %v2948
      %2958 = vmatmul.bf16.gmra.mxu0 %v2945
      %v2959 = vpop.f32.mrf.mxu0
      %v2960 = vadd.f32 0.0, %v2959
      %v2961 = vpop.f32.mrf.mxu0
      %2962 = vdwg.mxu0
      %v2963 = vsel %vm332, 1, 0
      %v2964 = vsel %vm333, 1, 0
      %v2965 = vperm.slane %v2963, 0
      %v2966 = vperm.slane %v2964, 0
      %vm2967 = vcmp.eq.s32.totalorder %v2965, 1
      %vm2968 = vcmp.eq.s32.totalorder %v2966, 1
      %v2969 = vsel %vm2967, %v2827, -2.3819763e+38
      %v2970 = vsel %vm2967, %v2846, -2.3819763e+38
      %v2971 = vsel %vm2967, %v2865, -2.3819763e+38
      %v2972 = vsel %vm2967, %v2884, -2.3819763e+38
      %v2973 = vsel %vm2968, %v2903, -2.3819763e+38
      %v2974 = vsel %vm2968, %v2922, -2.3819763e+38
      %v2975 = vsel %vm2968, %v2941, -2.3819763e+38
      %v2976 = vsel %vm2968, %v2960, -2.3819763e+38
      %v2977 = vsel %vm1128, %v2969, -inf
      %2978 = vmax.xlane.f32.xlu0 %v2977
      %v2979 = vpop.xlane.xlu0 %2978
      %v2980 = vsel %vm1128, %v2970, -inf
      %2981 = vmax.xlane.f32.xlu0 %v2980
      %v2982 = vpop.xlane.xlu0 %2981
      %v2983 = vsel %vm1128, %v2971, -inf
      %2984 = vmax.xlane.f32.xlu0 %v2983
      %v2985 = vpop.xlane.xlu0 %2984
      %v2986 = vsel %vm1128, %v2972, -inf
      %2987 = vmax.xlane.f32.xlu0 %v2986
      %v2988 = vpop.xlane.xlu0 %2987
      %v2989 = vsel %vm1128, %v2973, -inf
      %2990 = vmax.xlane.f32.xlu0 %v2989
      %v2991 = vpop.xlane.xlu0 %2990
      %v2992 = vsel %vm1128, %v2974, -inf
      %2993 = vmax.xlane.f32.xlu0 %v2992
      %v2994 = vpop.xlane.xlu0 %2993
      %v2995 = vsel %vm1128, %v2975, -inf
      %2996 = vmax.xlane.f32.xlu0 %v2995
      %v2997 = vpop.xlane.xlu0 %2996
      %v2998 = vsel %vm1128, %v2976, -inf
      %2999 = vmax.xlane.f32.xlu0 %v2998
      %v3000 = vpop.xlane.xlu0 %2999
      %v3001 = vsub.f32 %v2969, %v2979
      %v3002 = vsub.f32 %v2970, %v2982
      %v3003 = vsub.f32 %v2971, %v2985
      %v3004 = vsub.f32 %v2972, %v2988
      %v3005 = vsub.f32 %v2973, %v2991
      %v3006 = vsub.f32 %v2974, %v2994
      %v3007 = vsub.f32 %v2975, %v2997
      %v3008 = vsub.f32 %v2976, %v3000
      %v3009 = vmul.f32 %v3001, 1.442695
      %v3010 = vpow.pop %v3009
      %v3011 = vmul.f32 %v3002, 1.442695
      %v3012 = vpow.pop %v3011
      %v3013 = vmul.f32 %v3003, 1.442695
      %v3014 = vpow.pop %v3013
      %v3015 = vmul.f32 %v3004, 1.442695
      %v3016 = vpow.pop %v3015
      %v3017 = vmul.f32 %v3005, 1.442695
      %v3018 = vpow.pop %v3017
      %v3019 = vmul.f32 %v3006, 1.442695
      %v3020 = vpow.pop %v3019
      %v3021 = vmul.f32 %v3007, 1.442695
      %v3022 = vpow.pop %v3021
      %v3023 = vmul.f32 %v3008, 1.442695
      %v3024 = vpow.pop %v3023
      %v3025 = vsel %vm1128, %v3010, 0.0
      %3026 = vadd.xlane.f32.xlu0 %v3025
      %v3027 = vpop.xlane.xlu0 %3026
      %v3028 = vsel %vm1128, %v3012, 0.0
      %3029 = vadd.xlane.f32.xlu0 %v3028
      %v3030 = vpop.xlane.xlu0 %3029
      %v3031 = vsel %vm1128, %v3014, 0.0
      %3032 = vadd.xlane.f32.xlu0 %v3031
      %v3033 = vpop.xlane.xlu0 %3032
      %v3034 = vsel %vm1128, %v3016, 0.0
      %3035 = vadd.xlane.f32.xlu0 %v3034
      %v3036 = vpop.xlane.xlu0 %3035
      %v3037 = vsel %vm1128, %v3018, 0.0
      %3038 = vadd.xlane.f32.xlu0 %v3037
      %v3039 = vpop.xlane.xlu0 %3038
      %v3040 = vsel %vm1128, %v3020, 0.0
      %3041 = vadd.xlane.f32.xlu0 %v3040
      %v3042 = vpop.xlane.xlu0 %3041
      %v3043 = vsel %vm1128, %v3022, 0.0
      %3044 = vadd.xlane.f32.xlu0 %v3043
      %v3045 = vpop.xlane.xlu0 %3044
      %v3046 = vsel %vm1128, %v3024, 0.0
      %3047 = vadd.xlane.f32.xlu0 %v3046
      %v3048 = vpop.xlane.xlu0 %3047
      %v3049 = vrcp.pop %v3027
      %v3050 = vmul.f32 %v3027, %v3049
      %v3051 = vsub.f32 1.0, %v3050
      %v3052 = vmul.f32 %v3049, %v3051
      %v3053 = vadd.f32 %v3049, %v3052
      %vm3054 = vweird.f32 %v3027
      %vm3055 = vweird.f32 %v3049
      %vm3056 = vmor %vm3054, %vm3055
      %v3057 = vsel %vm3056, %v3049, %v3053
      %v3058 = vand.u32 2147483647, %v3027
      %vm3059 = vcmp.eq.f32.partialorder %v3058, 8.507059e+37
      %v3060 = vand.u32 %v3027, 2147483648
      %v3061 = vor.u32 1.1754944e-38, %v3060
      %v3062 = vsel %vm3059, %v3061, %v3057
      %v3063 = vmul.f32 %v3010, %v3062
      %v3064 = vrcp.pop %v3030
      %v3065 = vmul.f32 %v3030, %v3064
      %v3066 = vsub.f32 1.0, %v3065
      %v3067 = vmul.f32 %v3064, %v3066
      %v3068 = vadd.f32 %v3064, %v3067
      %vm3069 = vweird.f32 %v3030
      %vm3070 = vweird.f32 %v3064
      %vm3071 = vmor %vm3069, %vm3070
      %v3072 = vsel %vm3071, %v3064, %v3068
      %v3073 = vand.u32 2147483647, %v3030
      %vm3074 = vcmp.eq.f32.partialorder %v3073, 8.507059e+37
      %v3075 = vand.u32 %v3030, 2147483648
      %v3076 = vor.u32 1.1754944e-38, %v3075
      %v3077 = vsel %vm3074, %v3076, %v3072
      %v3078 = vmul.f32 %v3012, %v3077
      %v3079 = vrcp.pop %v3033
      %v3080 = vmul.f32 %v3033, %v3079
      %v3081 = vsub.f32 1.0, %v3080
      %v3082 = vmul.f32 %v3079, %v3081
      %v3083 = vadd.f32 %v3079, %v3082
      %vm3084 = vweird.f32 %v3033
      %vm3085 = vweird.f32 %v3079
      %vm3086 = vmor %vm3084, %vm3085
      %v3087 = vsel %vm3086, %v3079, %v3083
      %v3088 = vand.u32 2147483647, %v3033
      %vm3089 = vcmp.eq.f32.partialorder %v3088, 8.507059e+37
      %v3090 = vand.u32 %v3033, 2147483648
      %v3091 = vor.u32 1.1754944e-38, %v3090
      %v3092 = vsel %vm3089, %v3091, %v3087
      %v3093 = vmul.f32 %v3014, %v3092
      %v3094 = vrcp.pop %v3036
      %v3095 = vmul.f32 %v3036, %v3094
      %v3096 = vsub.f32 1.0, %v3095
      %v3097 = vmul.f32 %v3094, %v3096
      %v3098 = vadd.f32 %v3094, %v3097
      %vm3099 = vweird.f32 %v3036
      %vm3100 = vweird.f32 %v3094
      %vm3101 = vmor %vm3099, %vm3100
      %v3102 = vsel %vm3101, %v3094, %v3098
      %v3103 = vand.u32 2147483647, %v3036
      %vm3104 = vcmp.eq.f32.partialorder %v3103, 8.507059e+37
      %v3105 = vand.u32 %v3036, 2147483648
      %v3106 = vor.u32 1.1754944e-38, %v3105
      %v3107 = vsel %vm3104, %v3106, %v3102
      %v3108 = vmul.f32 %v3016, %v3107
      %v3109 = vrcp.pop %v3039
      %v3110 = vmul.f32 %v3039, %v3109
      %v3111 = vsub.f32 1.0, %v3110
      %v3112 = vmul.f32 %v3109, %v3111
      %v3113 = vadd.f32 %v3109, %v3112
      %vm3114 = vweird.f32 %v3039
      %vm3115 = vweird.f32 %v3109
      %vm3116 = vmor %vm3114, %vm3115
      %v3117 = vsel %vm3116, %v3109, %v3113
      %v3118 = vand.u32 2147483647, %v3039
      %vm3119 = vcmp.eq.f32.partialorder %v3118, 8.507059e+37
      %v3120 = vand.u32 %v3039, 2147483648
      %v3121 = vor.u32 1.1754944e-38, %v3120
      %v3122 = vsel %vm3119, %v3121, %v3117
      %v3123 = vmul.f32 %v3018, %v3122
      %v3124 = vrcp.pop %v3042
      %v3125 = vmul.f32 %v3042, %v3124
      %v3126 = vsub.f32 1.0, %v3125
      %v3127 = vmul.f32 %v3124, %v3126
      %v3128 = vadd.f32 %v3124, %v3127
      %vm3129 = vweird.f32 %v3042
      %vm3130 = vweird.f32 %v3124
      %vm3131 = vmor %vm3129, %vm3130
      %v3132 = vsel %vm3131, %v3124, %v3128
      %v3133 = vand.u32 2147483647, %v3042
      %vm3134 = vcmp.eq.f32.partialorder %v3133, 8.507059e+37
      %v3135 = vand.u32 %v3042, 2147483648
      %v3136 = vor.u32 1.1754944e-38, %v3135
      %v3137 = vsel %vm3134, %v3136, %v3132
      %v3138 = vmul.f32 %v3020, %v3137
      %v3139 = vrcp.pop %v3045
      %v3140 = vmul.f32 %v3045, %v3139
      %v3141 = vsub.f32 1.0, %v3140
      %v3142 = vmul.f32 %v3139, %v3141
      %v3143 = vadd.f32 %v3139, %v3142
      %vm3144 = vweird.f32 %v3045
      %vm3145 = vweird.f32 %v3139
      %vm3146 = vmor %vm3144, %vm3145
      %v3147 = vsel %vm3146, %v3139, %v3143
      %v3148 = vand.u32 2147483647, %v3045
      %vm3149 = vcmp.eq.f32.partialorder %v3148, 8.507059e+37
      %v3150 = vand.u32 %v3045, 2147483648
      %v3151 = vor.u32 1.1754944e-38, %v3150
      %v3152 = vsel %vm3149, %v3151, %v3147
      %v3153 = vmul.f32 %v3022, %v3152
      %v3154 = vrcp.pop %v3048
      %v3155 = vmul.f32 %v3048, %v3154
      %v3156 = vsub.f32 1.0, %v3155
      %v3157 = vmul.f32 %v3154, %v3156
      %v3158 = vadd.f32 %v3154, %v3157
      %vm3159 = vweird.f32 %v3048
      %vm3160 = vweird.f32 %v3154
      %vm3161 = vmor %vm3159, %vm3160
      %v3162 = vsel %vm3161, %v3154, %v3158
      %v3163 = vand.u32 2147483647, %v3048
      %vm3164 = vcmp.eq.f32.partialorder %v3163, 8.507059e+37
      %v3165 = vand.u32 %v3048, 2147483648
      %v3166 = vor.u32 1.1754944e-38, %v3165
      %v3167 = vsel %vm3164, %v3166, %v3162
      %v3168 = vmul.f32 %v3024, %v3167
      %v3169 = vpack.c.bf16 %v3063, %v3063
      %v3170 = vpack.c.bf16 %v3078, %v3078
      %v3171 = vpack.c.bf16 %v3093, %v3093
      %v3172 = vpack.c.bf16 %v3108, %v3108
      %v3173 = vpack.c.bf16 %v3123, %v3123
      %v3174 = vpack.c.bf16 %v3138, %v3138
      %v3175 = vpack.c.bf16 %v3153, %v3153
      %v3176 = vpack.c.bf16 %v3168, %v3168
      %v3178 = vsel %vm1128, %v3169, 0
      %v3181 = vsel %vm1496, %v2789, 0
      %3183 = vmatpush.bf16.msra.mxu0 0
      %3184 = vmatpush.bf16.msra.mxu0 0
      %3185 = vmatpush.bf16.msra.mxu0 0
      %3186 = vmatpush.bf16.msra.mxu0 0
      %3187 = vmatpush.bf16.msra.mxu0 0
      %3188 = vmatpush.bf16.msra.mxu0 0
      %3189 = vmatpush.bf16.msra.mxu0 0
      %3190 = vmatpush.bf16.msra.mxu0 %v3181
      %3191 = vmatmul.bf16.gmra.mxu0 %v3178
      %v3192 = vpop.f32.mrf.mxu0
      %v3193 = vadd.f32 0.0, %v3192
      %v3194 = vpop.f32.mrf.mxu0
      %3195 = vdwg.mxu0
      %v3197 = vsel %vm1128, %v3170, 0
      %v3200 = vsel %vm1496, %v2792, 0
      %3202 = vmatpush.bf16.msra.mxu0 0
      %3203 = vmatpush.bf16.msra.mxu0 0
      %3204 = vmatpush.bf16.msra.mxu0 0
      %3205 = vmatpush.bf16.msra.mxu0 0
      %3206 = vmatpush.bf16.msra.mxu0 0
      %3207 = vmatpush.bf16.msra.mxu0 0
      %3208 = vmatpush.bf16.msra.mxu0 0
      %3209 = vmatpush.bf16.msra.mxu0 %v3200
      %3210 = vmatmul.bf16.gmra.mxu0 %v3197
      %v3211 = vpop.f32.mrf.mxu0
      %v3212 = vadd.f32 0.0, %v3211
      %v3213 = vpop.f32.mrf.mxu0
      %3214 = vdwg.mxu0
      %v3216 = vsel %vm1128, %v3171, 0
      %v3219 = vsel %vm1496, %v2795, 0
      %3221 = vmatpush.bf16.msra.mxu0 0
      %3222 = vmatpush.bf16.msra.mxu0 0
      %3223 = vmatpush.bf16.msra.mxu0 0
      %3224 = vmatpush.bf16.msra.mxu0 0
      %3225 = vmatpush.bf16.msra.mxu0 0
      %3226 = vmatpush.bf16.msra.mxu0 0
      %3227 = vmatpush.bf16.msra.mxu0 0
      %3228 = vmatpush.bf16.msra.mxu0 %v3219
      %3229 = vmatmul.bf16.gmra.mxu0 %v3216
      %v3230 = vpop.f32.mrf.mxu0
      %v3231 = vadd.f32 0.0, %v3230
      %v3232 = vpop.f32.mrf.mxu0
      %3233 = vdwg.mxu0
      %v3235 = vsel %vm1128, %v3172, 0
      %v3238 = vsel %vm1496, %v2798, 0
      %3240 = vmatpush.bf16.msra.mxu0 0
      %3241 = vmatpush.bf16.msra.mxu0 0
      %3242 = vmatpush.bf16.msra.mxu0 0
      %3243 = vmatpush.bf16.msra.mxu0 0
      %3244 = vmatpush.bf16.msra.mxu0 0
      %3245 = vmatpush.bf16.msra.mxu0 0
      %3246 = vmatpush.bf16.msra.mxu0 0
      %3247 = vmatpush.bf16.msra.mxu0 %v3238
      %3248 = vmatmul.bf16.gmra.mxu0 %v3235
      %v3249 = vpop.f32.mrf.mxu0
      %v3250 = vadd.f32 0.0, %v3249
      %v3251 = vpop.f32.mrf.mxu0
      %3252 = vdwg.mxu0
      %v3254 = vsel %vm1128, %v3173, 0
      %v3257 = vsel %vm1496, %v2801, 0
      %3259 = vmatpush.bf16.msra.mxu0 0
      %3260 = vmatpush.bf16.msra.mxu0 0
      %3261 = vmatpush.bf16.msra.mxu0 0
      %3262 = vmatpush.bf16.msra.mxu0 0
      %3263 = vmatpush.bf16.msra.mxu0 0
      %3264 = vmatpush.bf16.msra.mxu0 0
      %3265 = vmatpush.bf16.msra.mxu0 0
      %3266 = vmatpush.bf16.msra.mxu0 %v3257
      %3267 = vmatmul.bf16.gmra.mxu0 %v3254
      %v3268 = vpop.f32.mrf.mxu0
      %v3269 = vadd.f32 0.0, %v3268
      %v3270 = vpop.f32.mrf.mxu0
      %3271 = vdwg.mxu0
      %v3273 = vsel %vm1128, %v3174, 0
      %v3276 = vsel %vm1496, %v2804, 0
      %3278 = vmatpush.bf16.msra.mxu0 0
      %3279 = vmatpush.bf16.msra.mxu0 0
      %3280 = vmatpush.bf16.msra.mxu0 0
      %3281 = vmatpush.bf16.msra.mxu0 0
      %3282 = vmatpush.bf16.msra.mxu0 0
      %3283 = vmatpush.bf16.msra.mxu0 0
      %3284 = vmatpush.bf16.msra.mxu0 0
      %3285 = vmatpush.bf16.msra.mxu0 %v3276
      %3286 = vmatmul.bf16.gmra.mxu0 %v3273
      %v3287 = vpop.f32.mrf.mxu0
      %v3288 = vadd.f32 0.0, %v3287
      %v3289 = vpop.f32.mrf.mxu0
      %3290 = vdwg.mxu0
      %v3292 = vsel %vm1128, %v3175, 0
      %v3295 = vsel %vm1496, %v2807, 0
      %3297 = vmatpush.bf16.msra.mxu0 0
      %3298 = vmatpush.bf16.msra.mxu0 0
      %3299 = vmatpush.bf16.msra.mxu0 0
      %3300 = vmatpush.bf16.msra.mxu0 0
      %3301 = vmatpush.bf16.msra.mxu0 0
      %3302 = vmatpush.bf16.msra.mxu0 0
      %3303 = vmatpush.bf16.msra.mxu0 0
      %3304 = vmatpush.bf16.msra.mxu0 %v3295
      %3305 = vmatmul.bf16.gmra.mxu0 %v3292
      %v3306 = vpop.f32.mrf.mxu0
      %v3307 = vadd.f32 0.0, %v3306
      %v3308 = vpop.f32.mrf.mxu0
      %3309 = vdwg.mxu0
      %v3311 = vsel %vm1128, %v3176, 0
      %v3314 = vsel %vm1496, %v2810, 0
      %3316 = vmatpush.bf16.msra.mxu0 0
      %3317 = vmatpush.bf16.msra.mxu0 0
      %3318 = vmatpush.bf16.msra.mxu0 0
      %3319 = vmatpush.bf16.msra.mxu0 0
      %3320 = vmatpush.bf16.msra.mxu0 0
      %3321 = vmatpush.bf16.msra.mxu0 0
      %3322 = vmatpush.bf16.msra.mxu0 0
      %3323 = vmatpush.bf16.msra.mxu0 %v3314
      %3324 = vmatmul.bf16.gmra.mxu0 %v3311
      %v3325 = vpop.f32.mrf.mxu0
      %v3326 = vadd.f32 0.0, %v3325
      %v3327 = vpop.f32.mrf.mxu0
      %3328 = vdwg.mxu0
      %v3329 = vrot.slane %v3231, 4
      %v3330 = vsel %vm1647, %v3329, %v3193
      %v3331 = vrot.slane %v3193, 4
      %v3332 = vsel %vm1647, %v3231, %v3331
      %v3334 = vunpack.c.l.s4 1983009808
      %v3335 = vunpack.c.0.s8 %v3334
      %v3336 = vperm.slane %v3330, %v3335
      %v3338 = vunpack.c.l.s4 1983009808
      %v3339 = vunpack.c.0.s8 %v3338
      %v3340 = vperm.slane %v3332, %v3339
      %v3341 = vrot.slane %v3250, 4
      %v3342 = vsel %vm1647, %v3341, %v3212
      %v3343 = vrot.slane %v3212, 4
      %v3344 = vsel %vm1647, %v3250, %v3343
      %v3346 = vunpack.c.l.s4 1983009808
      %v3347 = vunpack.c.0.s8 %v3346
      %v3348 = vperm.slane %v3342, %v3347
      %v3350 = vunpack.c.l.s4 1983009808
      %v3351 = vunpack.c.0.s8 %v3350
      %v3352 = vperm.slane %v3344, %v3351
      %v3353 = vrot.slane %v3348, 4
      %v3354 = vsel %vm1647, %v3353, %v3336
      %v3355 = vrot.slane %v3336, 4
      %v3356 = vsel %vm1647, %v3348, %v3355
      %v3358 = vunpack.c.l.s4 1934713408
      %v3359 = vunpack.c.0.s8 %v3358
      %v3360 = vperm.slane %v3354, %v3359
      %v3362 = vunpack.c.l.s4 1934713408
      %v3363 = vunpack.c.0.s8 %v3362
      %v3364 = vperm.slane %v3356, %v3363
      %v3365 = vrot.slane %v3352, 4
      %v3366 = vsel %vm1647, %v3365, %v3340
      %v3367 = vrot.slane %v3340, 4
      %v3368 = vsel %vm1647, %v3352, %v3367
      %v3370 = vunpack.c.l.s4 1934713408
      %v3371 = vunpack.c.0.s8 %v3370
      %v3372 = vperm.slane %v3366, %v3371
      %v3374 = vunpack.c.l.s4 1934713408
      %v3375 = vunpack.c.0.s8 %v3374
      %v3376 = vperm.slane %v3368, %v3375
      %v3377 = vrot.slane %v3360, 4
      %v3378 = vsel %vm1647, 0.0, %v3377
      %v3379 = vrot.slane %v3364, 4
      %v3380 = vsel %vm1647, 0.0, %v3379
      %v3381 = vrot.slane %v3372, 4
      %v3382 = vsel %vm1647, 0.0, %v3381
      %v3383 = vrot.slane %v3376, 4
      %v3384 = vsel %vm1647, 0.0, %v3383
      %v3385 = vrot.slane %v3307, 4
      %v3386 = vsel %vm1647, %v3385, %v3269
      %v3387 = vrot.slane %v3269, 4
      %v3388 = vsel %vm1647, %v3307, %v3387
      %v3390 = vunpack.c.l.s4 1983009808
      %v3391 = vunpack.c.0.s8 %v3390
      %v3392 = vperm.slane %v3386, %v3391
      %v3394 = vunpack.c.l.s4 1983009808
      %v3395 = vunpack.c.0.s8 %v3394
      %v3396 = vperm.slane %v3388, %v3395
      %v3397 = vrot.slane %v3326, 4
      %v3398 = vsel %vm1647, %v3397, %v3288
      %v3399 = vrot.slane %v3288, 4
      %v3400 = vsel %vm1647, %v3326, %v3399
      %v3402 = vunpack.c.l.s4 1983009808
      %v3403 = vunpack.c.0.s8 %v3402
      %v3404 = vperm.slane %v3398, %v3403
      %v3406 = vunpack.c.l.s4 1983009808
      %v3407 = vunpack.c.0.s8 %v3406
      %v3408 = vperm.slane %v3400, %v3407
      %v3409 = vrot.slane %v3404, 4
      %v3410 = vsel %vm1647, %v3409, %v3392
      %v3411 = vrot.slane %v3392, 4
      %v3412 = vsel %vm1647, %v3404, %v3411
      %v3414 = vunpack.c.l.s4 1934713408
      %v3415 = vunpack.c.0.s8 %v3414
      %v3416 = vperm.slane %v3410, %v3415
      %v3418 = vunpack.c.l.s4 1934713408
      %v3419 = vunpack.c.0.s8 %v3418
      %v3420 = vperm.slane %v3412, %v3419
      %v3421 = vrot.slane %v3408, 4
      %v3422 = vsel %vm1647, %v3421, %v3396
      %v3423 = vrot.slane %v3396, 4
      %v3424 = vsel %vm1647, %v3408, %v3423
      %v3426 = vunpack.c.l.s4 1934713408
      %v3427 = vunpack.c.0.s8 %v3426
      %v3428 = vperm.slane %v3422, %v3427
      %v3430 = vunpack.c.l.s4 1934713408
      %v3431 = vunpack.c.0.s8 %v3430
      %v3432 = vperm.slane %v3424, %v3431
      %v3433 = vrot.slane %v3416, 4
      %v3434 = vsel %vm1647, 0.0, %v3433
      %v3435 = vrot.slane %v3420, 4
      %v3436 = vsel %vm1647, 0.0, %v3435
      %v3437 = vrot.slane %v3428, 4
      %v3438 = vsel %vm1647, 0.0, %v3437
      %v3439 = vrot.slane %v3432, 4
      %v3440 = vsel %vm1647, 0.0, %v3439
      %v3441 = vsel %vm1647, %v3379, %v3360
      %v3443 = vunpack.c.l.s4 1983009808
      %v3444 = vunpack.c.0.s8 %v3443
      %v3445 = vperm.slane %v3441, %v3444
      %v3446 = vrot.slane %v3380, 4
      %v3447 = vsel %vm1647, %v3446, %v3378
      %v3449 = vunpack.c.l.s4 1983009808
      %v3450 = vunpack.c.0.s8 %v3449
      %v3451 = vperm.slane %v3447, %v3450
      %v3452 = vsel %vm1647, %v3383, %v3372
      %v3454 = vunpack.c.l.s4 1983009808
      %v3455 = vunpack.c.0.s8 %v3454
      %v3456 = vperm.slane %v3452, %v3455
      %v3457 = vrot.slane %v3384, 4
      %v3458 = vsel %vm1647, %v3457, %v3382
      %v3460 = vunpack.c.l.s4 1983009808
      %v3461 = vunpack.c.0.s8 %v3460
      %v3462 = vperm.slane %v3458, %v3461
      %v3463 = vrot.slane %v3451, 4
      %v3464 = vsel %vm1647, %v3463, %v3445
      %v3465 = vrot.slane %v3445, 4
      %v3466 = vsel %vm1647, %v3451, %v3465
      %v3468 = vunpack.c.l.s4 1934713408
      %v3469 = vunpack.c.0.s8 %v3468
      %v3470 = vperm.slane %v3464, %v3469
      %v3472 = vunpack.c.l.s4 1934713408
      %v3473 = vunpack.c.0.s8 %v3472
      %v3474 = vperm.slane %v3466, %v3473
      %v3475 = vrot.slane %v3462, 4
      %v3476 = vsel %vm1647, %v3475, %v3456
      %v3477 = vrot.slane %v3456, 4
      %v3478 = vsel %vm1647, %v3462, %v3477
      %v3480 = vunpack.c.l.s4 1934713408
      %v3481 = vunpack.c.0.s8 %v3480
      %v3482 = vperm.slane %v3476, %v3481
      %v3484 = vunpack.c.l.s4 1934713408
      %v3485 = vunpack.c.0.s8 %v3484
      %v3486 = vperm.slane %v3478, %v3485
      %v3487 = vrot.slane %v3482, 4
      %v3488 = vsel %vm1647, %v3487, %v3470
      %v3489 = vrot.slane %v3470, 4
      %v3490 = vsel %vm1647, %v3482, %v3489
      %v3491 = vrot.slane %v3486, 4
      %v3492 = vsel %vm1647, %v3491, %v3474
      %v3493 = vrot.slane %v3474, 4
      %v3494 = vsel %vm1647, %v3486, %v3493
      %v3495 = vsel %vm1647, %v3435, %v3416
      %v3497 = vunpack.c.l.s4 1983009808
      %v3498 = vunpack.c.0.s8 %v3497
      %v3499 = vperm.slane %v3495, %v3498
      %v3500 = vrot.slane %v3436, 4
      %v3501 = vsel %vm1647, %v3500, %v3434
      %v3503 = vunpack.c.l.s4 1983009808
      %v3504 = vunpack.c.0.s8 %v3503
      %v3505 = vperm.slane %v3501, %v3504
      %v3506 = vsel %vm1647, %v3439, %v3428
      %v3508 = vunpack.c.l.s4 1983009808
      %v3509 = vunpack.c.0.s8 %v3508
      %v3510 = vperm.slane %v3506, %v3509
      %v3511 = vrot.slane %v3440, 4
      %v3512 = vsel %vm1647, %v3511, %v3438
      %v3514 = vunpack.c.l.s4 1983009808
      %v3515 = vunpack.c.0.s8 %v3514
      %v3516 = vperm.slane %v3512, %v3515
      %v3517 = vrot.slane %v3505, 4
      %v3518 = vsel %vm1647, %v3517, %v3499
      %v3519 = vrot.slane %v3499, 4
      %v3520 = vsel %vm1647, %v3505, %v3519
      %v3522 = vunpack.c.l.s4 1934713408
      %v3523 = vunpack.c.0.s8 %v3522
      %v3524 = vperm.slane %v3518, %v3523
      %v3526 = vunpack.c.l.s4 1934713408
      %v3527 = vunpack.c.0.s8 %v3526
      %v3528 = vperm.slane %v3520, %v3527
      %v3529 = vrot.slane %v3516, 4
      %v3530 = vsel %vm1647, %v3529, %v3510
      %v3531 = vrot.slane %v3510, 4
      %v3532 = vsel %vm1647, %v3516, %v3531
      %v3534 = vunpack.c.l.s4 1934713408
      %v3535 = vunpack.c.0.s8 %v3534
      %v3536 = vperm.slane %v3530, %v3535
      %v3538 = vunpack.c.l.s4 1934713408
      %v3539 = vunpack.c.0.s8 %v3538
      %v3540 = vperm.slane %v3532, %v3539
      %v3541 = vrot.slane %v3536, 4
      %v3542 = vsel %vm1647, %v3541, %v3524
      %v3543 = vrot.slane %v3524, 4
      %v3544 = vsel %vm1647, %v3536, %v3543
      %v3545 = vrot.slane %v3540, 4
      %v3546 = vsel %vm1647, %v3545, %v3528
      %v3547 = vrot.slane %v3528, 4
      %v3548 = vsel %vm1647, %v3540, %v3547
      %3551 = vrot.lane.b32.xlu0 %v3490, 8
      %v3552 = vpop.permute.xlu0 %3551
      %3553 = vrot.lane.b32.xlu0 %v3544, 8
      %v3554 = vpop.permute.xlu0 %3553
      %3559 = vrot.lane.b32.xlu0 %v3492, 16
      %v3560 = vpop.permute.xlu0 %3559
      %3561 = vrot.lane.b32.xlu0 %v3546, 16
      %v3562 = vpop.permute.xlu0 %3561
      %3567 = vrot.lane.b32.xlu0 %v3494, 24
      %v3568 = vpop.permute.xlu0 %3567
      %3569 = vrot.lane.b32.xlu0 %v3548, 24
      %v3570 = vpop.permute.xlu0 %3569
      %v3573 = vsel %vm1128, %v3488, %v3552
      %v3574 = vsel %vm1128, %v3542, %v3554
      %v3575 = vsel %vm1893, %v3573, %v3560
      %v3576 = vsel %vm1893, %v3574, %v3562
      %v3577 = vsel %vm1896, %v3575, %v3568
      %v3578 = vsel %vm1896, %v3576, %v3570
      %v3579 = vpack.c.bf16 %v3578, %v3577
      %v3580 = vld [vmem:[#allocation21] sm:$0xf]
      %v3581 = vld [vmem:[#allocation21 + $0x4] sm:$0xf]
      %v3582 = vld [vmem:[#allocation21 + $0x8] sm:$0xf]
      %v3583 = vld [vmem:[#allocation21 + $0xc] sm:$0xf]
      %v3584 = vld [vmem:[#allocation22] sm:$0x1]
      %v3586 = vperm.slane %v3584, 0
      %v3592 = vunpack.c.l.b16 %v3580
      %v3593 = vunpack.c.l.b16 %v3581
      %v3594 = vunpack.c.l.b16 %v3582
      %v3595 = vunpack.c.l.b16 %v3583
      %v3596 = vpack.c.b16 %v3593, %v3592
      %v3597 = vpack.c.b16 %v3595, %v3594
      %v3601 = vsel %vm359, %v3579, 0
      %3603 = vmatpush.bf16.msra.mxu0 0
      %3604 = vmatpush.bf16.msra.mxu0 0
      %3605 = vmatpush.bf16.msra.mxu0 0
      %3606 = vmatpush.bf16.msra.mxu0 0
      %3607 = vmatpush.bf16.msra.mxu0 0
      %3608 = vmatpush.bf16.msra.mxu0 0
      %3609 = vmatpush.bf16.msra.mxu0 %v3597
      %3610 = vmatpush.bf16.msra.mxu0 %v3596
      %3611 = vmatmul.bf16.gmra.mxu0 %v3601
      %v3612 = vpop.f32.mrf.mxu0
      %v3613 = vadd.f32 %v3586, %v3612
      %v3614 = vpop.f32.mrf.mxu0
      %v3615 = vadd.f32 %v3586, %v3614
      %3616 = vdwg.mxu0
      %v3617 = vadd.f32 %v3613, %v1995
      %v3618 = vadd.f32 %v3615, %v1996
      %v3619 = vld [vmem:[#allocation24] sm:$0x3]
      %v3620 = vsel %vm359, %v3617, 0.0
      %3621 = vadd.xlane.f32.xlu0 %v3620
      %v3622 = vpop.xlane.xlu0 %3621
      %v3623 = vsel %vm359, %v3618, 0.0
      %3624 = vadd.xlane.f32.xlu0 %v3623
      %v3625 = vpop.xlane.xlu0 %3624
      %v3626 = vmul.f32 %v3622, %v1952
      %v3627 = vmul.f32 %v3625, %v1952
      %v3628 = vsub.f32 %v3617, %v3626
      %v3629 = vsub.f32 %v3618, %v3627
      %v3630 = vmul.f32 %v3628, %v3628
      %v3631 = vmul.f32 %v3629, %v3629
      %v3632 = vsel %vm359, %v3630, 0.0
      %3633 = vadd.xlane.f32.xlu0 %v3632
      %v3634 = vpop.xlane.xlu0 %3633
      %v3635 = vsel %vm359, %v3631, 0.0
      %3636 = vadd.xlane.f32.xlu0 %v3635
      %v3637 = vpop.xlane.xlu0 %3636
      %v3638 = vmul.f32 %v3634, %v1952
      %v3639 = vmul.f32 %v3637, %v1952
      %v3640 = vadd.f32 %v3638, 1e-05
      %v3641 = vadd.f32 %v3639, 1e-05
      %v3642 = vrsqrt.pop %v3640
      %v3643 = vmul.f32 %v3642, %v3640
      %v3644 = vmul.f32 %v3643, %v3642
      %v3645 = vmul.f32 0.5, %v3644
      %v3646 = vsub.f32 1.5, %v3645
      %v3647 = vmul.f32 %v3642, %v3646
      %vm3648 = vweird.f32 %v3640
      %vm3649 = vweird.f32 %v3642
      %vm3650 = vmor %vm3648, %vm3649
      %v3651 = vsel %vm3650, %v3642, %v3647
      %v3652 = vrsqrt.pop %v3641
      %v3653 = vmul.f32 %v3652, %v3641
      %v3654 = vmul.f32 %v3653, %v3652
      %v3655 = vmul.f32 0.5, %v3654
      %v3656 = vsub.f32 1.5, %v3655
      %v3657 = vmul.f32 %v3652, %v3656
      %vm3658 = vweird.f32 %v3641
      %vm3659 = vweird.f32 %v3652
      %vm3660 = vmor %vm3658, %vm3659
      %v3661 = vsel %vm3660, %v3652, %v3657
      %v3662 = vmul.f32 %v3628, %v3651
      %v3663 = vmul.f32 %v3629, %v3661
      %v3664 = vperm.slane %v3619, 0
      %v3665 = vmul.f32 %v3662, %v3664
      %v3666 = vmul.f32 %v3663, %v3664
      %v3667 = vperm.slane %v3619, 1
      %v3668 = vadd.f32 %v3665, %v3667
      %v3669 = vadd.f32 %v3666, %v3667
      %v3670 = vpack.c.bf16 %v3668, %v3668
      %v3671 = vpack.c.bf16 %v3669, %v3669
      %vm3672 = vcmask 257024
      %3673 = vst.msk [vmem:[#allocation2] sm:$0xf] %vm3672, %v3670
      %3674 = vst.msk [vmem:[#allocation2 + $0x4] sm:$0xf] %vm3672, %v3671
      %3675 = vst.msk [vmem:[#allocation3] sm:$0xff] %vm359, 0.0
      %3676 = vst.msk [vmem:[#allocation3 + $0x8] sm:$0xff] %vm359, 0.0
    $region153: #{tpu_custom_call.1} parent=1 // pred_fallthru
      _
    %v3677 = vld [vmem:[#allocation2] sm:$0xf]
    %v3678 = vld [vmem:[#allocation2 + $0x4] sm:$0xf]
    %v3679 = vld [vmem:[#allocation25] sm:$0xf]
    %v3680 = vld [vmem:[#allocation25 + $0x4] sm:$0xf]
    %v3681 = vld [vmem:[#allocation25 + $0x8] sm:$0xf]
    %v3682 = vld [vmem:[#allocation25 + $0xc] sm:$0xf]
    %v3683 = vld [vmem:[#allocation27] sm:$0x1]
    %v3685 = vperm.slane %v3683, 0
    %v3689 = vunpack.c.l.b16 %v3677
    %v3690 = vunpack.c.l.b16 %v3678
    %v3691 = vpack.c.b16 %v3690, %v3689
    %v3696 = vunpack.c.l.b16 %v3679
    %v3697 = vunpack.c.l.b16 %v3680
    %v3698 = vunpack.c.l.b16 %v3681
    %v3699 = vunpack.c.l.b16 %v3682
    %v3700 = vpack.c.b16 %v3697, %v3696
    %v3701 = vpack.c.b16 %v3699, %v3698
    %vm3704 = vcmask 261120
    %v3706 = vsel %vm3704, %v3691, 0
    %3708 = vmatpush.bf16.msra.mxu0 0
    %3709 = vmatpush.bf16.msra.mxu0 0
    %3710 = vmatpush.bf16.msra.mxu0 0
    %3711 = vmatpush.bf16.msra.mxu0 0
    %3712 = vmatpush.bf16.msra.mxu0 0
    %3713 = vmatpush.bf16.msra.mxu0 0
    %3714 = vmatpush.bf16.msra.mxu0 %v3701
    %3715 = vmatpush.bf16.msra.mxu0 %v3700
    %3716 = vmatmul.bf16.gmra.mxu0 %v3706
    %v3717 = vpop.f32.mrf.mxu0
    %v3718 = vadd.f32 %v3685, %v3717
    %v3719 = vpop.f32.mrf.mxu0
    %v3720 = vadd.f32 %v3685, %v3719
    %3721 = vdwg.mxu0
    %v3722 = vmul.f32 %v3718, %v3718
    %v3723 = vmul.f32 %v3720, %v3720
    %v3724 = vmul.f32 %v3718, %v3722
    %v3725 = vmul.f32 %v3720, %v3723
    %v3726 = vmul.f32 %v3724, 0.044715
    %v3727 = vmul.f32 %v3725, 0.044715
    %v3728 = vadd.f32 %v3718, %v3726
    %v3729 = vadd.f32 %v3720, %v3727
    %v3730 = vmul.f32 %v3728, 0.7978846
    %v3731 = vmul.f32 %v3729, 0.7978846
    %v3732 = vtanh.pop %v3730
    %v3733 = vtanh.pop %v3731
    %v3734 = vadd.f32 %v3732, 1.0
    %v3735 = vadd.f32 %v3733, 1.0
    %v3736 = vmul.f32 %v3734, 0.5
    %v3737 = vmul.f32 %v3735, 0.5
    %v3738 = vmul.f32 %v3718, %v3736
    %v3739 = vmul.f32 %v3720, %v3737
    %v3740 = vpack.c.bf16 %v3739, %v3738
    %v3741 = vld [vmem:[#allocation3] sm:$0xff]
    %v3742 = vld [vmem:[#allocation3 + $0x8] sm:$0xff]
    %v3743 = vld [vmem:[%s18] sm:$0xf]
    %v3744 = vld [vmem:[%s18 + $0x4] sm:$0xf]
    %v3745 = vld [vmem:[%s18 + $0x8] sm:$0xf]
    %v3746 = vld [vmem:[%s18 + $0xc] sm:$0xf]
    %v3747 = vld [vmem:[%s18 + $0x10] sm:$0xf]
    %v3748 = vld [vmem:[%s18 + $0x14] sm:$0xf]
    %v3749 = vld [vmem:[%s18 + $0x18] sm:$0xf]
    %v3750 = vld [vmem:[%s18 + $0x1c] sm:$0xf]
    %v3759 = vunpack.c.l.b16 %v3743
    %v3760 = vunpack.c.l.b16 %v3744
    %v3761 = vunpack.c.l.b16 %v3745
    %v3762 = vunpack.c.l.b16 %v3746
    %v3763 = vunpack.c.l.b16 %v3747
    %v3764 = vunpack.c.l.b16 %v3748
    %v3765 = vunpack.c.l.b16 %v3749
    %v3766 = vunpack.c.l.b16 %v3750
    %v3767 = vpack.c.b16 %v3760, %v3759
    %v3768 = vpack.c.b16 %v3762, %v3761
    %v3769 = vpack.c.b16 %v3764, %v3763
    %v3770 = vpack.c.b16 %v3766, %v3765
    %vm3775 = vcmask 523264
    %v3777 = vsel %vm3775, %v3740, 0
    %3779 = vmatpush.bf16.msra.mxu0 0
    %3780 = vmatpush.bf16.msra.mxu0 0
    %3781 = vmatpush.bf16.msra.mxu0 0
    %3782 = vmatpush.bf16.msra.mxu0 0
    %3783 = vmatpush.bf16.msra.mxu0 %v3770
    %3784 = vmatpush.bf16.msra.mxu0 %v3769
    %3785 = vmatpush.bf16.msra.mxu0 %v3768
    %3786 = vmatpush.bf16.msra.mxu0 %v3767
    %3787 = vmatmul.bf16.gmra.mxu0 %v3777
    %v3788 = vpop.f32.mrf.mxu0
    %v3789 = vadd.f32 0.0, %v3788
    %v3790 = vpop.f32.mrf.mxu0
    %v3791 = vadd.f32 0.0, %v3790
    %3792 = vdwg.mxu0
    %v3793 = vadd.f32 %v3741, %v3789
    %v3794 = vadd.f32 %v3742, %v3791
    %3795 = vst.msk [vmem:[#allocation3] sm:$0xff] %vm3704, %v3793
    %3796 = vst.msk [vmem:[#allocation3 + $0x8] sm:$0xff] %vm3704, %v3794
    // Predicated region
    $region154: #{tpu_custom_call.1} parent=1 // pred_check
      %p3797 = pneg %p301
    $region155: #{tpu_custom_call.1} parent=1 // pred_check_branch
      %3799 = sbr.rel (%p3797) target = $region157
    $region156: #{tpu_custom_call.1} parent=1 // pred_region
      %v3800 = vld [vmem:[#allocation4] sm:$0xf]
      %v3801 = vld [vmem:[#allocation4 + $0x4] sm:$0xf]
      %v3802 = vunpack.c.l.bf16 %v3800
      %v3803 = vunpack.c.l.bf16 %v3801
      %v3804 = vld [vmem:[#allocation3] sm:$0xff]
      %v3805 = vld [vmem:[#allocation3 + $0x8] sm:$0xff]
      %v3806 = vld [vmem:[#allocation28] sm:$0x1]
      %v3808 = vperm.slane %v3806, 0
      %v3810 = vadd.f32 %v3804, %v3808
      %v3811 = vadd.f32 %v3805, %v3808
      %v3812 = vadd.f32 %v3810, %v3802
      %v3813 = vadd.f32 %v3811, %v3803
      %v3814 = vld [vmem:[%s20] sm:$0x3]
      %v3815 = vsel %vm3704, %v3812, 0.0
      %3816 = vadd.xlane.f32.xlu0 %v3815
      %v3817 = vpop.xlane.xlu0 %3816
      %v3818 = vsel %vm3704, %v3813, 0.0
      %3819 = vadd.xlane.f32.xlu0 %v3818
      %v3820 = vpop.xlane.xlu0 %3819
      %v3821 = vrcp.pop 32.0
      %v3822 = vmul.f32 32.0, %v3821
      %v3823 = vsub.f32 1.0, %v3822
      %v3824 = vmul.f32 %v3821, %v3823
      %v3825 = vadd.f32 %v3821, %v3824
      %vm3826 = vweird.f32 %v3821
      %v3827 = vsel %vm3826, %v3821, %v3825
      %v3828 = vmul.f32 %v3817, %v3827
      %v3829 = vmul.f32 %v3820, %v3827
      %v3830 = vsub.f32 %v3812, %v3828
      %v3831 = vsub.f32 %v3813, %v3829
      %v3832 = vmul.f32 %v3830, %v3830
      %v3833 = vmul.f32 %v3831, %v3831
      %v3834 = vsel %vm3704, %v3832, 0.0
      %3835 = vadd.xlane.f32.xlu0 %v3834
      %v3836 = vpop.xlane.xlu0 %3835
      %v3837 = vsel %vm3704, %v3833, 0.0
      %3838 = vadd.xlane.f32.xlu0 %v3837
      %v3839 = vpop.xlane.xlu0 %3838
      %v3840 = vmul.f32 %v3836, %v3827
      %v3841 = vmul.f32 %v3839, %v3827
      %v3842 = vadd.f32 %v3840, 1e-05
      %v3843 = vadd.f32 %v3841, 1e-05
      %v3844 = vrsqrt.pop %v3842
      %v3845 = vmul.f32 %v3844, %v3842
      %v3846 = vmul.f32 %v3845, %v3844
      %v3847 = vmul.f32 0.5, %v3846
      %v3848 = vsub.f32 1.5, %v3847
      %v3849 = vmul.f32 %v3844, %v3848
      %vm3850 = vweird.f32 %v3842
      %vm3851 = vweird.f32 %v3844
      %vm3852 = vmor %vm3850, %vm3851
      %v3853 = vsel %vm3852, %v3844, %v3849
      %v3854 = vrsqrt.pop %v3843
      %v3855 = vmul.f32 %v3854, %v3843
      %v3856 = vmul.f32 %v3855, %v3854
      %v3857 = vmul.f32 0.5, %v3856
      %v3858 = vsub.f32 1.5, %v3857
      %v3859 = vmul.f32 %v3854, %v3858
      %vm3860 = vweird.f32 %v3843
      %vm3861 = vweird.f32 %v3854
      %vm3862 = vmor %vm3860, %vm3861
      %v3863 = vsel %vm3862, %v3854, %v3859
      %v3864 = vmul.f32 %v3830, %v3853
      %v3865 = vmul.f32 %v3831, %v3863
      %v3866 = vperm.slane %v3814, 0
      %v3867 = vmul.f32 %v3864, %v3866
      %v3868 = vmul.f32 %v3865, %v3866
      %v3869 = vperm.slane %v3814, 1
      %v3870 = vadd.f32 %v3867, %v3869
      %v3871 = vadd.f32 %v3868, %v3869
      %v3872 = vpack.c.bf16 %v3870, %v3870
      %v3873 = vpack.c.bf16 %v3871, %v3871
      %vm3874 = vcmask 257024
      %3875 = vst.msk [vmem:[#allocation30] sm:$0xf] %vm3874, %v3872
      %3876 = vst.msk [vmem:[#allocation30 + $0x4] sm:$0xf] %vm3874, %v3873
    $region157: #{tpu_custom_call.1} parent=1 // pred_fallthru
      _
    // Predicated region
    $region158: #{tpu_custom_call.1} parent=1 // pred_check
      _
    $region159: #{tpu_custom_call.1} parent=1 // pred_check_branch
      %3878 = sbr.rel (0) target = $region161
    $region160: #{tpu_custom_call.1} parent=1 // pred_region
      %3880 = vsyncadd [#allocation6], 0
      %s3881 = sshll.u32 [#allocation30], 4
      %s3882 = int_to_ptr.vmem [resolvable:$true] %s3881
      %s3883 = sshll.u32 %s21, 4
      %s3884 = int_to_ptr.hbm [resolvable:$true] %s3883
      %3889 = dma.vmem_to_hbm [thread:$0]  %s3882, 128, %s3884, [#allocation6], 64, 64, 4
    $region161: #{tpu_custom_call.1} parent=1 // pred_fallthru
      _
    // Predicated region
    $region162: #{tpu_custom_call.1} parent=1 // pred_check
      _
    $region163: #{tpu_custom_call.1} parent=1 // pred_check_branch
      %3891 = sbr.rel (0) target = $region165
    $region164: #{tpu_custom_call.1} parent=1 // pred_region
      %3893 = dma.done [#allocation6], 128
    $region165: #{tpu_custom_call.1} parent=1 // pred_fallthru
      _
    %3894 = vsyncpa [#allocation5], 1
    %3895 = vsyncpa [#allocation8], 1
    %3896 = vsyncpa [#allocation11], 1
    %3897 = vsyncpa [#allocation14], 1
    %3898 = vsyncpa [#allocation17], 1
    %3899 = vsyncpa [#allocation20], 1
    %3900 = vsyncpa [#allocation23], 1
    %3901 = vsyncpa [#allocation26], 1
    %3902 = vsyncpa [#allocation29], 1
    %3903 = vsyncpa [#allocation6], 1

</llo_original>
